<compile_context>
chip_gen: v7x
topology: tpu7x:2x2x1
jax: 0.10.0
libtpu: 0.0.40
codegen_flags: <defaults>
</compile_context>

<pallas_src>
import math
import jax
import jax.numpy as jnp
from jax.experimental import pallas as pl
from jax.experimental.pallas import tpu as pltpu

# ---- model hyper-parameters (small synthetic BERT) -------------------------
B = 2            # batch
S = 8            # sequence length
H = 32           # hidden size
NH = 4           # attention heads
HD = H // NH     # head dim
FF = 64          # intermediate (FFN) size
VOCAB = 128
TYPE_VOCAB = 2
MAX_POS = 16
NUM_LAYERS = 2
LN_EPS = 1e-12


# ---- shared math helpers (used by both kernel and pure-JAX reference) ------
def _layernorm(x, gamma, beta):
    mean = jnp.mean(x, axis=-1, keepdims=True)
    var = jnp.mean((x - mean) ** 2, axis=-1, keepdims=True)
    return (x - mean) * jax.lax.rsqrt(var + LN_EPS) * gamma + beta


def _gelu(x):
    # tanh approximation of GELU (maps onto the EUP)
    c = math.sqrt(2.0 / math.pi)
    return 0.5 * x * (1.0 + jnp.tanh(c * (x + 0.044715 * x * x * x)))


# ---- fused Pallas kernel ----------------------------------------------------
def bert_encoder_kernel(
        ids_ref, tt_ref, mask_ref,                         # (B*S,1), (B*S,1), (B,1,S) int32
        word_emb_ref, pos_emb_ref, type_emb_ref,           # (VOCAB,H), (MAX_POS,H), (2,H)
        emb_g_ref, emb_b_ref,                              # (1,H)
        wq_ref, bq_ref, wk_ref, bk_ref, wv_ref, bv_ref,    # (L,H,H), (L,1,H)
        wo_ref, bo_ref,                                    # (L,H,H), (L,1,H)
        attn_g_ref, attn_b_ref,                            # (L,1,H)
        w1_ref, b1_ref, w2_ref, b2_ref,                    # (L,H,FF),(L,1,FF),(L,FF,H),(L,1,H)
        ffn_g_ref, ffn_b_ref,                              # (L,1,H)
        out_ref):                                          # (B,H)
    f32 = jnp.float32

    # ---------- embeddings (gather-free, fully in-kernel) ----------
    ids = ids_ref[...]                                     # (B*S, 1) int32
    vocab_iota = jax.lax.broadcasted_iota(jnp.int32, (B * S, VOCAB), 1)
    word_onehot = (vocab_iota == ids).astype(f32)          # (B*S, VOCAB)
    x = jnp.dot(word_onehot, word_emb_ref[...],
                preferred_element_type=f32)                # (B*S, H)

    # token-type embedding: TYPE_VOCAB == 2 -> simple blend (pure VPU)
    tt_f = tt_ref[...].astype(f32)                         # (B*S, 1)
    x = x + (1.0 - tt_f) * type_emb_ref[0:1, :] + tt_f * type_emb_ref[1:2, :]

    # position embedding: rows 0..S-1, broadcast over batch
    x = (x.reshape(B, S, H) + pos_emb_ref[0:S, :][None, :, :]).reshape(B * S, H)

    x = _layernorm(x, emb_g_ref[...], emb_b_ref[...])      # (B*S, H)

    # additive attention-mask bias, replicated head-major once (hoisted)
    mask_bias = (1.0 - mask_ref[...].astype(f32)) * -10000.0       # (B, 1, S)
    mask_bias = jnp.concatenate([mask_bias] * NH, axis=0)          # (NH*B, 1, S)

    scale = 1.0 / math.sqrt(HD)

    # ---------- transformer layers (static unrolled loop, VMEM-resident x) ----
    for l in range(NUM_LAYERS):
        # projections as flat 2-D matmuls
        q = jnp.dot(x, wq_ref[l], preferred_element_type=f32) + bq_ref[l]
        k = jnp.dot(x, wk_ref[l], preferred_element_type=f32) + bk_ref[l]
        v = jnp.dot(x, wv_ref[l], preferred_element_type=f32) + bv_ref[l]

        # (B*S, H) -> (NH*B, S, HD), head-major (static lane slices + concat)
        def heads(t2d):
            t3 = t2d.reshape(B, S, H)
            return jnp.concatenate(
                [t3[:, :, h * HD:(h + 1) * HD] for h in range(NH)], axis=0)

        qh, kh, vh = heads(q), heads(k), heads(v)          # (NH*B, S, HD)

        # one batched einsum for scores, one for context
        scores = jnp.einsum('nqd,nkd->nqk', qh, kh,
                            preferred_element_type=f32) * scale    # (NH*B, S, S)
        scores = scores + mask_bias
        scores = scores - jnp.max(scores, axis=-1, keepdims=True)
        p = jnp.exp(scores)
        p = p * pl.reciprocal(jnp.sum(p, axis=-1, keepdims=True), approx=True)

        ctx = jnp.einsum('nqk,nkd->nqd', p, vh,
                         preferred_element_type=f32)                # (NH*B, S, HD)
        # merge heads back: (NH*B, S, HD) -> (B, S, H) -> (B*S, H)
        ctx = jnp.concatenate(
            [ctx[h * B:(h + 1) * B] for h in range(NH)], axis=-1).reshape(B * S, H)

        attn_out = jnp.dot(ctx, wo_ref[l], preferred_element_type=f32) + bo_ref[l]
        x = _layernorm(x + attn_out, attn_g_ref[l], attn_b_ref[l])

        # FFN
        h1 = jnp.dot(x, w1_ref[l], preferred_element_type=f32) + b1_ref[l]
        h1 = _gelu(h1)
        y = jnp.dot(h1, w2_ref[l], preferred_element_type=f32) + b2_ref[l]
        x = _layernorm(x + y, ffn_g_ref[l], ffn_b_ref[l])

    # only the CLS hidden state leaves the kernel (rows 0, S, 2S, ...)
    out_ref[...] = x.reshape(B, S, H)[:, 0, :]


# ---- wrapper ----------------------------------------------------------------
def bert_encoder(input_ids, token_type_ids, attention_mask, params):
    vmem = pl.BlockSpec(memory_space=pltpu.MemorySpace.VMEM)
    args = [
        input_ids.reshape(B * S, 1).astype(jnp.int32),
        token_type_ids.reshape(B * S, 1).astype(jnp.int32),
        attention_mask.reshape(B, 1, S).astype(jnp.int32),
        params['word_emb'], params['pos_emb'], params['type_emb'],
        params['emb_ln_g'], params['emb_ln_b'],
        params['wq'], params['bq'], params['wk'], params['bk'],
        params['wv'], params['bv'], params['wo'], params['bo'],
        params['attn_ln_g'], params['attn_ln_b'],
        params['w1'], params['b1'], params['w2'], params['b2'],
        params['ffn_ln_g'], params['ffn_ln_b'],
    ]
    return pl.pallas_call(
        bert_encoder_kernel,
        out_shape=jax.ShapeDtypeStruct((B, H), jnp.float32),
        in_specs=[vmem] * len(args),
        out_specs=vmem,
    )(*args)


# ---- pure-JAX reference (for correctness check) -----------------------------
def bert_encoder_ref(input_ids, token_type_ids, attention_mask, params):
    x = (params['word_emb'][input_ids]
         + params['pos_emb'][jnp.arange(S)][None, :, :]
         + params['type_emb'][token_type_ids])
    x = _layernorm(x, params['emb_ln_g'], params['emb_ln_b'])
    bias = (1.0 - attention_mask.astype(jnp.float32))[:, None, None, :] * -10000.0
    for l in range(NUM_LAYERS):
        q = x @ params['wq'][l] + params['bq'][l]
        k = x @ params['wk'][l] + params['bk'][l]
        v = x @ params['wv'][l] + params['bv'][l]

        def heads(t):
            return t.reshape(B, S, NH, HD).transpose(0, 2, 1, 3)

        s = jnp.einsum('bhqd,bhkd->bhqk', heads(q), heads(k)) / math.sqrt(HD) + bias
        p = jax.nn.softmax(s, axis=-1)
        ctx = jnp.einsum('bhqk,bhkd->bhqd', p, heads(v))
        ctx = ctx.transpose(0, 2, 1, 3).reshape(B, S, H)
        x = _layernorm(x + ctx @ params['wo'][l] + params['bo'][l],
                       params['attn_ln_g'][l], params['attn_ln_b'][l])
        h1 = _gelu(x @ params['w1'][l] + params['b1'][l])
        x = _layernorm(x + h1 @ params['w2'][l] + params['b2'][l],
                       params['ffn_ln_g'][l], params['ffn_ln_b'][l])
    return x[:, 0, :]


# ---- deterministic parameter construction -----------------------------------
def make_params(key):
    def nrm(k, shape):
        return 0.02 * jax.random.normal(k, shape, dtype=jnp.float32)

    ks = jax.random.split(key, 9)
    L = NUM_LAYERS
    return {
        'word_emb': nrm(ks[0], (VOCAB, H)),
        'pos_emb': nrm(ks[1], (MAX_POS, H)),
        'type_emb': nrm(ks[2], (TYPE_VOCAB, H)),
        'emb_ln_g': jnp.ones((1, H), jnp.float32),
        'emb_ln_b': jnp.zeros((1, H), jnp.float32),
        'wq': nrm(ks[3], (L, H, H)), 'bq': jnp.zeros((L, 1, H), jnp.float32),
        'wk': nrm(ks[4], (L, H, H)), 'bk': jnp.zeros((L, 1, H), jnp.float32),
        'wv': nrm(ks[5], (L, H, H)), 'bv': jnp.zeros((L, 1, H), jnp.float32),
        'wo': nrm(ks[6], (L, H, H)), 'bo': jnp.zeros((L, 1, H), jnp.float32),
        'attn_ln_g': jnp.ones((L, 1, H), jnp.float32),
        'attn_ln_b': jnp.zeros((L, 1, H), jnp.float32),
        'w1': nrm(ks[7], (L, H, FF)), 'b1': jnp.zeros((L, 1, FF), jnp.float32),
        'w2': nrm(ks[8], (L, FF, H)), 'b2': jnp.zeros((L, 1, H), jnp.float32),
        'ffn_ln_g': jnp.ones((L, 1, H), jnp.float32),
        'ffn_ln_b': jnp.zeros((L, 1, H), jnp.float32),
    }


if __name__ == "__main__":
    root = jax.random.PRNGKey(0)
    k_par, k_ids = jax.random.split(root)

    params = make_params(k_par)

    # synthetic "tokenized batch" (stands in for tokenizer output)
    input_ids = jax.random.randint(k_ids, (B, S), 0, VOCAB, dtype=jnp.int32)
    input_ids = input_ids.at[:, 0].set(1)                    # [CLS]-like token
    token_type_ids = jnp.zeros((B, S), dtype=jnp.int32)
    attention_mask = jnp.ones((B, S), dtype=jnp.int32)
    attention_mask = attention_mask.at[1, S - 2:].set(0)     # some padding

    cls_hidden = jax.jit(bert_encoder)(input_ids, token_type_ids,
                                       attention_mask, params)
    cls_hidden = jax.block_until_ready(cls_hidden)

    assert cls_hidden.shape == (B, H)
    assert bool(jnp.all(jnp.isfinite(cls_hidden)))

    ref = bert_encoder_ref(input_ids, token_type_ids, attention_mask, params)
    max_err = float(jnp.max(jnp.abs(cls_hidden - ref)))
    assert max_err < 5e-2, f"mismatch vs pure-JAX reference: {max_err}"

    print("KERNEL_OK")
</pallas_src>

<mosaic_0001>
module attributes {stable_mosaic.version = 11 : i64} {
  func.func @bert_encoder_kernel(%arg0: memref<16x1xi32, #tpu.memory_space<vmem>>, %arg1: memref<16x1xi32, #tpu.memory_space<vmem>>, %arg2: memref<2x1x8xi32, #tpu.memory_space<vmem>>, %arg3: memref<128x32xf32, #tpu.memory_space<vmem>>, %arg4: memref<16x32xf32, #tpu.memory_space<vmem>>, %arg5: memref<2x32xf32, #tpu.memory_space<vmem>>, %arg6: memref<1x32xf32, #tpu.memory_space<vmem>>, %arg7: memref<1x32xf32, #tpu.memory_space<vmem>>, %arg8: memref<2x32x32xf32, #tpu.memory_space<vmem>>, %arg9: memref<2x1x32xf32, #tpu.memory_space<vmem>>, %arg10: memref<2x32x32xf32, #tpu.memory_space<vmem>>, %arg11: memref<2x1x32xf32, #tpu.memory_space<vmem>>, %arg12: memref<2x32x32xf32, #tpu.memory_space<vmem>>, %arg13: memref<2x1x32xf32, #tpu.memory_space<vmem>>, %arg14: memref<2x32x32xf32, #tpu.memory_space<vmem>>, %arg15: memref<2x1x32xf32, #tpu.memory_space<vmem>>, %arg16: memref<2x1x32xf32, #tpu.memory_space<vmem>>, %arg17: memref<2x1x32xf32, #tpu.memory_space<vmem>>, %arg18: memref<2x32x64xf32, #tpu.memory_space<vmem>>, %arg19: memref<2x1x64xf32, #tpu.memory_space<vmem>>, %arg20: memref<2x64x32xf32, #tpu.memory_space<vmem>>, %arg21: memref<2x1x32xf32, #tpu.memory_space<vmem>>, %arg22: memref<2x1x32xf32, #tpu.memory_space<vmem>>, %arg23: memref<2x1x32xf32, #tpu.memory_space<vmem>>, %arg24: memref<2x32xf32, #tpu.memory_space<vmem>>) attributes {dimension_semantics = [], scalar_prefetch = 0 : i64, scratch_operands = 0 : i64, tpu.core_type = #tpu.core_type<tc>} {
    %c0 = arith.constant 0 : index
    %c0_0 = arith.constant 0 : index
    %0 = vector.load %arg0[%c0, %c0_0] : memref<16x1xi32, #tpu.memory_space<vmem>>, vector<16x1xi32>
    %1 = tpu.iota {dimensions = array<i32: 1>} : vector<16x128xi32>
    %2 = vector.broadcast %0 : vector<16x1xi32> to vector<16x128xi32>
    %3 = arith.cmpi eq, %1, %2 : vector<16x128xi32>
    %4 = arith.extui %3 : vector<16x128xi1> to vector<16x128xi32>
    %5 = arith.sitofp %4 : vector<16x128xi32> to vector<16x128xf32>
    %c0_1 = arith.constant 0 : index
    %c0_2 = arith.constant 0 : index
    %6 = vector.load %arg3[%c0_1, %c0_2] : memref<128x32xf32, #tpu.memory_space<vmem>>, vector<128x32xf32>
    %cst = arith.constant dense<0.000000e+00> : vector<16x32xf32>
    %7 = tpu.matmul %5, %6, %cst {dimension_numbers = #tpu.dot_dimension_numbers<[1], [0], [0], [1], [0, 0, 1, 1], [], []>} : vector<16x128xf32>, vector<128x32xf32>, vector<16x32xf32> -> vector<16x32xf32>
    %c0_3 = arith.constant 0 : index
    %c0_4 = arith.constant 0 : index
    %8 = vector.load %arg1[%c0_3, %c0_4] : memref<16x1xi32, #tpu.memory_space<vmem>>, vector<16x1xi32>
    %9 = arith.sitofp %8 : vector<16x1xi32> to vector<16x1xf32>
    %cst_5 = arith.constant 1.000000e+00 : f32
    %10 = vector.broadcast %cst_5 : f32 to vector<16x1xf32>
    %11 = arith.subf %10, %9 : vector<16x1xf32>
    %c0_6 = arith.constant 0 : index
    %c0_7 = arith.constant 0 : index
    %12 = vector.load %arg5[%c0_6, %c0_7] : memref<2x32xf32, #tpu.memory_space<vmem>>, vector<1x32xf32>
    %13 = vector.broadcast %11 : vector<16x1xf32> to vector<16x32xf32>
    %14 = vector.broadcast %12 : vector<1x32xf32> to vector<16x32xf32>
    %15 = arith.mulf %13, %14 : vector<16x32xf32>
    %16 = arith.addf %7, %15 : vector<16x32xf32>
    %c1 = arith.constant 1 : index
    %c0_8 = arith.constant 0 : index
    %17 = vector.load %arg5[%c1, %c0_8] : memref<2x32xf32, #tpu.memory_space<vmem>>, vector<1x32xf32>
    %18 = vector.broadcast %9 : vector<16x1xf32> to vector<16x32xf32>
    %19 = vector.broadcast %17 : vector<1x32xf32> to vector<16x32xf32>
    %20 = arith.mulf %18, %19 : vector<16x32xf32>
    %21 = arith.addf %16, %20 : vector<16x32xf32>
    %22 = vector.shape_cast %21 : vector<16x32xf32> to vector<2x8x32xf32>
    %c0_9 = arith.constant 0 : index
    %c0_10 = arith.constant 0 : index
    %23 = vector.load %arg4[%c0_9, %c0_10] : memref<16x32xf32, #tpu.memory_space<vmem>>, vector<8x32xf32>
    %24 = vector.shape_cast %23 : vector<8x32xf32> to vector<1x8x32xf32>
    %25 = vector.broadcast %24 : vector<1x8x32xf32> to vector<2x8x32xf32>
    %26 = arith.addf %22, %25 : vector<2x8x32xf32>
    %27 = vector.shape_cast %26 : vector<2x8x32xf32> to vector<16x32xf32>
    %c0_11 = arith.constant 0 : index
    %c0_12 = arith.constant 0 : index
    %28 = vector.load %arg6[%c0_11, %c0_12] : memref<1x32xf32, #tpu.memory_space<vmem>>, vector<1x32xf32>
    %c0_13 = arith.constant 0 : index
    %c0_14 = arith.constant 0 : index
    %29 = vector.load %arg7[%c0_13, %c0_14] : memref<1x32xf32, #tpu.memory_space<vmem>>, vector<1x32xf32>
    %cst_15 = arith.constant dense<0.000000e+00> : vector<16xf32>
    %30 = vector.multi_reduction <add>, %27, %cst_15 [1] : vector<16x32xf32> to vector<16xf32>
    %31 = vector.shape_cast %30 : vector<16xf32> to vector<16x1xf32>
    %cst_16 = arith.constant 3.200000e+01 : f32
    %32 = vector.broadcast %cst_16 : f32 to vector<16x1xf32>
    %33 = arith.divf %31, %32 : vector<16x1xf32>
    %34 = vector.broadcast %33 : vector<16x1xf32> to vector<16x32xf32>
    %35 = arith.subf %27, %34 : vector<16x32xf32>
    %36 = arith.mulf %35, %35 : vector<16x32xf32>
    %cst_17 = arith.constant dense<0.000000e+00> : vector<16xf32>
    %37 = vector.multi_reduction <add>, %36, %cst_17 [1] : vector<16x32xf32> to vector<16xf32>
    %38 = vector.shape_cast %37 : vector<16xf32> to vector<16x1xf32>
    %cst_18 = arith.constant 3.200000e+01 : f32
    %39 = vector.broadcast %cst_18 : f32 to vector<16x1xf32>
    %40 = arith.divf %38, %39 : vector<16x1xf32>
    %41 = vector.broadcast %33 : vector<16x1xf32> to vector<16x32xf32>
    %42 = arith.subf %27, %41 : vector<16x32xf32>
    %cst_19 = arith.constant 9.99999996E-13 : f32
    %43 = vector.broadcast %cst_19 : f32 to vector<16x1xf32>
    %44 = arith.addf %40, %43 : vector<16x1xf32>
    %45 = math.rsqrt %44 : vector<16x1xf32>
    %46 = vector.broadcast %45 : vector<16x1xf32> to vector<16x32xf32>
    %47 = arith.mulf %42, %46 : vector<16x32xf32>
    %48 = vector.broadcast %28 : vector<1x32xf32> to vector<16x32xf32>
    %49 = arith.mulf %47, %48 : vector<16x32xf32>
    %50 = vector.broadcast %29 : vector<1x32xf32> to vector<16x32xf32>
    %51 = arith.addf %49, %50 : vector<16x32xf32>
    %c0_20 = arith.constant 0 : index
    %c0_21 = arith.constant 0 : index
    %c0_22 = arith.constant 0 : index
    %52 = vector.load %arg2[%c0_20, %c0_21, %c0_22] : memref<2x1x8xi32, #tpu.memory_space<vmem>>, vector<2x1x8xi32>
    %53 = arith.sitofp %52 : vector<2x1x8xi32> to vector<2x1x8xf32>
    %cst_23 = arith.constant 1.000000e+00 : f32
    %54 = vector.broadcast %cst_23 : f32 to vector<2x1x8xf32>
    %55 = arith.subf %54, %53 : vector<2x1x8xf32>
    %cst_24 = arith.constant -1.000000e+04 : f32
    %56 = vector.broadcast %cst_24 : f32 to vector<2x1x8xf32>
    %57 = arith.mulf %55, %56 : vector<2x1x8xf32>
    %58 = tpu.concatenate %57, %57, %57, %57 in 0 : vector<2x1x8xf32>, vector<2x1x8xf32>, vector<2x1x8xf32>, vector<2x1x8xf32> -> vector<8x1x8xf32>
    %c0_25 = arith.constant 0 : index
    %c0_26 = arith.constant 0 : index
    %c0_27 = arith.constant 0 : index
    %59 = vector.load %arg8[%c0_25, %c0_26, %c0_27] : memref<2x32x32xf32, #tpu.memory_space<vmem>>, vector<1x32x32xf32>
    %60 = vector.shape_cast %59 : vector<1x32x32xf32> to vector<32x32xf32>
    %cst_28 = arith.constant dense<0.000000e+00> : vector<16x32xf32>
    %61 = tpu.matmul %51, %60, %cst_28 {dimension_numbers = #tpu.dot_dimension_numbers<[1], [0], [0], [1], [0, 0, 1, 1], [], []>} : vector<16x32xf32>, vector<32x32xf32>, vector<16x32xf32> -> vector<16x32xf32>
    %c0_29 = arith.constant 0 : index
    %c0_30 = arith.constant 0 : index
    %c0_31 = arith.constant 0 : index
    %62 = vector.load %arg9[%c0_29, %c0_30, %c0_31] : memref<2x1x32xf32, #tpu.memory_space<vmem>>, vector<1x1x32xf32>
    %63 = vector.shape_cast %62 : vector<1x1x32xf32> to vector<1x32xf32>
    %64 = vector.broadcast %63 : vector<1x32xf32> to vector<16x32xf32>
    %65 = arith.addf %61, %64 : vector<16x32xf32>
    %c0_32 = arith.constant 0 : index
    %c0_33 = arith.constant 0 : index
    %c0_34 = arith.constant 0 : index
    %66 = vector.load %arg10[%c0_32, %c0_33, %c0_34] : memref<2x32x32xf32, #tpu.memory_space<vmem>>, vector<1x32x32xf32>
    %67 = vector.shape_cast %66 : vector<1x32x32xf32> to vector<32x32xf32>
    %cst_35 = arith.constant dense<0.000000e+00> : vector<16x32xf32>
    %68 = tpu.matmul %51, %67, %cst_35 {dimension_numbers = #tpu.dot_dimension_numbers<[1], [0], [0], [1], [0, 0, 1, 1], [], []>} : vector<16x32xf32>, vector<32x32xf32>, vector<16x32xf32> -> vector<16x32xf32>
    %c0_36 = arith.constant 0 : index
    %c0_37 = arith.constant 0 : index
    %c0_38 = arith.constant 0 : index
    %69 = vector.load %arg11[%c0_36, %c0_37, %c0_38] : memref<2x1x32xf32, #tpu.memory_space<vmem>>, vector<1x1x32xf32>
    %70 = vector.shape_cast %69 : vector<1x1x32xf32> to vector<1x32xf32>
    %71 = vector.broadcast %70 : vector<1x32xf32> to vector<16x32xf32>
    %72 = arith.addf %68, %71 : vector<16x32xf32>
    %c0_39 = arith.constant 0 : index
    %c0_40 = arith.constant 0 : index
    %c0_41 = arith.constant 0 : index
    %73 = vector.load %arg12[%c0_39, %c0_40, %c0_41] : memref<2x32x32xf32, #tpu.memory_space<vmem>>, vector<1x32x32xf32>
    %74 = vector.shape_cast %73 : vector<1x32x32xf32> to vector<32x32xf32>
    %cst_42 = arith.constant dense<0.000000e+00> : vector<16x32xf32>
    %75 = tpu.matmul %51, %74, %cst_42 {dimension_numbers = #tpu.dot_dimension_numbers<[1], [0], [0], [1], [0, 0, 1, 1], [], []>} : vector<16x32xf32>, vector<32x32xf32>, vector<16x32xf32> -> vector<16x32xf32>
    %c0_43 = arith.constant 0 : index
    %c0_44 = arith.constant 0 : index
    %c0_45 = arith.constant 0 : index
    %76 = vector.load %arg13[%c0_43, %c0_44, %c0_45] : memref<2x1x32xf32, #tpu.memory_space<vmem>>, vector<1x1x32xf32>
    %77 = vector.shape_cast %76 : vector<1x1x32xf32> to vector<1x32xf32>
    %78 = vector.broadcast %77 : vector<1x32xf32> to vector<16x32xf32>
    %79 = arith.addf %75, %78 : vector<16x32xf32>
    %80 = vector.shape_cast %65 : vector<16x32xf32> to vector<2x8x32xf32>
    %81 = vector.extract_strided_slice %80 {offsets = [0, 0, 0], sizes = [2, 8, 8], strides = [1, 1, 1]} : vector<2x8x32xf32> to vector<2x8x8xf32>
    %82 = vector.extract_strided_slice %80 {offsets = [0, 0, 8], sizes = [2, 8, 8], strides = [1, 1, 1]} : vector<2x8x32xf32> to vector<2x8x8xf32>
    %83 = vector.extract_strided_slice %80 {offsets = [0, 0, 16], sizes = [2, 8, 8], strides = [1, 1, 1]} : vector<2x8x32xf32> to vector<2x8x8xf32>
    %84 = vector.extract_strided_slice %80 {offsets = [0, 0, 24], sizes = [2, 8, 8], strides = [1, 1, 1]} : vector<2x8x32xf32> to vector<2x8x8xf32>
    %85 = tpu.concatenate %81, %82, %83, %84 in 0 : vector<2x8x8xf32>, vector<2x8x8xf32>, vector<2x8x8xf32>, vector<2x8x8xf32> -> vector<8x8x8xf32>
    %86 = vector.shape_cast %72 : vector<16x32xf32> to vector<2x8x32xf32>
    %87 = vector.extract_strided_slice %86 {offsets = [0, 0, 0], sizes = [2, 8, 8], strides = [1, 1, 1]} : vector<2x8x32xf32> to vector<2x8x8xf32>
    %88 = vector.extract_strided_slice %86 {offsets = [0, 0, 8], sizes = [2, 8, 8], strides = [1, 1, 1]} : vector<2x8x32xf32> to vector<2x8x8xf32>
    %89 = vector.extract_strided_slice %86 {offsets = [0, 0, 16], sizes = [2, 8, 8], strides = [1, 1, 1]} : vector<2x8x32xf32> to vector<2x8x8xf32>
    %90 = vector.extract_strided_slice %86 {offsets = [0, 0, 24], sizes = [2, 8, 8], strides = [1, 1, 1]} : vector<2x8x32xf32> to vector<2x8x8xf32>
    %91 = tpu.concatenate %87, %88, %89, %90 in 0 : vector<2x8x8xf32>, vector<2x8x8xf32>, vector<2x8x8xf32>, vector<2x8x8xf32> -> vector<8x8x8xf32>
    %92 = vector.shape_cast %79 : vector<16x32xf32> to vector<2x8x32xf32>
    %93 = vector.extract_strided_slice %92 {offsets = [0, 0, 0], sizes = [2, 8, 8], strides = [1, 1, 1]} : vector<2x8x32xf32> to vector<2x8x8xf32>
    %94 = vector.extract_strided_slice %92 {offsets = [0, 0, 8], sizes = [2, 8, 8], strides = [1, 1, 1]} : vector<2x8x32xf32> to vector<2x8x8xf32>
    %95 = vector.extract_strided_slice %92 {offsets = [0, 0, 16], sizes = [2, 8, 8], strides = [1, 1, 1]} : vector<2x8x32xf32> to vector<2x8x8xf32>
    %96 = vector.extract_strided_slice %92 {offsets = [0, 0, 24], sizes = [2, 8, 8], strides = [1, 1, 1]} : vector<2x8x32xf32> to vector<2x8x8xf32>
    %97 = tpu.concatenate %93, %94, %95, %96 in 0 : vector<2x8x8xf32>, vector<2x8x8xf32>, vector<2x8x8xf32>, vector<2x8x8xf32> -> vector<8x8x8xf32>
    "tpu.trace_start"() <{level = 10 : i32, message = "nqd,nkd->nqk"}> : () -> ()
    %cst_46 = arith.constant dense<0.000000e+00> : vector<8x8x8xf32>
    %98 = tpu.matmul %85, %91, %cst_46 {dimension_numbers = #tpu.dot_dimension_numbers<[2], [2], [1], [1], [0, 0, 0, 1, 1, 1], [0], [0]>} : vector<8x8x8xf32>, vector<8x8x8xf32>, vector<8x8x8xf32> -> vector<8x8x8xf32>
    "tpu.trace_stop"() : () -> ()
    %cst_47 = arith.constant 0.353553385 : f32
    %99 = vector.broadcast %cst_47 : f32 to vector<8x8x8xf32>
    %100 = arith.mulf %98, %99 : vector<8x8x8xf32>
    %101 = vector.broadcast %58 : vector<8x1x8xf32> to vector<8x8x8xf32>
    %102 = arith.addf %100, %101 : vector<8x8x8xf32>
    %cst_48 = arith.constant dense<0xFF800000> : vector<8x8xf32>
    %103 = vector.multi_reduction <maximumf>, %102, %cst_48 [2] : vector<8x8x8xf32> to vector<8x8xf32>
    %104 = vector.shape_cast %103 : vector<8x8xf32> to vector<8x8x1xf32>
    %105 = vector.broadcast %104 : vector<8x8x1xf32> to vector<8x8x8xf32>
    %106 = arith.subf %102, %105 : vector<8x8x8xf32>
    %107 = math.exp %106 : vector<8x8x8xf32>
    %cst_49 = arith.constant dense<0.000000e+00> : vector<8x8xf32>
    %108 = vector.multi_reduction <add>, %107, %cst_49 [2] : vector<8x8x8xf32> to vector<8x8xf32>
    %109 = vector.shape_cast %108 : vector<8x8xf32> to vector<8x8x1xf32>
    %110 = tpu.reciprocal %109 {approx = true} : vector<8x8x1xf32> -> vector<8x8x1xf32>
    %111 = vector.broadcast %110 : vector<8x8x1xf32> to vector<8x8x8xf32>
    %112 = arith.mulf %107, %111 : vector<8x8x8xf32>
    "tpu.trace_start"() <{level = 10 : i32, message = "nqk,nkd->nqd"}> : () -> ()
    %cst_50 = arith.constant dense<0.000000e+00> : vector<8x8x8xf32>
    %113 = tpu.matmul %112, %97, %cst_50 {dimension_numbers = #tpu.dot_dimension_numbers<[2], [1], [1], [2], [0, 0, 0, 1, 1, 2], [0], [0]>} : vector<8x8x8xf32>, vector<8x8x8xf32>, vector<8x8x8xf32> -> vector<8x8x8xf32>
    "tpu.trace_stop"() : () -> ()
    %114 = vector.extract_strided_slice %113 {offsets = [0, 0, 0], sizes = [2, 8, 8], strides = [1, 1, 1]} : vector<8x8x8xf32> to vector<2x8x8xf32>
    %115 = vector.extract_strided_slice %113 {offsets = [2, 0, 0], sizes = [2, 8, 8], strides = [1, 1, 1]} : vector<8x8x8xf32> to vector<2x8x8xf32>
    %116 = vector.extract_strided_slice %113 {offsets = [4, 0, 0], sizes = [2, 8, 8], strides = [1, 1, 1]} : vector<8x8x8xf32> to vector<2x8x8xf32>
    %117 = vector.extract_strided_slice %113 {offsets = [6, 0, 0], sizes = [2, 8, 8], strides = [1, 1, 1]} : vector<8x8x8xf32> to vector<2x8x8xf32>
    %118 = tpu.concatenate %114, %115, %116, %117 in 2 : vector<2x8x8xf32>, vector<2x8x8xf32>, vector<2x8x8xf32>, vector<2x8x8xf32> -> vector<2x8x32xf32>
    %119 = vector.shape_cast %118 : vector<2x8x32xf32> to vector<16x32xf32>
    %c0_51 = arith.constant 0 : index
    %c0_52 = arith.constant 0 : index
    %c0_53 = arith.constant 0 : index
    %120 = vector.load %arg14[%c0_51, %c0_52, %c0_53] : memref<2x32x32xf32, #tpu.memory_space<vmem>>, vector<1x32x32xf32>
    %121 = vector.shape_cast %120 : vector<1x32x32xf32> to vector<32x32xf32>
    %cst_54 = arith.constant dense<0.000000e+00> : vector<16x32xf32>
    %122 = tpu.matmul %119, %121, %cst_54 {dimension_numbers = #tpu.dot_dimension_numbers<[1], [0], [0], [1], [0, 0, 1, 1], [], []>} : vector<16x32xf32>, vector<32x32xf32>, vector<16x32xf32> -> vector<16x32xf32>
    %c0_55 = arith.constant 0 : index
    %c0_56 = arith.constant 0 : index
    %c0_57 = arith.constant 0 : index
    %123 = vector.load %arg15[%c0_55, %c0_56, %c0_57] : memref<2x1x32xf32, #tpu.memory_space<vmem>>, vector<1x1x32xf32>
    %124 = vector.shape_cast %123 : vector<1x1x32xf32> to vector<1x32xf32>
    %125 = vector.broadcast %124 : vector<1x32xf32> to vector<16x32xf32>
    %126 = arith.addf %122, %125 : vector<16x32xf32>
    %127 = arith.addf %51, %126 : vector<16x32xf32>
    %c0_58 = arith.constant 0 : index
    %c0_59 = arith.constant 0 : index
    %c0_60 = arith.constant 0 : index
    %128 = vector.load %arg16[%c0_58, %c0_59, %c0_60] : memref<2x1x32xf32, #tpu.memory_space<vmem>>, vector<1x1x32xf32>
    %129 = vector.shape_cast %128 : vector<1x1x32xf32> to vector<1x32xf32>
    %c0_61 = arith.constant 0 : index
    %c0_62 = arith.constant 0 : index
    %c0_63 = arith.constant 0 : index
    %130 = vector.load %arg17[%c0_61, %c0_62, %c0_63] : memref<2x1x32xf32, #tpu.memory_space<vmem>>, vector<1x1x32xf32>
    %131 = vector.shape_cast %130 : vector<1x1x32xf32> to vector<1x32xf32>
    %cst_64 = arith.constant dense<0.000000e+00> : vector<16xf32>
    %132 = vector.multi_reduction <add>, %127, %cst_64 [1] : vector<16x32xf32> to vector<16xf32>
    %133 = vector.shape_cast %132 : vector<16xf32> to vector<16x1xf32>
    %cst_65 = arith.constant 3.200000e+01 : f32
    %134 = vector.broadcast %cst_65 : f32 to vector<16x1xf32>
    %135 = arith.divf %133, %134 : vector<16x1xf32>
    %136 = vector.broadcast %135 : vector<16x1xf32> to vector<16x32xf32>
    %137 = arith.subf %127, %136 : vector<16x32xf32>
    %138 = arith.mulf %137, %137 : vector<16x32xf32>
    %cst_66 = arith.constant dense<0.000000e+00> : vector<16xf32>
    %139 = vector.multi_reduction <add>, %138, %cst_66 [1] : vector<16x32xf32> to vector<16xf32>
    %140 = vector.shape_cast %139 : vector<16xf32> to vector<16x1xf32>
    %cst_67 = arith.constant 3.200000e+01 : f32
    %141 = vector.broadcast %cst_67 : f32 to vector<16x1xf32>
    %142 = arith.divf %140, %141 : vector<16x1xf32>
    %143 = vector.broadcast %135 : vector<16x1xf32> to vector<16x32xf32>
    %144 = arith.subf %127, %143 : vector<16x32xf32>
    %cst_68 = arith.constant 9.99999996E-13 : f32
    %145 = vector.broadcast %cst_68 : f32 to vector<16x1xf32>
    %146 = arith.addf %142, %145 : vector<16x1xf32>
    %147 = math.rsqrt %146 : vector<16x1xf32>
    %148 = vector.broadcast %147 : vector<16x1xf32> to vector<16x32xf32>
    %149 = arith.mulf %144, %148 : vector<16x32xf32>
    %150 = vector.broadcast %129 : vector<1x32xf32> to vector<16x32xf32>
    %151 = arith.mulf %149, %150 : vector<16x32xf32>
    %152 = vector.broadcast %131 : vector<1x32xf32> to vector<16x32xf32>
    %153 = arith.addf %151, %152 : vector<16x32xf32>
    %c0_69 = arith.constant 0 : index
    %c0_70 = arith.constant 0 : index
    %c0_71 = arith.constant 0 : index
    %154 = vector.load %arg18[%c0_69, %c0_70, %c0_71] : memref<2x32x64xf32, #tpu.memory_space<vmem>>, vector<1x32x64xf32>
    %155 = vector.shape_cast %154 : vector<1x32x64xf32> to vector<32x64xf32>
    %cst_72 = arith.constant dense<0.000000e+00> : vector<16x64xf32>
    %156 = tpu.matmul %153, %155, %cst_72 {dimension_numbers = #tpu.dot_dimension_numbers<[1], [0], [0], [1], [0, 0, 1, 1], [], []>} : vector<16x32xf32>, vector<32x64xf32>, vector<16x64xf32> -> vector<16x64xf32>
    %c0_73 = arith.constant 0 : index
    %c0_74 = arith.constant 0 : index
    %c0_75 = arith.constant 0 : index
    %157 = vector.load %arg19[%c0_73, %c0_74, %c0_75] : memref<2x1x64xf32, #tpu.memory_space<vmem>>, vector<1x1x64xf32>
    %158 = vector.shape_cast %157 : vector<1x1x64xf32> to vector<1x64xf32>
    %159 = vector.broadcast %158 : vector<1x64xf32> to vector<16x64xf32>
    %160 = arith.addf %156, %159 : vector<16x64xf32>
    %cst_76 = arith.constant 5.000000e-01 : f32
    %161 = vector.broadcast %cst_76 : f32 to vector<16x64xf32>
    %162 = arith.mulf %161, %160 : vector<16x64xf32>
    %cst_77 = arith.constant 4.471500e-02 : f32
    %163 = vector.broadcast %cst_77 : f32 to vector<16x64xf32>
    %164 = arith.mulf %163, %160 : vector<16x64xf32>
    %165 = arith.mulf %164, %160 : vector<16x64xf32>
    %166 = arith.mulf %165, %160 : vector<16x64xf32>
    %167 = arith.addf %160, %166 : vector<16x64xf32>
    %cst_78 = arith.constant 0.797884583 : f32
    %168 = vector.broadcast %cst_78 : f32 to vector<16x64xf32>
    %169 = arith.mulf %168, %167 : vector<16x64xf32>
    %170 = math.tanh %169 : vector<16x64xf32>
    %cst_79 = arith.constant 1.000000e+00 : f32
    %171 = vector.broadcast %cst_79 : f32 to vector<16x64xf32>
    %172 = arith.addf %171, %170 : vector<16x64xf32>
    %173 = arith.mulf %162, %172 : vector<16x64xf32>
    %c0_80 = arith.constant 0 : index
    %c0_81 = arith.constant 0 : index
    %c0_82 = arith.constant 0 : index
    %174 = vector.load %arg20[%c0_80, %c0_81, %c0_82] : memref<2x64x32xf32, #tpu.memory_space<vmem>>, vector<1x64x32xf32>
    %175 = vector.shape_cast %174 : vector<1x64x32xf32> to vector<64x32xf32>
    %cst_83 = arith.constant dense<0.000000e+00> : vector<16x32xf32>
    %176 = tpu.matmul %173, %175, %cst_83 {dimension_numbers = #tpu.dot_dimension_numbers<[1], [0], [0], [1], [0, 0, 1, 1], [], []>} : vector<16x64xf32>, vector<64x32xf32>, vector<16x32xf32> -> vector<16x32xf32>
    %c0_84 = arith.constant 0 : index
    %c0_85 = arith.constant 0 : index
    %c0_86 = arith.constant 0 : index
    %177 = vector.load %arg21[%c0_84, %c0_85, %c0_86] : memref<2x1x32xf32, #tpu.memory_space<vmem>>, vector<1x1x32xf32>
    %178 = vector.shape_cast %177 : vector<1x1x32xf32> to vector<1x32xf32>
    %179 = vector.broadcast %178 : vector<1x32xf32> to vector<16x32xf32>
    %180 = arith.addf %176, %179 : vector<16x32xf32>
    %181 = arith.addf %153, %180 : vector<16x32xf32>
    %c0_87 = arith.constant 0 : index
    %c0_88 = arith.constant 0 : index
    %c0_89 = arith.constant 0 : index
    %182 = vector.load %arg22[%c0_87, %c0_88, %c0_89] : memref<2x1x32xf32, #tpu.memory_space<vmem>>, vector<1x1x32xf32>
    %183 = vector.shape_cast %182 : vector<1x1x32xf32> to vector<1x32xf32>
    %c0_90 = arith.constant 0 : index
    %c0_91 = arith.constant 0 : index
    %c0_92 = arith.constant 0 : index
    %184 = vector.load %arg23[%c0_90, %c0_91, %c0_92] : memref<2x1x32xf32, #tpu.memory_space<vmem>>, vector<1x1x32xf32>
    %185 = vector.shape_cast %184 : vector<1x1x32xf32> to vector<1x32xf32>
    %cst_93 = arith.constant dense<0.000000e+00> : vector<16xf32>
    %186 = vector.multi_reduction <add>, %181, %cst_93 [1] : vector<16x32xf32> to vector<16xf32>
    %187 = vector.shape_cast %186 : vector<16xf32> to vector<16x1xf32>
    %cst_94 = arith.constant 3.200000e+01 : f32
    %188 = vector.broadcast %cst_94 : f32 to vector<16x1xf32>
    %189 = arith.divf %187, %188 : vector<16x1xf32>
    %190 = vector.broadcast %189 : vector<16x1xf32> to vector<16x32xf32>
    %191 = arith.subf %181, %190 : vector<16x32xf32>
    %192 = arith.mulf %191, %191 : vector<16x32xf32>
    %cst_95 = arith.constant dense<0.000000e+00> : vector<16xf32>
    %193 = vector.multi_reduction <add>, %192, %cst_95 [1] : vector<16x32xf32> to vector<16xf32>
    %194 = vector.shape_cast %193 : vector<16xf32> to vector<16x1xf32>
    %cst_96 = arith.constant 3.200000e+01 : f32
    %195 = vector.broadcast %cst_96 : f32 to vector<16x1xf32>
    %196 = arith.divf %194, %195 : vector<16x1xf32>
    %197 = vector.broadcast %189 : vector<16x1xf32> to vector<16x32xf32>
    %198 = arith.subf %181, %197 : vector<16x32xf32>
    %cst_97 = arith.constant 9.99999996E-13 : f32
    %199 = vector.broadcast %cst_97 : f32 to vector<16x1xf32>
    %200 = arith.addf %196, %199 : vector<16x1xf32>
    %201 = math.rsqrt %200 : vector<16x1xf32>
    %202 = vector.broadcast %201 : vector<16x1xf32> to vector<16x32xf32>
    %203 = arith.mulf %198, %202 : vector<16x32xf32>
    %204 = vector.broadcast %183 : vector<1x32xf32> to vector<16x32xf32>
    %205 = arith.mulf %203, %204 : vector<16x32xf32>
    %206 = vector.broadcast %185 : vector<1x32xf32> to vector<16x32xf32>
    %207 = arith.addf %205, %206 : vector<16x32xf32>
    %c1_98 = arith.constant 1 : index
    %c0_99 = arith.constant 0 : index
    %c0_100 = arith.constant 0 : index
    %208 = vector.load %arg8[%c1_98, %c0_99, %c0_100] : memref<2x32x32xf32, #tpu.memory_space<vmem>>, vector<1x32x32xf32>
    %209 = vector.shape_cast %208 : vector<1x32x32xf32> to vector<32x32xf32>
    %cst_101 = arith.constant dense<0.000000e+00> : vector<16x32xf32>
    %210 = tpu.matmul %207, %209, %cst_101 {dimension_numbers = #tpu.dot_dimension_numbers<[1], [0], [0], [1], [0, 0, 1, 1], [], []>} : vector<16x32xf32>, vector<32x32xf32>, vector<16x32xf32> -> vector<16x32xf32>
    %c1_102 = arith.constant 1 : index
    %c0_103 = arith.constant 0 : index
    %c0_104 = arith.constant 0 : index
    %211 = vector.load %arg9[%c1_102, %c0_103, %c0_104] : memref<2x1x32xf32, #tpu.memory_space<vmem>>, vector<1x1x32xf32>
    %212 = vector.shape_cast %211 : vector<1x1x32xf32> to vector<1x32xf32>
    %213 = vector.broadcast %212 : vector<1x32xf32> to vector<16x32xf32>
    %214 = arith.addf %210, %213 : vector<16x32xf32>
    %c1_105 = arith.constant 1 : index
    %c0_106 = arith.constant 0 : index
    %c0_107 = arith.constant 0 : index
    %215 = vector.load %arg10[%c1_105, %c0_106, %c0_107] : memref<2x32x32xf32, #tpu.memory_space<vmem>>, vector<1x32x32xf32>
    %216 = vector.shape_cast %215 : vector<1x32x32xf32> to vector<32x32xf32>
    %cst_108 = arith.constant dense<0.000000e+00> : vector<16x32xf32>
    %217 = tpu.matmul %207, %216, %cst_108 {dimension_numbers = #tpu.dot_dimension_numbers<[1], [0], [0], [1], [0, 0, 1, 1], [], []>} : vector<16x32xf32>, vector<32x32xf32>, vector<16x32xf32> -> vector<16x32xf32>
    %c1_109 = arith.constant 1 : index
    %c0_110 = arith.constant 0 : index
    %c0_111 = arith.constant 0 : index
    %218 = vector.load %arg11[%c1_109, %c0_110, %c0_111] : memref<2x1x32xf32, #tpu.memory_space<vmem>>, vector<1x1x32xf32>
    %219 = vector.shape_cast %218 : vector<1x1x32xf32> to vector<1x32xf32>
    %220 = vector.broadcast %219 : vector<1x32xf32> to vector<16x32xf32>
    %221 = arith.addf %217, %220 : vector<16x32xf32>
    %c1_112 = arith.constant 1 : index
    %c0_113 = arith.constant 0 : index
    %c0_114 = arith.constant 0 : index
    %222 = vector.load %arg12[%c1_112, %c0_113, %c0_114] : memref<2x32x32xf32, #tpu.memory_space<vmem>>, vector<1x32x32xf32>
    %223 = vector.shape_cast %222 : vector<1x32x32xf32> to vector<32x32xf32>
    %cst_115 = arith.constant dense<0.000000e+00> : vector<16x32xf32>
    %224 = tpu.matmul %207, %223, %cst_115 {dimension_numbers = #tpu.dot_dimension_numbers<[1], [0], [0], [1], [0, 0, 1, 1], [], []>} : vector<16x32xf32>, vector<32x32xf32>, vector<16x32xf32> -> vector<16x32xf32>
    %c1_116 = arith.constant 1 : index
    %c0_117 = arith.constant 0 : index
    %c0_118 = arith.constant 0 : index
    %225 = vector.load %arg13[%c1_116, %c0_117, %c0_118] : memref<2x1x32xf32, #tpu.memory_space<vmem>>, vector<1x1x32xf32>
    %226 = vector.shape_cast %225 : vector<1x1x32xf32> to vector<1x32xf32>
    %227 = vector.broadcast %226 : vector<1x32xf32> to vector<16x32xf32>
    %228 = arith.addf %224, %227 : vector<16x32xf32>
    %229 = vector.shape_cast %214 : vector<16x32xf32> to vector<2x8x32xf32>
    %230 = vector.extract_strided_slice %229 {offsets = [0, 0, 0], sizes = [2, 8, 8], strides = [1, 1, 1]} : vector<2x8x32xf32> to vector<2x8x8xf32>
    %231 = vector.extract_strided_slice %229 {offsets = [0, 0, 8], sizes = [2, 8, 8], strides = [1, 1, 1]} : vector<2x8x32xf32> to vector<2x8x8xf32>
    %232 = vector.extract_strided_slice %229 {offsets = [0, 0, 16], sizes = [2, 8, 8], strides = [1, 1, 1]} : vector<2x8x32xf32> to vector<2x8x8xf32>
    %233 = vector.extract_strided_slice %229 {offsets = [0, 0, 24], sizes = [2, 8, 8], strides = [1, 1, 1]} : vector<2x8x32xf32> to vector<2x8x8xf32>
    %234 = tpu.concatenate %230, %231, %232, %233 in 0 : vector<2x8x8xf32>, vector<2x8x8xf32>, vector<2x8x8xf32>, vector<2x8x8xf32> -> vector<8x8x8xf32>
    %235 = vector.shape_cast %221 : vector<16x32xf32> to vector<2x8x32xf32>
    %236 = vector.extract_strided_slice %235 {offsets = [0, 0, 0], sizes = [2, 8, 8], strides = [1, 1, 1]} : vector<2x8x32xf32> to vector<2x8x8xf32>
    %237 = vector.extract_strided_slice %235 {offsets = [0, 0, 8], sizes = [2, 8, 8], strides = [1, 1, 1]} : vector<2x8x32xf32> to vector<2x8x8xf32>
    %238 = vector.extract_strided_slice %235 {offsets = [0, 0, 16], sizes = [2, 8, 8], strides = [1, 1, 1]} : vector<2x8x32xf32> to vector<2x8x8xf32>
    %239 = vector.extract_strided_slice %235 {offsets = [0, 0, 24], sizes = [2, 8, 8], strides = [1, 1, 1]} : vector<2x8x32xf32> to vector<2x8x8xf32>
    %240 = tpu.concatenate %236, %237, %238, %239 in 0 : vector<2x8x8xf32>, vector<2x8x8xf32>, vector<2x8x8xf32>, vector<2x8x8xf32> -> vector<8x8x8xf32>
    %241 = vector.shape_cast %228 : vector<16x32xf32> to vector<2x8x32xf32>
    %242 = vector.extract_strided_slice %241 {offsets = [0, 0, 0], sizes = [2, 8, 8], strides = [1, 1, 1]} : vector<2x8x32xf32> to vector<2x8x8xf32>
    %243 = vector.extract_strided_slice %241 {offsets = [0, 0, 8], sizes = [2, 8, 8], strides = [1, 1, 1]} : vector<2x8x32xf32> to vector<2x8x8xf32>
    %244 = vector.extract_strided_slice %241 {offsets = [0, 0, 16], sizes = [2, 8, 8], strides = [1, 1, 1]} : vector<2x8x32xf32> to vector<2x8x8xf32>
    %245 = vector.extract_strided_slice %241 {offsets = [0, 0, 24], sizes = [2, 8, 8], strides = [1, 1, 1]} : vector<2x8x32xf32> to vector<2x8x8xf32>
    %246 = tpu.concatenate %242, %243, %244, %245 in 0 : vector<2x8x8xf32>, vector<2x8x8xf32>, vector<2x8x8xf32>, vector<2x8x8xf32> -> vector<8x8x8xf32>
    "tpu.trace_start"() <{level = 10 : i32, message = "nqd,nkd->nqk"}> : () -> ()
    %cst_119 = arith.constant dense<0.000000e+00> : vector<8x8x8xf32>
    %247 = tpu.matmul %234, %240, %cst_119 {dimension_numbers = #tpu.dot_dimension_numbers<[2], [2], [1], [1], [0, 0, 0, 1, 1, 1], [0], [0]>} : vector<8x8x8xf32>, vector<8x8x8xf32>, vector<8x8x8xf32> -> vector<8x8x8xf32>
    "tpu.trace_stop"() : () -> ()
    %cst_120 = arith.constant 0.353553385 : f32
    %248 = vector.broadcast %cst_120 : f32 to vector<8x8x8xf32>
    %249 = arith.mulf %247, %248 : vector<8x8x8xf32>
    %250 = vector.broadcast %58 : vector<8x1x8xf32> to vector<8x8x8xf32>
    %251 = arith.addf %249, %250 : vector<8x8x8xf32>
    %cst_121 = arith.constant dense<0xFF800000> : vector<8x8xf32>
    %252 = vector.multi_reduction <maximumf>, %251, %cst_121 [2] : vector<8x8x8xf32> to vector<8x8xf32>
    %253 = vector.shape_cast %252 : vector<8x8xf32> to vector<8x8x1xf32>
    %254 = vector.broadcast %253 : vector<8x8x1xf32> to vector<8x8x8xf32>
    %255 = arith.subf %251, %254 : vector<8x8x8xf32>
    %256 = math.exp %255 : vector<8x8x8xf32>
    %cst_122 = arith.constant dense<0.000000e+00> : vector<8x8xf32>
    %257 = vector.multi_reduction <add>, %256, %cst_122 [2] : vector<8x8x8xf32> to vector<8x8xf32>
    %258 = vector.shape_cast %257 : vector<8x8xf32> to vector<8x8x1xf32>
    %259 = tpu.reciprocal %258 {approx = true} : vector<8x8x1xf32> -> vector<8x8x1xf32>
    %260 = vector.broadcast %259 : vector<8x8x1xf32> to vector<8x8x8xf32>
    %261 = arith.mulf %256, %260 : vector<8x8x8xf32>
    "tpu.trace_start"() <{level = 10 : i32, message = "nqk,nkd->nqd"}> : () -> ()
    %cst_123 = arith.constant dense<0.000000e+00> : vector<8x8x8xf32>
    %262 = tpu.matmul %261, %246, %cst_123 {dimension_numbers = #tpu.dot_dimension_numbers<[2], [1], [1], [2], [0, 0, 0, 1, 1, 2], [0], [0]>} : vector<8x8x8xf32>, vector<8x8x8xf32>, vector<8x8x8xf32> -> vector<8x8x8xf32>
    "tpu.trace_stop"() : () -> ()
    %263 = vector.extract_strided_slice %262 {offsets = [0, 0, 0], sizes = [2, 8, 8], strides = [1, 1, 1]} : vector<8x8x8xf32> to vector<2x8x8xf32>
    %264 = vector.extract_strided_slice %262 {offsets = [2, 0, 0], sizes = [2, 8, 8], strides = [1, 1, 1]} : vector<8x8x8xf32> to vector<2x8x8xf32>
    %265 = vector.extract_strided_slice %262 {offsets = [4, 0, 0], sizes = [2, 8, 8], strides = [1, 1, 1]} : vector<8x8x8xf32> to vector<2x8x8xf32>
    %266 = vector.extract_strided_slice %262 {offsets = [6, 0, 0], sizes = [2, 8, 8], strides = [1, 1, 1]} : vector<8x8x8xf32> to vector<2x8x8xf32>
    %267 = tpu.concatenate %263, %264, %265, %266 in 2 : vector<2x8x8xf32>, vector<2x8x8xf32>, vector<2x8x8xf32>, vector<2x8x8xf32> -> vector<2x8x32xf32>
    %268 = vector.shape_cast %267 : vector<2x8x32xf32> to vector<16x32xf32>
    %c1_124 = arith.constant 1 : index
    %c0_125 = arith.constant 0 : index
    %c0_126 = arith.constant 0 : index
    %269 = vector.load %arg14[%c1_124, %c0_125, %c0_126] : memref<2x32x32xf32, #tpu.memory_space<vmem>>, vector<1x32x32xf32>
    %270 = vector.shape_cast %269 : vector<1x32x32xf32> to vector<32x32xf32>
    %cst_127 = arith.constant dense<0.000000e+00> : vector<16x32xf32>
    %271 = tpu.matmul %268, %270, %cst_127 {dimension_numbers = #tpu.dot_dimension_numbers<[1], [0], [0], [1], [0, 0, 1, 1], [], []>} : vector<16x32xf32>, vector<32x32xf32>, vector<16x32xf32> -> vector<16x32xf32>
    %c1_128 = arith.constant 1 : index
    %c0_129 = arith.constant 0 : index
    %c0_130 = arith.constant 0 : index
    %272 = vector.load %arg15[%c1_128, %c0_129, %c0_130] : memref<2x1x32xf32, #tpu.memory_space<vmem>>, vector<1x1x32xf32>
    %273 = vector.shape_cast %272 : vector<1x1x32xf32> to vector<1x32xf32>
    %274 = vector.broadcast %273 : vector<1x32xf32> to vector<16x32xf32>
    %275 = arith.addf %271, %274 : vector<16x32xf32>
    %276 = arith.addf %207, %275 : vector<16x32xf32>
    %c1_131 = arith.constant 1 : index
    %c0_132 = arith.constant 0 : index
    %c0_133 = arith.constant 0 : index
    %277 = vector.load %arg16[%c1_131, %c0_132, %c0_133] : memref<2x1x32xf32, #tpu.memory_space<vmem>>, vector<1x1x32xf32>
    %278 = vector.shape_cast %277 : vector<1x1x32xf32> to vector<1x32xf32>
    %c1_134 = arith.constant 1 : index
    %c0_135 = arith.constant 0 : index
    %c0_136 = arith.constant 0 : index
    %279 = vector.load %arg17[%c1_134, %c0_135, %c0_136] : memref<2x1x32xf32, #tpu.memory_space<vmem>>, vector<1x1x32xf32>
    %280 = vector.shape_cast %279 : vector<1x1x32xf32> to vector<1x32xf32>
    %cst_137 = arith.constant dense<0.000000e+00> : vector<16xf32>
    %281 = vector.multi_reduction <add>, %276, %cst_137 [1] : vector<16x32xf32> to vector<16xf32>
    %282 = vector.shape_cast %281 : vector<16xf32> to vector<16x1xf32>
    %cst_138 = arith.constant 3.200000e+01 : f32
    %283 = vector.broadcast %cst_138 : f32 to vector<16x1xf32>
    %284 = arith.divf %282, %283 : vector<16x1xf32>
    %285 = vector.broadcast %284 : vector<16x1xf32> to vector<16x32xf32>
    %286 = arith.subf %276, %285 : vector<16x32xf32>
    %287 = arith.mulf %286, %286 : vector<16x32xf32>
    %cst_139 = arith.constant dense<0.000000e+00> : vector<16xf32>
    %288 = vector.multi_reduction <add>, %287, %cst_139 [1] : vector<16x32xf32> to vector<16xf32>
    %289 = vector.shape_cast %288 : vector<16xf32> to vector<16x1xf32>
    %cst_140 = arith.constant 3.200000e+01 : f32
    %290 = vector.broadcast %cst_140 : f32 to vector<16x1xf32>
    %291 = arith.divf %289, %290 : vector<16x1xf32>
    %292 = vector.broadcast %284 : vector<16x1xf32> to vector<16x32xf32>
    %293 = arith.subf %276, %292 : vector<16x32xf32>
    %cst_141 = arith.constant 9.99999996E-13 : f32
    %294 = vector.broadcast %cst_141 : f32 to vector<16x1xf32>
    %295 = arith.addf %291, %294 : vector<16x1xf32>
    %296 = math.rsqrt %295 : vector<16x1xf32>
    %297 = vector.broadcast %296 : vector<16x1xf32> to vector<16x32xf32>
    %298 = arith.mulf %293, %297 : vector<16x32xf32>
    %299 = vector.broadcast %278 : vector<1x32xf32> to vector<16x32xf32>
    %300 = arith.mulf %298, %299 : vector<16x32xf32>
    %301 = vector.broadcast %280 : vector<1x32xf32> to vector<16x32xf32>
    %302 = arith.addf %300, %301 : vector<16x32xf32>
    %c1_142 = arith.constant 1 : index
    %c0_143 = arith.constant 0 : index
    %c0_144 = arith.constant 0 : index
    %303 = vector.load %arg18[%c1_142, %c0_143, %c0_144] : memref<2x32x64xf32, #tpu.memory_space<vmem>>, vector<1x32x64xf32>
    %304 = vector.shape_cast %303 : vector<1x32x64xf32> to vector<32x64xf32>
    %cst_145 = arith.constant dense<0.000000e+00> : vector<16x64xf32>
    %305 = tpu.matmul %302, %304, %cst_145 {dimension_numbers = #tpu.dot_dimension_numbers<[1], [0], [0], [1], [0, 0, 1, 1], [], []>} : vector<16x32xf32>, vector<32x64xf32>, vector<16x64xf32> -> vector<16x64xf32>
    %c1_146 = arith.constant 1 : index
    %c0_147 = arith.constant 0 : index
    %c0_148 = arith.constant 0 : index
    %306 = vector.load %arg19[%c1_146, %c0_147, %c0_148] : memref<2x1x64xf32, #tpu.memory_space<vmem>>, vector<1x1x64xf32>
    %307 = vector.shape_cast %306 : vector<1x1x64xf32> to vector<1x64xf32>
    %308 = vector.broadcast %307 : vector<1x64xf32> to vector<16x64xf32>
    %309 = arith.addf %305, %308 : vector<16x64xf32>
    %cst_149 = arith.constant 5.000000e-01 : f32
    %310 = vector.broadcast %cst_149 : f32 to vector<16x64xf32>
    %311 = arith.mulf %310, %309 : vector<16x64xf32>
    %cst_150 = arith.constant 4.471500e-02 : f32
    %312 = vector.broadcast %cst_150 : f32 to vector<16x64xf32>
    %313 = arith.mulf %312, %309 : vector<16x64xf32>
    %314 = arith.mulf %313, %309 : vector<16x64xf32>
    %315 = arith.mulf %314, %309 : vector<16x64xf32>
    %316 = arith.addf %309, %315 : vector<16x64xf32>
    %cst_151 = arith.constant 0.797884583 : f32
    %317 = vector.broadcast %cst_151 : f32 to vector<16x64xf32>
    %318 = arith.mulf %317, %316 : vector<16x64xf32>
    %319 = math.tanh %318 : vector<16x64xf32>
    %cst_152 = arith.constant 1.000000e+00 : f32
    %320 = vector.broadcast %cst_152 : f32 to vector<16x64xf32>
    %321 = arith.addf %320, %319 : vector<16x64xf32>
    %322 = arith.mulf %311, %321 : vector<16x64xf32>
    %c1_153 = arith.constant 1 : index
    %c0_154 = arith.constant 0 : index
    %c0_155 = arith.constant 0 : index
    %323 = vector.load %arg20[%c1_153, %c0_154, %c0_155] : memref<2x64x32xf32, #tpu.memory_space<vmem>>, vector<1x64x32xf32>
    %324 = vector.shape_cast %323 : vector<1x64x32xf32> to vector<64x32xf32>
    %cst_156 = arith.constant dense<0.000000e+00> : vector<16x32xf32>
    %325 = tpu.matmul %322, %324, %cst_156 {dimension_numbers = #tpu.dot_dimension_numbers<[1], [0], [0], [1], [0, 0, 1, 1], [], []>} : vector<16x64xf32>, vector<64x32xf32>, vector<16x32xf32> -> vector<16x32xf32>
    %c1_157 = arith.constant 1 : index
    %c0_158 = arith.constant 0 : index
    %c0_159 = arith.constant 0 : index
    %326 = vector.load %arg21[%c1_157, %c0_158, %c0_159] : memref<2x1x32xf32, #tpu.memory_space<vmem>>, vector<1x1x32xf32>
    %327 = vector.shape_cast %326 : vector<1x1x32xf32> to vector<1x32xf32>
    %328 = vector.broadcast %327 : vector<1x32xf32> to vector<16x32xf32>
    %329 = arith.addf %325, %328 : vector<16x32xf32>
    %330 = arith.addf %302, %329 : vector<16x32xf32>
    %c1_160 = arith.constant 1 : index
    %c0_161 = arith.constant 0 : index
    %c0_162 = arith.constant 0 : index
    %331 = vector.load %arg22[%c1_160, %c0_161, %c0_162] : memref<2x1x32xf32, #tpu.memory_space<vmem>>, vector<1x1x32xf32>
    %332 = vector.shape_cast %331 : vector<1x1x32xf32> to vector<1x32xf32>
    %c1_163 = arith.constant 1 : index
    %c0_164 = arith.constant 0 : index
    %c0_165 = arith.constant 0 : index
    %333 = vector.load %arg23[%c1_163, %c0_164, %c0_165] : memref<2x1x32xf32, #tpu.memory_space<vmem>>, vector<1x1x32xf32>
    %334 = vector.shape_cast %333 : vector<1x1x32xf32> to vector<1x32xf32>
    %cst_166 = arith.constant dense<0.000000e+00> : vector<16xf32>
    %335 = vector.multi_reduction <add>, %330, %cst_166 [1] : vector<16x32xf32> to vector<16xf32>
    %336 = vector.shape_cast %335 : vector<16xf32> to vector<16x1xf32>
    %cst_167 = arith.constant 3.200000e+01 : f32
    %337 = vector.broadcast %cst_167 : f32 to vector<16x1xf32>
    %338 = arith.divf %336, %337 : vector<16x1xf32>
    %339 = vector.broadcast %338 : vector<16x1xf32> to vector<16x32xf32>
    %340 = arith.subf %330, %339 : vector<16x32xf32>
    %341 = arith.mulf %340, %340 : vector<16x32xf32>
    %cst_168 = arith.constant dense<0.000000e+00> : vector<16xf32>
    %342 = vector.multi_reduction <add>, %341, %cst_168 [1] : vector<16x32xf32> to vector<16xf32>
    %343 = vector.shape_cast %342 : vector<16xf32> to vector<16x1xf32>
    %cst_169 = arith.constant 3.200000e+01 : f32
    %344 = vector.broadcast %cst_169 : f32 to vector<16x1xf32>
    %345 = arith.divf %343, %344 : vector<16x1xf32>
    %346 = vector.broadcast %338 : vector<16x1xf32> to vector<16x32xf32>
    %347 = arith.subf %330, %346 : vector<16x32xf32>
    %cst_170 = arith.constant 9.99999996E-13 : f32
    %348 = vector.broadcast %cst_170 : f32 to vector<16x1xf32>
    %349 = arith.addf %345, %348 : vector<16x1xf32>
    %350 = math.rsqrt %349 : vector<16x1xf32>
    %351 = vector.broadcast %350 : vector<16x1xf32> to vector<16x32xf32>
    %352 = arith.mulf %347, %351 : vector<16x32xf32>
    %353 = vector.broadcast %332 : vector<1x32xf32> to vector<16x32xf32>
    %354 = arith.mulf %352, %353 : vector<16x32xf32>
    %355 = vector.broadcast %334 : vector<1x32xf32> to vector<16x32xf32>
    %356 = arith.addf %354, %355 : vector<16x32xf32>
    %357 = vector.shape_cast %356 : vector<16x32xf32> to vector<2x8x32xf32>
    %358 = vector.extract_strided_slice %357 {offsets = [0, 0, 0], sizes = [2, 1, 32], strides = [1, 1, 1]} : vector<2x8x32xf32> to vector<2x1x32xf32>
    %359 = vector.shape_cast %358 : vector<2x1x32xf32> to vector<2x32xf32>
    %c0_171 = arith.constant 0 : index
    %c0_172 = arith.constant 0 : index
    %360 = vector.load %arg24[%c0_171, %c0_172] : memref<2x32xf32, #tpu.memory_space<vmem>>, vector<2x32xf32>
    tpu.vector_store %arg24[%c0_171, %c0_172], %359 {strides = array<i32>} : memref<2x32xf32, #tpu.memory_space<vmem>>, vector<2x32xf32>,
    return
  }
}

</mosaic_0001>

<llo_original>
// kernel: bert_encoder.1
$region0: #{bert_encoder.1}
  #allocation0 [shape = 'u32[]', space=smem, size = 0x4, offset = 0x4, fixed_abs, tag = 'smem constant byte address 0x4 - core index']
  #allocation1 [shape = 'u32[144,128]{1,0:T(1,128)}', space=vmem, size = 0x12000, scoped, tag = 'internal scratch']
  %s0 = inlined_call_operand.vmem [shape: s32[16,1], index: 0, kind: input, shape index: {}]
  %s1 = inlined_call_operand.vmem [shape: s32[16,1], index: 1, kind: input, shape index: {}]
  %s2 = inlined_call_operand.vmem [shape: s32[2,1,8], index: 2, kind: input, shape index: {}]
  %s3 = inlined_call_operand.vmem [shape: f32[128,32], index: 3, kind: input, shape index: {}]
  %s4 = inlined_call_operand.vmem [shape: f32[16,32], index: 4, kind: input, shape index: {}]
  %s5 = inlined_call_operand.vmem [shape: f32[2,32], index: 5, kind: input, shape index: {}]
  %s6 = inlined_call_operand.vmem [shape: f32[1,32], index: 6, kind: input, shape index: {}]
  %s7 = inlined_call_operand.hbm [shape: f32[1,32], index: 7, kind: input, shape index: {}]
  %s8 = inlined_call_operand.vmem [shape: f32[2,32,32], index: 8, kind: input, shape index: {}]
  %s9 = inlined_call_operand.vmem [shape: f32[2,1,32], index: 9, kind: input, shape index: {}]
  %s10 = inlined_call_operand.vmem [shape: f32[2,32,32], index: 10, kind: input, shape index: {}]
  %s11 = inlined_call_operand.vmem [shape: f32[2,1,32], index: 11, kind: input, shape index: {}]
  %s12 = inlined_call_operand.vmem [shape: f32[2,32,32], index: 12, kind: input, shape index: {}]
  %s13 = inlined_call_operand.vmem [shape: f32[2,1,32], index: 13, kind: input, shape index: {}]
  %s14 = inlined_call_operand.vmem [shape: f32[2,32,32], index: 14, kind: input, shape index: {}]
  %s15 = inlined_call_operand.vmem [shape: f32[2,1,32], index: 15, kind: input, shape index: {}]
  %s16 = inlined_call_operand.vmem [shape: f32[2,1,32], index: 16, kind: input, shape index: {}]
  %s17 = inlined_call_operand.vmem [shape: f32[2,1,32], index: 17, kind: input, shape index: {}]
  %s18 = inlined_call_operand.vmem [shape: f32[2,32,64], index: 18, kind: input, shape index: {}]
  %s19 = inlined_call_operand.vmem [shape: f32[2,1,64], index: 19, kind: input, shape index: {}]
  %s20 = inlined_call_operand.vmem [shape: f32[2,64,32], index: 20, kind: input, shape index: {}]
  %s21 = inlined_call_operand.vmem [shape: f32[2,1,32], index: 21, kind: input, shape index: {}]
  %s22 = inlined_call_operand.vmem [shape: f32[2,1,32], index: 22, kind: input, shape index: {}]
  %s23 = inlined_call_operand.vmem [shape: f32[2,1,32], index: 23, kind: input, shape index: {}]
  %s24 = inlined_call_operand.hbm [shape: f32[2,32], index: 24, kind: output, shape index: {}]
  %s25 = sld [smem:[#allocation0]]
  $region110: #{bert_encoder.1} parent=0
    _
  %s27 = ssub.s32 1, %s25
  %s28 = scalar_select 0, %s27, %s25
  $region1: #{bert_encoder.1} parent=0
    #allocation2 [shape = 'u8[512]{0}', space=vmem, size = 0x400, scoped, tag = 'input window, operand 7, single buffered']
    #allocation3 [shape = 's32[1]{0}', space=sflag, size = 0x4, scoped, tag = 'scoped memory for bert_encoder.1']
    #allocation4 [shape = 's32[1]{0}', space=sflag, size = 0x4, scoped, tag = 'scoped memory for bert_encoder.1']
    #allocation5 [shape = 'u8[1024]{0}', space=vmem, size = 0x400, scoped, tag = 'output window, operand 0, single buffered']
    %29 = vsyncpa [#allocation3], 0
    %30 = vsyncpa [#allocation4], 0
    // Predicated region
    $region2: #{bert_encoder.1} parent=1 // pred_check
      _
    $region3: #{bert_encoder.1} parent=1 // pred_check_branch
      %32 = sbr.rel (0) target = $region5
    $region4: #{bert_encoder.1} parent=1 // pred_region
      _
    $region5: #{bert_encoder.1} parent=1 // pred_fallthru
      _
    // Predicated region
    $region6: #{bert_encoder.1} parent=1 // pred_check
      _
    $region7: #{bert_encoder.1} parent=1 // pred_check_branch
      %34 = sbr.rel (0) target = $region9
    $region8: #{bert_encoder.1} parent=1 // pred_region
      _
    $region9: #{bert_encoder.1} parent=1 // pred_fallthru
      _
    // Predicated region
    $region10: #{bert_encoder.1} parent=1 // pred_check
      _
    $region11: #{bert_encoder.1} parent=1 // pred_check_branch
      %36 = sbr.rel (0) target = $region13
    $region12: #{bert_encoder.1} parent=1 // pred_region
      _
    $region13: #{bert_encoder.1} parent=1 // pred_fallthru
      _
    // Predicated region
    $region14: #{bert_encoder.1} parent=1 // pred_check
      _
    $region15: #{bert_encoder.1} parent=1 // pred_check_branch
      %38 = sbr.rel (0) target = $region17
    $region16: #{bert_encoder.1} parent=1 // pred_region
      _
    $region17: #{bert_encoder.1} parent=1 // pred_fallthru
      _
    // Predicated region
    $region18: #{bert_encoder.1} parent=1 // pred_check
      _
    $region19: #{bert_encoder.1} parent=1 // pred_check_branch
      %40 = sbr.rel (0) target = $region21
    $region20: #{bert_encoder.1} parent=1 // pred_region
      _
    $region21: #{bert_encoder.1} parent=1 // pred_fallthru
      _
    // Predicated region
    $region22: #{bert_encoder.1} parent=1 // pred_check
      _
    $region23: #{bert_encoder.1} parent=1 // pred_check_branch
      %42 = sbr.rel (0) target = $region25
    $region24: #{bert_encoder.1} parent=1 // pred_region
      _
    $region25: #{bert_encoder.1} parent=1 // pred_fallthru
      _
    // Predicated region
    $region26: #{bert_encoder.1} parent=1 // pred_check
      _
    $region27: #{bert_encoder.1} parent=1 // pred_check_branch
      %44 = sbr.rel (0) target = $region29
    $region28: #{bert_encoder.1} parent=1 // pred_region
      _
    $region29: #{bert_encoder.1} parent=1 // pred_fallthru
      _
    // Predicated region
    $region30: #{bert_encoder.1} parent=1 // pred_check
      _
    $region31: #{bert_encoder.1} parent=1 // pred_check_branch
      %46 = sbr.rel (0) target = $region33
    $region32: #{bert_encoder.1} parent=1 // pred_region
      %s48 = ssub.s32 16, 16
      %49 = vsyncadd [#allocation3], %s48
      %s51 = sshll.u32 [#allocation2], 4
      %s52 = int_to_ptr.vmem [resolvable:$true] %s51
      %54 = dma.hbm_to_vmem [thread:$0]  %s7, 16, %s52, [#allocation3]
    $region33: #{bert_encoder.1} parent=1 // pred_fallthru
      _
    // Predicated region
    $region34: #{bert_encoder.1} parent=1 // pred_check
      _
    $region35: #{bert_encoder.1} parent=1 // pred_check_branch
      %56 = sbr.rel (0) target = $region37
    $region36: #{bert_encoder.1} parent=1 // pred_region
      _
    $region37: #{bert_encoder.1} parent=1 // pred_fallthru
      _
    // Predicated region
    $region38: #{bert_encoder.1} parent=1 // pred_check
      _
    $region39: #{bert_encoder.1} parent=1 // pred_check_branch
      %58 = sbr.rel (0) target = $region41
    $region40: #{bert_encoder.1} parent=1 // pred_region
      _
    $region41: #{bert_encoder.1} parent=1 // pred_fallthru
      _
    // Predicated region
    $region42: #{bert_encoder.1} parent=1 // pred_check
      _
    $region43: #{bert_encoder.1} parent=1 // pred_check_branch
      %60 = sbr.rel (0) target = $region45
    $region44: #{bert_encoder.1} parent=1 // pred_region
      _
    $region45: #{bert_encoder.1} parent=1 // pred_fallthru
      _
    // Predicated region
    $region46: #{bert_encoder.1} parent=1 // pred_check
      _
    $region47: #{bert_encoder.1} parent=1 // pred_check_branch
      %62 = sbr.rel (0) target = $region49
    $region48: #{bert_encoder.1} parent=1 // pred_region
      _
    $region49: #{bert_encoder.1} parent=1 // pred_fallthru
      _
    // Predicated region
    $region50: #{bert_encoder.1} parent=1 // pred_check
      _
    $region51: #{bert_encoder.1} parent=1 // pred_check_branch
      %64 = sbr.rel (0) target = $region53
    $region52: #{bert_encoder.1} parent=1 // pred_region
      _
    $region53: #{bert_encoder.1} parent=1 // pred_fallthru
      _
    // Predicated region
    $region54: #{bert_encoder.1} parent=1 // pred_check
      _
    $region55: #{bert_encoder.1} parent=1 // pred_check_branch
      %66 = sbr.rel (0) target = $region57
    $region56: #{bert_encoder.1} parent=1 // pred_region
      _
    $region57: #{bert_encoder.1} parent=1 // pred_fallthru
      _
    // Predicated region
    $region58: #{bert_encoder.1} parent=1 // pred_check
      _
    $region59: #{bert_encoder.1} parent=1 // pred_check_branch
      %68 = sbr.rel (0) target = $region61
    $region60: #{bert_encoder.1} parent=1 // pred_region
      _
    $region61: #{bert_encoder.1} parent=1 // pred_fallthru
      _
    // Predicated region
    $region62: #{bert_encoder.1} parent=1 // pred_check
      _
    $region63: #{bert_encoder.1} parent=1 // pred_check_branch
      %70 = sbr.rel (0) target = $region65
    $region64: #{bert_encoder.1} parent=1 // pred_region
      _
    $region65: #{bert_encoder.1} parent=1 // pred_fallthru
      _
    // Predicated region
    $region66: #{bert_encoder.1} parent=1 // pred_check
      _
    $region67: #{bert_encoder.1} parent=1 // pred_check_branch
      %72 = sbr.rel (0) target = $region69
    $region68: #{bert_encoder.1} parent=1 // pred_region
      _
    $region69: #{bert_encoder.1} parent=1 // pred_fallthru
      _
    // Predicated region
    $region70: #{bert_encoder.1} parent=1 // pred_check
      _
    $region71: #{bert_encoder.1} parent=1 // pred_check_branch
      %74 = sbr.rel (0) target = $region73
    $region72: #{bert_encoder.1} parent=1 // pred_region
      _
    $region73: #{bert_encoder.1} parent=1 // pred_fallthru
      _
    // Predicated region
    $region74: #{bert_encoder.1} parent=1 // pred_check
      _
    $region75: #{bert_encoder.1} parent=1 // pred_check_branch
      %76 = sbr.rel (0) target = $region77
    $region76: #{bert_encoder.1} parent=1 // pred_region
      _
    $region77: #{bert_encoder.1} parent=1 // pred_fallthru
      _
    // Predicated region
    $region78: #{bert_encoder.1} parent=1 // pred_check
      _
    $region79: #{bert_encoder.1} parent=1 // pred_check_branch
      %78 = sbr.rel (0) target = $region81
    $region80: #{bert_encoder.1} parent=1 // pred_region
      _
    $region81: #{bert_encoder.1} parent=1 // pred_fallthru
      _
    // Predicated region
    $region82: #{bert_encoder.1} parent=1 // pred_check
      _
    $region83: #{bert_encoder.1} parent=1 // pred_check_branch
      %80 = sbr.rel (0) target = $region85
    $region84: #{bert_encoder.1} parent=1 // pred_region
      _
    $region85: #{bert_encoder.1} parent=1 // pred_fallthru
      _
    // Predicated region
    $region86: #{bert_encoder.1} parent=1 // pred_check
      _
    $region87: #{bert_encoder.1} parent=1 // pred_check_branch
      %82 = sbr.rel (0) target = $region89
    $region88: #{bert_encoder.1} parent=1 // pred_region
      _
    $region89: #{bert_encoder.1} parent=1 // pred_fallthru
      _
    // Predicated region
    $region90: #{bert_encoder.1} parent=1 // pred_check
      _
    $region91: #{bert_encoder.1} parent=1 // pred_check_branch
      %84 = sbr.rel (0) target = $region93
    $region92: #{bert_encoder.1} parent=1 // pred_region
      _
    $region93: #{bert_encoder.1} parent=1 // pred_fallthru
      _
    // Predicated region
    $region94: #{bert_encoder.1} parent=1 // pred_check
      _
    $region95: #{bert_encoder.1} parent=1 // pred_check_branch
      %86 = sbr.rel (0) target = $region97
    $region96: #{bert_encoder.1} parent=1 // pred_region
      _
    $region97: #{bert_encoder.1} parent=1 // pred_fallthru
      _
    // Predicated region
    $region98: #{bert_encoder.1} parent=1 // pred_check
      _
    $region99: #{bert_encoder.1} parent=1 // pred_check_branch
      %88 = sbr.rel (0) target = $region101
    $region100: #{bert_encoder.1} parent=1 // pred_region
      %89 = dma.done [#allocation3], 16
    $region101: #{bert_encoder.1} parent=1 // pred_fallthru
      _
    %v90 = vld [vmem:[%s0] sm:$0xff]
    %v91 = vld [vmem:[%s0 + $0x8] sm:$0xff]
    %v92 = vlaneseq
    %v93 = vand.u32 %v92, 127
    %94 = vset.pattern.permute.xlu0 0
    %95 = vperm.xlu0 %94, %v90
    %v96 = vpop.permute.xlu0 %95
    %97 = vset.pattern.permute.xlu0 0
    %98 = vperm.xlu0 %97, %v91
    %v99 = vpop.permute.xlu0 %98
    %vm100 = vcmp.eq.s32.totalorder %v93, %v96
    %vm101 = vcmp.eq.s32.totalorder %v93, %v99
    %v102 = vsel %vm100, 1, 0
    %v103 = vsel %vm101, 1, 0
    %v104 = vcvt.s32.f32 %v102
    %v105 = vcvt.s32.f32 %v103
    %v106 = vld [vmem:[%s3] sm:$0xff]
    %v107 = vld [vmem:[%s3 + $0x8] sm:$0xff]
    %v108 = vld [vmem:[%s3 + $0x10] sm:$0xff]
    %v109 = vld [vmem:[%s3 + $0x18] sm:$0xff]
    %v110 = vld [vmem:[%s3 + $0x20] sm:$0xff]
    %v111 = vld [vmem:[%s3 + $0x28] sm:$0xff]
    %v112 = vld [vmem:[%s3 + $0x30] sm:$0xff]
    %v113 = vld [vmem:[%s3 + $0x38] sm:$0xff]
    %v114 = vld [vmem:[%s3 + $0x40] sm:$0xff]
    %v115 = vld [vmem:[%s3 + $0x48] sm:$0xff]
    %v116 = vld [vmem:[%s3 + $0x50] sm:$0xff]
    %v117 = vld [vmem:[%s3 + $0x58] sm:$0xff]
    %v118 = vld [vmem:[%s3 + $0x60] sm:$0xff]
    %v119 = vld [vmem:[%s3 + $0x68] sm:$0xff]
    %v120 = vld [vmem:[%s3 + $0x70] sm:$0xff]
    %v121 = vld [vmem:[%s3 + $0x78] sm:$0xff]
    %v122 = vld [vmem:[%s1] sm:$0xff]
    %v123 = vld [vmem:[%s1 + $0x8] sm:$0xff]
    %v124 = vcvt.s32.f32 %v122
    %v125 = vcvt.s32.f32 %v123
    %v126 = vsub.f32 1.0, %v124
    %v127 = vsub.f32 1.0, %v125
    %v128 = vld [vmem:[%s5] sm:$0x1]
    %130 = vset.pattern.permute.xlu0 0
    %131 = vperm.xlu0 %130, %v126
    %v132 = vpop.permute.xlu0 %131
    %135 = vset.pattern.permute.xlu0 0
    %136 = vperm.xlu0 %135, %v127
    %v137 = vpop.permute.xlu0 %136
    %v139 = vlaneseq
    %v140 = vshrl.u32 %v139, 7
    %v141 = vsub.s32 0, %v140
    %v142 = vrot.slane %v128, %v141
    %v143 = vmul.f32 %v132, %v142
    %v144 = vmul.f32 %v137, %v142
    %145 = vmatprep.subr.mxu0 0.0
    %146 = vmatpush1.msra.mxu0 %v106
    %147 = vmatprep.subr.mxu0 0.0
    %148 = vmatpush1.msra.mxu0 %v107
    %149 = vmatprep.subr.mxu0 0.0
    %150 = vmatpush1.msra.mxu0 %v108
    %151 = vmatprep.subr.mxu0 0.0
    %152 = vmatpush1.msra.mxu0 %v109
    %153 = vmatprep.subr.mxu0 0.0
    %154 = vmatpush1.msra.mxu0 %v110
    %155 = vmatprep.subr.mxu0 0.0
    %156 = vmatpush1.msra.mxu0 %v111
    %157 = vmatprep.subr.mxu0 0.0
    %158 = vmatpush1.msra.mxu0 %v112
    %159 = vmatprep.subr.mxu0 0.0
    %160 = vmatpush1.msra.mxu0 %v113
    %161 = vmatprep.subr.mxu0 0.0
    %162 = vmatpush1.msra.mxu0 %v114
    %163 = vmatprep.subr.mxu0 0.0
    %164 = vmatpush1.msra.mxu0 %v115
    %165 = vmatprep.subr.mxu0 0.0
    %166 = vmatpush1.msra.mxu0 %v116
    %167 = vmatprep.subr.mxu0 0.0
    %168 = vmatpush1.msra.mxu0 %v117
    %169 = vmatprep.subr.mxu0 0.0
    %170 = vmatpush1.msra.mxu0 %v118
    %171 = vmatprep.subr.mxu0 0.0
    %172 = vmatpush1.msra.mxu0 %v119
    %173 = vmatprep.subr.mxu0 0.0
    %174 = vmatpush1.msra.mxu0 %v120
    %175 = vmatprep.subr.mxu0 0.0
    %176 = vmatpush1.msra.mxu0 %v121
    %177 = vmatprep.subr.mxu0 0.0
    %178 = vmatpush1.msra.mxu0 0.0
    %179 = vmatprep.subr.mxu0 0.0
    %180 = vmatpush1.msra.mxu0 0.0
    %181 = vmatprep.subr.mxu0 0.0
    %182 = vmatpush1.msra.mxu0 0.0
    %183 = vmatprep.subr.mxu0 0.0
    %184 = vmatpush1.msra.mxu0 0.0
    %185 = vmatprep.subr.mxu0 0.0
    %186 = vmatpush1.msra.mxu0 0.0
    %187 = vmatprep.subr.mxu0 0.0
    %188 = vmatpush1.msra.mxu0 0.0
    %189 = vmatprep.subr.mxu0 0.0
    %190 = vmatpush1.msra.mxu0 0.0
    %191 = vmatprep.subr.mxu0 0.0
    %192 = vmatpush1.msra.mxu0 0.0
    %193 = vmatprep.subr.mxu0 0.0
    %194 = vmatpush1.msra.mxu0 0.0
    %195 = vmatprep.subr.mxu0 0.0
    %196 = vmatpush1.msra.mxu0 0.0
    %197 = vmatprep.subr.mxu0 0.0
    %198 = vmatpush1.msra.mxu0 0.0
    %199 = vmatprep.subr.mxu0 0.0
    %200 = vmatpush1.msra.mxu0 0.0
    %201 = vmatprep.subr.mxu0 0.0
    %202 = vmatpush1.msra.mxu0 0.0
    %203 = vmatprep.subr.mxu0 0.0
    %204 = vmatpush1.msra.mxu0 0.0
    %205 = vmatprep.subr.mxu0 0.0
    %206 = vmatpush1.msra.mxu0 0.0
    %207 = vmatprep.subr.mxu0 0.0
    %208 = vmatpush1.msra.mxu0 0.0
    %209 = vmatprep.mubr.f32.mxu0 0.0
    %210 = vmatmul.mubr.f32.gmra.mrb[0].mxu0 %v104
    %v211 = vpop.f32.mrb[0].mxu0
    %v212 = vadd.f32 %v143, %v211
    %v213 = vpop.f32.mrb[0].mxu0
    %214 = vmatprep.mubr.f32.mxu0 0.0
    %215 = vmatmul.mubr.f32.gmra.mrb[0].mxu0 %v105
    %v216 = vpop.f32.mrb[0].mxu0
    %v217 = vadd.f32 %v144, %v216
    %v218 = vpop.f32.mrb[0].mxu0
    %219 = vdwg.mxu0
    %v220 = vld [vmem:[%s5 + $0x1] sm:$0x1]
    %222 = vset.pattern.permute.xlu0 0
    %223 = vperm.xlu0 %222, %v124
    %v224 = vpop.permute.xlu0 %223
    %227 = vset.pattern.permute.xlu0 0
    %228 = vperm.xlu0 %227, %v125
    %v229 = vpop.permute.xlu0 %228
    %v231 = vlaneseq
    %v232 = vshrl.u32 %v231, 7
    %v233 = vsub.s32 0, %v232
    %v234 = vrot.slane %v220, %v233
    %v235 = vmul.f32 %v224, %v234
    %v236 = vmul.f32 %v229, %v234
    %v237 = vadd.f32 %v212, %v235
    %v238 = vadd.f32 %v217, %v236
    %v239 = vld [vmem:[%s4] sm:$0xff]
    %v240 = vadd.f32 %v237, %v239
    %v241 = vadd.f32 %v238, %v239
    %v242 = vld [vmem:[%s6] sm:$0x1]
    %v243 = vld [vmem:[#allocation2] sm:$0x1]
    %vm244 = vcmask 261120
    %v245 = vsel %vm244, %v240, 0.0
    %246 = vadd.xlane.f32.xlu0 %v245
    %v247 = vpop.xlane.xlu0 %246
    %v248 = vsel %vm244, %v241, 0.0
    %249 = vadd.xlane.f32.xlu0 %v248
    %v250 = vpop.xlane.xlu0 %249
    %v251 = vrcp.pop 32.0
    %v252 = vmul.f32 %v247, %v251
    %v253 = vmul.f32 %v250, %v251
    %v254 = vsub.f32 %v240, %v252
    %v255 = vsub.f32 %v241, %v253
    %v256 = vmul.f32 %v254, %v254
    %v257 = vmul.f32 %v255, %v255
    %v258 = vsel %vm244, %v256, 0.0
    %259 = vadd.xlane.f32.xlu0 %v258
    %v260 = vpop.xlane.xlu0 %259
    %v261 = vsel %vm244, %v257, 0.0
    %262 = vadd.xlane.f32.xlu0 %v261
    %v263 = vpop.xlane.xlu0 %262
    %v264 = vmul.f32 %v260, %v251
    %v265 = vmul.f32 %v263, %v251
    %v266 = vadd.f32 %v264, 1e-12
    %v267 = vadd.f32 %v265, 1e-12
    %v268 = vrsqrt.pop %v266
    %v269 = vrsqrt.pop %v267
    %v270 = vmul.f32 %v254, %v268
    %v271 = vmul.f32 %v255, %v269
    %v273 = vlaneseq
    %v274 = vshrl.u32 %v273, 7
    %v275 = vsub.s32 0, %v274
    %v276 = vrot.slane %v242, %v275
    %v278 = vmul.f32 %v270, %v276
    %v279 = vmul.f32 %v271, %v276
    %v281 = vlaneseq
    %v282 = vshrl.u32 %v281, 7
    %v283 = vsub.s32 0, %v282
    %v284 = vrot.slane %v243, %v283
    %v286 = vadd.f32 %v278, %v284
    %v287 = vadd.f32 %v279, %v284
    %v288 = vld [vmem:[%s2] sm:$0x1]
    %v289 = vld [vmem:[%s2 + $0x1] sm:$0x1]
    %v290 = vcvt.s32.f32 %v288
    %v291 = vcvt.s32.f32 %v289
    %v292 = vsub.f32 1.0, %v290
    %v293 = vsub.f32 1.0, %v291
    %v294 = vmul.f32 %v292, -10000.0
    %v295 = vmul.f32 %v293, -10000.0
    %v296 = vld [vmem:[%s8] sm:$0xff]
    %v297 = vld [vmem:[%s8 + $0x8] sm:$0xff]
    %v298 = vld [vmem:[%s8 + $0x10] sm:$0xff]
    %v299 = vld [vmem:[%s8 + $0x18] sm:$0xff]
    %v300 = vld [vmem:[%s9] sm:$0x1]
    %v302 = vlaneseq
    %v303 = vshrl.u32 %v302, 7
    %v304 = vsub.s32 0, %v303
    %v305 = vrot.slane %v300, %v304
    %v308 = vsel %vm244, %v286, 0
    %v311 = vsel %vm244, %v287, 0
    %313 = vmatprep.subr.mxu0 0.0
    %314 = vmatpush1.msra.mxu0 %v296
    %315 = vmatprep.subr.mxu0 0.0
    %316 = vmatpush1.msra.mxu0 %v297
    %317 = vmatprep.subr.mxu0 0.0
    %318 = vmatpush1.msra.mxu0 %v298
    %319 = vmatprep.subr.mxu0 0.0
    %320 = vmatpush1.msra.mxu0 %v299
    %321 = vmatprep.subr.mxu0 0.0
    %322 = vmatpush1.msra.mxu0 0.0
    %323 = vmatprep.subr.mxu0 0.0
    %324 = vmatpush1.msra.mxu0 0.0
    %325 = vmatprep.subr.mxu0 0.0
    %326 = vmatpush1.msra.mxu0 0.0
    %327 = vmatprep.subr.mxu0 0.0
    %328 = vmatpush1.msra.mxu0 0.0
    %329 = vmatprep.subr.mxu0 0.0
    %330 = vmatpush1.msra.mxu0 0.0
    %331 = vmatprep.subr.mxu0 0.0
    %332 = vmatpush1.msra.mxu0 0.0
    %333 = vmatprep.subr.mxu0 0.0
    %334 = vmatpush1.msra.mxu0 0.0
    %335 = vmatprep.subr.mxu0 0.0
    %336 = vmatpush1.msra.mxu0 0.0
    %337 = vmatprep.subr.mxu0 0.0
    %338 = vmatpush1.msra.mxu0 0.0
    %339 = vmatprep.subr.mxu0 0.0
    %340 = vmatpush1.msra.mxu0 0.0
    %341 = vmatprep.subr.mxu0 0.0
    %342 = vmatpush1.msra.mxu0 0.0
    %343 = vmatprep.subr.mxu0 0.0
    %344 = vmatpush1.msra.mxu0 0.0
    %345 = vmatprep.subr.mxu0 0.0
    %346 = vmatpush1.msra.mxu0 0.0
    %347 = vmatprep.subr.mxu0 0.0
    %348 = vmatpush1.msra.mxu0 0.0
    %349 = vmatprep.subr.mxu0 0.0
    %350 = vmatpush1.msra.mxu0 0.0
    %351 = vmatprep.subr.mxu0 0.0
    %352 = vmatpush1.msra.mxu0 0.0
    %353 = vmatprep.subr.mxu0 0.0
    %354 = vmatpush1.msra.mxu0 0.0
    %355 = vmatprep.subr.mxu0 0.0
    %356 = vmatpush1.msra.mxu0 0.0
    %357 = vmatprep.subr.mxu0 0.0
    %358 = vmatpush1.msra.mxu0 0.0
    %359 = vmatprep.subr.mxu0 0.0
    %360 = vmatpush1.msra.mxu0 0.0
    %361 = vmatprep.subr.mxu0 0.0
    %362 = vmatpush1.msra.mxu0 0.0
    %363 = vmatprep.subr.mxu0 0.0
    %364 = vmatpush1.msra.mxu0 0.0
    %365 = vmatprep.subr.mxu0 0.0
    %366 = vmatpush1.msra.mxu0 0.0
    %367 = vmatprep.subr.mxu0 0.0
    %368 = vmatpush1.msra.mxu0 0.0
    %369 = vmatprep.subr.mxu0 0.0
    %370 = vmatpush1.msra.mxu0 0.0
    %371 = vmatprep.subr.mxu0 0.0
    %372 = vmatpush1.msra.mxu0 0.0
    %373 = vmatprep.subr.mxu0 0.0
    %374 = vmatpush1.msra.mxu0 0.0
    %375 = vmatprep.subr.mxu0 0.0
    %376 = vmatpush1.msra.mxu0 0.0
    %377 = vmatprep.mubr.f32.mxu0 0.0
    %378 = vmatmul.mubr.f32.gmra.mrb[0].mxu0 %v308
    %v379 = vpop.f32.mrb[0].mxu0
    %v380 = vadd.f32 %v305, %v379
    %v381 = vpop.f32.mrb[0].mxu0
    %382 = vmatprep.mubr.f32.mxu0 0.0
    %383 = vmatmul.mubr.f32.gmra.mrb[0].mxu0 %v311
    %v384 = vpop.f32.mrb[0].mxu0
    %v385 = vadd.f32 %v305, %v384
    %v386 = vpop.f32.mrb[0].mxu0
    %387 = vdwg.mxu0
    %v388 = vld [vmem:[%s10] sm:$0xff]
    %v389 = vld [vmem:[%s10 + $0x8] sm:$0xff]
    %v390 = vld [vmem:[%s10 + $0x10] sm:$0xff]
    %v391 = vld [vmem:[%s10 + $0x18] sm:$0xff]
    %v392 = vld [vmem:[%s11] sm:$0x1]
    %v394 = vlaneseq
    %v395 = vshrl.u32 %v394, 7
    %v396 = vsub.s32 0, %v395
    %v397 = vrot.slane %v392, %v396
    %399 = vmatprep.subr.mxu0 0.0
    %400 = vmatpush1.msra.mxu0 %v388
    %401 = vmatprep.subr.mxu0 0.0
    %402 = vmatpush1.msra.mxu0 %v389
    %403 = vmatprep.subr.mxu0 0.0
    %404 = vmatpush1.msra.mxu0 %v390
    %405 = vmatprep.subr.mxu0 0.0
    %406 = vmatpush1.msra.mxu0 %v391
    %407 = vmatprep.subr.mxu0 0.0
    %408 = vmatpush1.msra.mxu0 0.0
    %409 = vmatprep.subr.mxu0 0.0
    %410 = vmatpush1.msra.mxu0 0.0
    %411 = vmatprep.subr.mxu0 0.0
    %412 = vmatpush1.msra.mxu0 0.0
    %413 = vmatprep.subr.mxu0 0.0
    %414 = vmatpush1.msra.mxu0 0.0
    %415 = vmatprep.subr.mxu0 0.0
    %416 = vmatpush1.msra.mxu0 0.0
    %417 = vmatprep.subr.mxu0 0.0
    %418 = vmatpush1.msra.mxu0 0.0
    %419 = vmatprep.subr.mxu0 0.0
    %420 = vmatpush1.msra.mxu0 0.0
    %421 = vmatprep.subr.mxu0 0.0
    %422 = vmatpush1.msra.mxu0 0.0
    %423 = vmatprep.subr.mxu0 0.0
    %424 = vmatpush1.msra.mxu0 0.0
    %425 = vmatprep.subr.mxu0 0.0
    %426 = vmatpush1.msra.mxu0 0.0
    %427 = vmatprep.subr.mxu0 0.0
    %428 = vmatpush1.msra.mxu0 0.0
    %429 = vmatprep.subr.mxu0 0.0
    %430 = vmatpush1.msra.mxu0 0.0
    %431 = vmatprep.subr.mxu0 0.0
    %432 = vmatpush1.msra.mxu0 0.0
    %433 = vmatprep.subr.mxu0 0.0
    %434 = vmatpush1.msra.mxu0 0.0
    %435 = vmatprep.subr.mxu0 0.0
    %436 = vmatpush1.msra.mxu0 0.0
    %437 = vmatprep.subr.mxu0 0.0
    %438 = vmatpush1.msra.mxu0 0.0
    %439 = vmatprep.subr.mxu0 0.0
    %440 = vmatpush1.msra.mxu0 0.0
    %441 = vmatprep.subr.mxu0 0.0
    %442 = vmatpush1.msra.mxu0 0.0
    %443 = vmatprep.subr.mxu0 0.0
    %444 = vmatpush1.msra.mxu0 0.0
    %445 = vmatprep.subr.mxu0 0.0
    %446 = vmatpush1.msra.mxu0 0.0
    %447 = vmatprep.subr.mxu0 0.0
    %448 = vmatpush1.msra.mxu0 0.0
    %449 = vmatprep.subr.mxu0 0.0
    %450 = vmatpush1.msra.mxu0 0.0
    %451 = vmatprep.subr.mxu0 0.0
    %452 = vmatpush1.msra.mxu0 0.0
    %453 = vmatprep.subr.mxu0 0.0
    %454 = vmatpush1.msra.mxu0 0.0
    %455 = vmatprep.subr.mxu0 0.0
    %456 = vmatpush1.msra.mxu0 0.0
    %457 = vmatprep.subr.mxu0 0.0
    %458 = vmatpush1.msra.mxu0 0.0
    %459 = vmatprep.subr.mxu0 0.0
    %460 = vmatpush1.msra.mxu0 0.0
    %461 = vmatprep.subr.mxu0 0.0
    %462 = vmatpush1.msra.mxu0 0.0
    %463 = vmatprep.mubr.f32.mxu0 0.0
    %464 = vmatmul.mubr.f32.gmra.mrb[0].mxu0 %v308
    %v465 = vpop.f32.mrb[0].mxu0
    %v466 = vadd.f32 %v397, %v465
    %v467 = vpop.f32.mrb[0].mxu0
    %468 = vmatprep.mubr.f32.mxu0 0.0
    %469 = vmatmul.mubr.f32.gmra.mrb[0].mxu0 %v311
    %v470 = vpop.f32.mrb[0].mxu0
    %v471 = vadd.f32 %v397, %v470
    %v472 = vpop.f32.mrb[0].mxu0
    %473 = vdwg.mxu0
    %v474 = vld [vmem:[%s12] sm:$0xff]
    %v475 = vld [vmem:[%s12 + $0x8] sm:$0xff]
    %v476 = vld [vmem:[%s12 + $0x10] sm:$0xff]
    %v477 = vld [vmem:[%s12 + $0x18] sm:$0xff]
    %v478 = vld [vmem:[%s13] sm:$0x1]
    %v480 = vlaneseq
    %v481 = vshrl.u32 %v480, 7
    %v482 = vsub.s32 0, %v481
    %v483 = vrot.slane %v478, %v482
    %485 = vmatprep.subr.mxu0 0.0
    %486 = vmatpush1.msra.mxu0 %v474
    %487 = vmatprep.subr.mxu0 0.0
    %488 = vmatpush1.msra.mxu0 %v475
    %489 = vmatprep.subr.mxu0 0.0
    %490 = vmatpush1.msra.mxu0 %v476
    %491 = vmatprep.subr.mxu0 0.0
    %492 = vmatpush1.msra.mxu0 %v477
    %493 = vmatprep.subr.mxu0 0.0
    %494 = vmatpush1.msra.mxu0 0.0
    %495 = vmatprep.subr.mxu0 0.0
    %496 = vmatpush1.msra.mxu0 0.0
    %497 = vmatprep.subr.mxu0 0.0
    %498 = vmatpush1.msra.mxu0 0.0
    %499 = vmatprep.subr.mxu0 0.0
    %500 = vmatpush1.msra.mxu0 0.0
    %501 = vmatprep.subr.mxu0 0.0
    %502 = vmatpush1.msra.mxu0 0.0
    %503 = vmatprep.subr.mxu0 0.0
    %504 = vmatpush1.msra.mxu0 0.0
    %505 = vmatprep.subr.mxu0 0.0
    %506 = vmatpush1.msra.mxu0 0.0
    %507 = vmatprep.subr.mxu0 0.0
    %508 = vmatpush1.msra.mxu0 0.0
    %509 = vmatprep.subr.mxu0 0.0
    %510 = vmatpush1.msra.mxu0 0.0
    %511 = vmatprep.subr.mxu0 0.0
    %512 = vmatpush1.msra.mxu0 0.0
    %513 = vmatprep.subr.mxu0 0.0
    %514 = vmatpush1.msra.mxu0 0.0
    %515 = vmatprep.subr.mxu0 0.0
    %516 = vmatpush1.msra.mxu0 0.0
    %517 = vmatprep.subr.mxu0 0.0
    %518 = vmatpush1.msra.mxu0 0.0
    %519 = vmatprep.subr.mxu0 0.0
    %520 = vmatpush1.msra.mxu0 0.0
    %521 = vmatprep.subr.mxu0 0.0
    %522 = vmatpush1.msra.mxu0 0.0
    %523 = vmatprep.subr.mxu0 0.0
    %524 = vmatpush1.msra.mxu0 0.0
    %525 = vmatprep.subr.mxu0 0.0
    %526 = vmatpush1.msra.mxu0 0.0
    %527 = vmatprep.subr.mxu0 0.0
    %528 = vmatpush1.msra.mxu0 0.0
    %529 = vmatprep.subr.mxu0 0.0
    %530 = vmatpush1.msra.mxu0 0.0
    %531 = vmatprep.subr.mxu0 0.0
    %532 = vmatpush1.msra.mxu0 0.0
    %533 = vmatprep.subr.mxu0 0.0
    %534 = vmatpush1.msra.mxu0 0.0
    %535 = vmatprep.subr.mxu0 0.0
    %536 = vmatpush1.msra.mxu0 0.0
    %537 = vmatprep.subr.mxu0 0.0
    %538 = vmatpush1.msra.mxu0 0.0
    %539 = vmatprep.subr.mxu0 0.0
    %540 = vmatpush1.msra.mxu0 0.0
    %541 = vmatprep.subr.mxu0 0.0
    %542 = vmatpush1.msra.mxu0 0.0
    %543 = vmatprep.subr.mxu0 0.0
    %544 = vmatpush1.msra.mxu0 0.0
    %545 = vmatprep.subr.mxu0 0.0
    %546 = vmatpush1.msra.mxu0 0.0
    %547 = vmatprep.subr.mxu0 0.0
    %548 = vmatpush1.msra.mxu0 0.0
    %549 = vmatprep.mubr.f32.mxu0 0.0
    %550 = vmatmul.mubr.f32.gmra.mrb[0].mxu0 %v308
    %v551 = vpop.f32.mrb[0].mxu0
    %v552 = vadd.f32 %v483, %v551
    %v553 = vpop.f32.mrb[0].mxu0
    %554 = vmatprep.mubr.f32.mxu0 0.0
    %555 = vmatmul.mubr.f32.gmra.mrb[0].mxu0 %v311
    %v556 = vpop.f32.mrb[0].mxu0
    %v557 = vadd.f32 %v483, %v556
    %v558 = vpop.f32.mrb[0].mxu0
    %559 = vdwg.mxu0
    %562 = vrot.lane.b32.xlu0 %v380, 120
    %v563 = vpop.permute.xlu0 %562
    %564 = vrot.lane.b32.xlu0 %v385, 120
    %v565 = vpop.permute.xlu0 %564
    %566 = vrot.lane.b32.xlu0 %v380, 112
    %v567 = vpop.permute.xlu0 %566
    %568 = vrot.lane.b32.xlu0 %v385, 112
    %v569 = vpop.permute.xlu0 %568
    %570 = vrot.lane.b32.xlu0 %v380, 104
    %v571 = vpop.permute.xlu0 %570
    %572 = vrot.lane.b32.xlu0 %v385, 104
    %v573 = vpop.permute.xlu0 %572
    %576 = vrot.lane.b32.xlu0 %v466, 120
    %v577 = vpop.permute.xlu0 %576
    %578 = vrot.lane.b32.xlu0 %v471, 120
    %v579 = vpop.permute.xlu0 %578
    %580 = vrot.lane.b32.xlu0 %v466, 112
    %v581 = vpop.permute.xlu0 %580
    %582 = vrot.lane.b32.xlu0 %v471, 112
    %v583 = vpop.permute.xlu0 %582
    %584 = vrot.lane.b32.xlu0 %v466, 104
    %v585 = vpop.permute.xlu0 %584
    %586 = vrot.lane.b32.xlu0 %v471, 104
    %v587 = vpop.permute.xlu0 %586
    %590 = vrot.lane.b32.xlu0 %v552, 120
    %v591 = vpop.permute.xlu0 %590
    %592 = vrot.lane.b32.xlu0 %v557, 120
    %v593 = vpop.permute.xlu0 %592
    %596 = vrot.lane.b32.xlu0 %v552, 112
    %v597 = vpop.permute.xlu0 %596
    %598 = vrot.lane.b32.xlu0 %v557, 112
    %v599 = vpop.permute.xlu0 %598
    %602 = vrot.lane.b32.xlu0 %v552, 104
    %v603 = vpop.permute.xlu0 %602
    %604 = vrot.lane.b32.xlu0 %v557, 104
    %v605 = vpop.permute.xlu0 %604
    %vm608 = vcmask 64512
    %v609 = vsel %vm608, %v380, 0
    %v611 = vsel %vm608, %v466, 0
    %613 = vmatprep.subr.mxu0 0.0
    %614 = vmatpush1.xpose.msra.mxu0 %v611
    %615 = vmatprep.subr.mxu0 0.0
    %616 = vmatpush1.xpose.msra.mxu0 0.0
    %617 = vmatprep.subr.mxu0 0.0
    %618 = vmatpush1.xpose.msra.mxu0 0.0
    %619 = vmatprep.subr.mxu0 0.0
    %620 = vmatpush1.xpose.msra.mxu0 0.0
    %621 = vmatprep.subr.mxu0 0.0
    %622 = vmatpush1.xpose.msra.mxu0 0.0
    %623 = vmatprep.subr.mxu0 0.0
    %624 = vmatpush1.xpose.msra.mxu0 0.0
    %625 = vmatprep.subr.mxu0 0.0
    %626 = vmatpush1.xpose.msra.mxu0 0.0
    %627 = vmatprep.subr.mxu0 0.0
    %628 = vmatpush1.xpose.msra.mxu0 0.0
    %629 = vmatprep.subr.mxu0 0.0
    %630 = vmatpush1.xpose.msra.mxu0 0.0
    %631 = vmatprep.subr.mxu0 0.0
    %632 = vmatpush1.xpose.msra.mxu0 0.0
    %633 = vmatprep.subr.mxu0 0.0
    %634 = vmatpush1.xpose.msra.mxu0 0.0
    %635 = vmatprep.subr.mxu0 0.0
    %636 = vmatpush1.xpose.msra.mxu0 0.0
    %637 = vmatprep.subr.mxu0 0.0
    %638 = vmatpush1.xpose.msra.mxu0 0.0
    %639 = vmatprep.subr.mxu0 0.0
    %640 = vmatpush1.xpose.msra.mxu0 0.0
    %641 = vmatprep.subr.mxu0 0.0
    %642 = vmatpush1.xpose.msra.mxu0 0.0
    %643 = vmatprep.subr.mxu0 0.0
    %644 = vmatpush1.xpose.msra.mxu0 0.0
    %645 = vmatprep.subr.mxu0 0.0
    %646 = vmatpush1.xpose.msra.mxu0 0.0
    %647 = vmatprep.subr.mxu0 0.0
    %648 = vmatpush1.xpose.msra.mxu0 0.0
    %649 = vmatprep.subr.mxu0 0.0
    %650 = vmatpush1.xpose.msra.mxu0 0.0
    %651 = vmatprep.subr.mxu0 0.0
    %652 = vmatpush1.xpose.msra.mxu0 0.0
    %653 = vmatprep.subr.mxu0 0.0
    %654 = vmatpush1.xpose.msra.mxu0 0.0
    %655 = vmatprep.subr.mxu0 0.0
    %656 = vmatpush1.xpose.msra.mxu0 0.0
    %657 = vmatprep.subr.mxu0 0.0
    %658 = vmatpush1.xpose.msra.mxu0 0.0
    %659 = vmatprep.subr.mxu0 0.0
    %660 = vmatpush1.xpose.msra.mxu0 0.0
    %661 = vmatprep.subr.mxu0 0.0
    %662 = vmatpush1.xpose.msra.mxu0 0.0
    %663 = vmatprep.subr.mxu0 0.0
    %664 = vmatpush1.xpose.msra.mxu0 0.0
    %665 = vmatprep.subr.mxu0 0.0
    %666 = vmatpush1.xpose.msra.mxu0 0.0
    %667 = vmatprep.subr.mxu0 0.0
    %668 = vmatpush1.xpose.msra.mxu0 0.0
    %669 = vmatprep.subr.mxu0 0.0
    %670 = vmatpush1.xpose.msra.mxu0 0.0
    %671 = vmatprep.subr.mxu0 0.0
    %672 = vmatpush1.xpose.msra.mxu0 0.0
    %673 = vmatprep.subr.mxu0 0.0
    %674 = vmatpush1.xpose.msra.mxu0 0.0
    %675 = vmatprep.subr.mxu0 0.0
    %676 = vmatpush1.xpose.msra.mxu0 0.0
    %677 = vmatprep.mubr.f32.mxu0 0.0
    %678 = vmatmul.mubr.f32.gmra.mrb[0].mxu0 %v609
    %v679 = vpop.f32.mrb[0].mxu0
    %v680 = vadd.f32 0.0, %v679
    %v681 = vpop.f32.mrb[0].mxu0
    %682 = vdwg.mxu0
    %v683 = vsel %vm608, %v385, 0
    %v685 = vsel %vm608, %v471, 0
    %687 = vmatprep.subr.mxu0 0.0
    %688 = vmatpush1.xpose.msra.mxu0 %v685
    %689 = vmatprep.subr.mxu0 0.0
    %690 = vmatpush1.xpose.msra.mxu0 0.0
    %691 = vmatprep.subr.mxu0 0.0
    %692 = vmatpush1.xpose.msra.mxu0 0.0
    %693 = vmatprep.subr.mxu0 0.0
    %694 = vmatpush1.xpose.msra.mxu0 0.0
    %695 = vmatprep.subr.mxu0 0.0
    %696 = vmatpush1.xpose.msra.mxu0 0.0
    %697 = vmatprep.subr.mxu0 0.0
    %698 = vmatpush1.xpose.msra.mxu0 0.0
    %699 = vmatprep.subr.mxu0 0.0
    %700 = vmatpush1.xpose.msra.mxu0 0.0
    %701 = vmatprep.subr.mxu0 0.0
    %702 = vmatpush1.xpose.msra.mxu0 0.0
    %703 = vmatprep.subr.mxu0 0.0
    %704 = vmatpush1.xpose.msra.mxu0 0.0
    %705 = vmatprep.subr.mxu0 0.0
    %706 = vmatpush1.xpose.msra.mxu0 0.0
    %707 = vmatprep.subr.mxu0 0.0
    %708 = vmatpush1.xpose.msra.mxu0 0.0
    %709 = vmatprep.subr.mxu0 0.0
    %710 = vmatpush1.xpose.msra.mxu0 0.0
    %711 = vmatprep.subr.mxu0 0.0
    %712 = vmatpush1.xpose.msra.mxu0 0.0
    %713 = vmatprep.subr.mxu0 0.0
    %714 = vmatpush1.xpose.msra.mxu0 0.0
    %715 = vmatprep.subr.mxu0 0.0
    %716 = vmatpush1.xpose.msra.mxu0 0.0
    %717 = vmatprep.subr.mxu0 0.0
    %718 = vmatpush1.xpose.msra.mxu0 0.0
    %719 = vmatprep.subr.mxu0 0.0
    %720 = vmatpush1.xpose.msra.mxu0 0.0
    %721 = vmatprep.subr.mxu0 0.0
    %722 = vmatpush1.xpose.msra.mxu0 0.0
    %723 = vmatprep.subr.mxu0 0.0
    %724 = vmatpush1.xpose.msra.mxu0 0.0
    %725 = vmatprep.subr.mxu0 0.0
    %726 = vmatpush1.xpose.msra.mxu0 0.0
    %727 = vmatprep.subr.mxu0 0.0
    %728 = vmatpush1.xpose.msra.mxu0 0.0
    %729 = vmatprep.subr.mxu0 0.0
    %730 = vmatpush1.xpose.msra.mxu0 0.0
    %731 = vmatprep.subr.mxu0 0.0
    %732 = vmatpush1.xpose.msra.mxu0 0.0
    %733 = vmatprep.subr.mxu0 0.0
    %734 = vmatpush1.xpose.msra.mxu0 0.0
    %735 = vmatprep.subr.mxu0 0.0
    %736 = vmatpush1.xpose.msra.mxu0 0.0
    %737 = vmatprep.subr.mxu0 0.0
    %738 = vmatpush1.xpose.msra.mxu0 0.0
    %739 = vmatprep.subr.mxu0 0.0
    %740 = vmatpush1.xpose.msra.mxu0 0.0
    %741 = vmatprep.subr.mxu0 0.0
    %742 = vmatpush1.xpose.msra.mxu0 0.0
    %743 = vmatprep.subr.mxu0 0.0
    %744 = vmatpush1.xpose.msra.mxu0 0.0
    %745 = vmatprep.subr.mxu0 0.0
    %746 = vmatpush1.xpose.msra.mxu0 0.0
    %747 = vmatprep.subr.mxu0 0.0
    %748 = vmatpush1.xpose.msra.mxu0 0.0
    %749 = vmatprep.subr.mxu0 0.0
    %750 = vmatpush1.xpose.msra.mxu0 0.0
    %751 = vmatprep.mubr.f32.mxu0 0.0
    %752 = vmatmul.mubr.f32.gmra.mrb[0].mxu0 %v683
    %v753 = vpop.f32.mrb[0].mxu0
    %v754 = vadd.f32 0.0, %v753
    %v755 = vpop.f32.mrb[0].mxu0
    %756 = vdwg.mxu0
    %v757 = vsel %vm608, %v563, 0
    %v759 = vsel %vm608, %v577, 0
    %761 = vmatprep.subr.mxu0 0.0
    %762 = vmatpush1.xpose.msra.mxu0 %v759
    %763 = vmatprep.subr.mxu0 0.0
    %764 = vmatpush1.xpose.msra.mxu0 0.0
    %765 = vmatprep.subr.mxu0 0.0
    %766 = vmatpush1.xpose.msra.mxu0 0.0
    %767 = vmatprep.subr.mxu0 0.0
    %768 = vmatpush1.xpose.msra.mxu0 0.0
    %769 = vmatprep.subr.mxu0 0.0
    %770 = vmatpush1.xpose.msra.mxu0 0.0
    %771 = vmatprep.subr.mxu0 0.0
    %772 = vmatpush1.xpose.msra.mxu0 0.0
    %773 = vmatprep.subr.mxu0 0.0
    %774 = vmatpush1.xpose.msra.mxu0 0.0
    %775 = vmatprep.subr.mxu0 0.0
    %776 = vmatpush1.xpose.msra.mxu0 0.0
    %777 = vmatprep.subr.mxu0 0.0
    %778 = vmatpush1.xpose.msra.mxu0 0.0
    %779 = vmatprep.subr.mxu0 0.0
    %780 = vmatpush1.xpose.msra.mxu0 0.0
    %781 = vmatprep.subr.mxu0 0.0
    %782 = vmatpush1.xpose.msra.mxu0 0.0
    %783 = vmatprep.subr.mxu0 0.0
    %784 = vmatpush1.xpose.msra.mxu0 0.0
    %785 = vmatprep.subr.mxu0 0.0
    %786 = vmatpush1.xpose.msra.mxu0 0.0
    %787 = vmatprep.subr.mxu0 0.0
    %788 = vmatpush1.xpose.msra.mxu0 0.0
    %789 = vmatprep.subr.mxu0 0.0
    %790 = vmatpush1.xpose.msra.mxu0 0.0
    %791 = vmatprep.subr.mxu0 0.0
    %792 = vmatpush1.xpose.msra.mxu0 0.0
    %793 = vmatprep.subr.mxu0 0.0
    %794 = vmatpush1.xpose.msra.mxu0 0.0
    %795 = vmatprep.subr.mxu0 0.0
    %796 = vmatpush1.xpose.msra.mxu0 0.0
    %797 = vmatprep.subr.mxu0 0.0
    %798 = vmatpush1.xpose.msra.mxu0 0.0
    %799 = vmatprep.subr.mxu0 0.0
    %800 = vmatpush1.xpose.msra.mxu0 0.0
    %801 = vmatprep.subr.mxu0 0.0
    %802 = vmatpush1.xpose.msra.mxu0 0.0
    %803 = vmatprep.subr.mxu0 0.0
    %804 = vmatpush1.xpose.msra.mxu0 0.0
    %805 = vmatprep.subr.mxu0 0.0
    %806 = vmatpush1.xpose.msra.mxu0 0.0
    %807 = vmatprep.subr.mxu0 0.0
    %808 = vmatpush1.xpose.msra.mxu0 0.0
    %809 = vmatprep.subr.mxu0 0.0
    %810 = vmatpush1.xpose.msra.mxu0 0.0
    %811 = vmatprep.subr.mxu0 0.0
    %812 = vmatpush1.xpose.msra.mxu0 0.0
    %813 = vmatprep.subr.mxu0 0.0
    %814 = vmatpush1.xpose.msra.mxu0 0.0
    %815 = vmatprep.subr.mxu0 0.0
    %816 = vmatpush1.xpose.msra.mxu0 0.0
    %817 = vmatprep.subr.mxu0 0.0
    %818 = vmatpush1.xpose.msra.mxu0 0.0
    %819 = vmatprep.subr.mxu0 0.0
    %820 = vmatpush1.xpose.msra.mxu0 0.0
    %821 = vmatprep.subr.mxu0 0.0
    %822 = vmatpush1.xpose.msra.mxu0 0.0
    %823 = vmatprep.subr.mxu0 0.0
    %824 = vmatpush1.xpose.msra.mxu0 0.0
    %825 = vmatprep.mubr.f32.mxu0 0.0
    %826 = vmatmul.mubr.f32.gmra.mrb[0].mxu0 %v757
    %v827 = vpop.f32.mrb[0].mxu0
    %v828 = vadd.f32 0.0, %v827
    %v829 = vpop.f32.mrb[0].mxu0
    %830 = vdwg.mxu0
    %v831 = vsel %vm608, %v565, 0
    %v833 = vsel %vm608, %v579, 0
    %835 = vmatprep.subr.mxu0 0.0
    %836 = vmatpush1.xpose.msra.mxu0 %v833
    %837 = vmatprep.subr.mxu0 0.0
    %838 = vmatpush1.xpose.msra.mxu0 0.0
    %839 = vmatprep.subr.mxu0 0.0
    %840 = vmatpush1.xpose.msra.mxu0 0.0
    %841 = vmatprep.subr.mxu0 0.0
    %842 = vmatpush1.xpose.msra.mxu0 0.0
    %843 = vmatprep.subr.mxu0 0.0
    %844 = vmatpush1.xpose.msra.mxu0 0.0
    %845 = vmatprep.subr.mxu0 0.0
    %846 = vmatpush1.xpose.msra.mxu0 0.0
    %847 = vmatprep.subr.mxu0 0.0
    %848 = vmatpush1.xpose.msra.mxu0 0.0
    %849 = vmatprep.subr.mxu0 0.0
    %850 = vmatpush1.xpose.msra.mxu0 0.0
    %851 = vmatprep.subr.mxu0 0.0
    %852 = vmatpush1.xpose.msra.mxu0 0.0
    %853 = vmatprep.subr.mxu0 0.0
    %854 = vmatpush1.xpose.msra.mxu0 0.0
    %855 = vmatprep.subr.mxu0 0.0
    %856 = vmatpush1.xpose.msra.mxu0 0.0
    %857 = vmatprep.subr.mxu0 0.0
    %858 = vmatpush1.xpose.msra.mxu0 0.0
    %859 = vmatprep.subr.mxu0 0.0
    %860 = vmatpush1.xpose.msra.mxu0 0.0
    %861 = vmatprep.subr.mxu0 0.0
    %862 = vmatpush1.xpose.msra.mxu0 0.0
    %863 = vmatprep.subr.mxu0 0.0
    %864 = vmatpush1.xpose.msra.mxu0 0.0
    %865 = vmatprep.subr.mxu0 0.0
    %866 = vmatpush1.xpose.msra.mxu0 0.0
    %867 = vmatprep.subr.mxu0 0.0
    %868 = vmatpush1.xpose.msra.mxu0 0.0
    %869 = vmatprep.subr.mxu0 0.0
    %870 = vmatpush1.xpose.msra.mxu0 0.0
    %871 = vmatprep.subr.mxu0 0.0
    %872 = vmatpush1.xpose.msra.mxu0 0.0
    %873 = vmatprep.subr.mxu0 0.0
    %874 = vmatpush1.xpose.msra.mxu0 0.0
    %875 = vmatprep.subr.mxu0 0.0
    %876 = vmatpush1.xpose.msra.mxu0 0.0
    %877 = vmatprep.subr.mxu0 0.0
    %878 = vmatpush1.xpose.msra.mxu0 0.0
    %879 = vmatprep.subr.mxu0 0.0
    %880 = vmatpush1.xpose.msra.mxu0 0.0
    %881 = vmatprep.subr.mxu0 0.0
    %882 = vmatpush1.xpose.msra.mxu0 0.0
    %883 = vmatprep.subr.mxu0 0.0
    %884 = vmatpush1.xpose.msra.mxu0 0.0
    %885 = vmatprep.subr.mxu0 0.0
    %886 = vmatpush1.xpose.msra.mxu0 0.0
    %887 = vmatprep.subr.mxu0 0.0
    %888 = vmatpush1.xpose.msra.mxu0 0.0
    %889 = vmatprep.subr.mxu0 0.0
    %890 = vmatpush1.xpose.msra.mxu0 0.0
    %891 = vmatprep.subr.mxu0 0.0
    %892 = vmatpush1.xpose.msra.mxu0 0.0
    %893 = vmatprep.subr.mxu0 0.0
    %894 = vmatpush1.xpose.msra.mxu0 0.0
    %895 = vmatprep.subr.mxu0 0.0
    %896 = vmatpush1.xpose.msra.mxu0 0.0
    %897 = vmatprep.subr.mxu0 0.0
    %898 = vmatpush1.xpose.msra.mxu0 0.0
    %899 = vmatprep.mubr.f32.mxu0 0.0
    %900 = vmatmul.mubr.f32.gmra.mrb[0].mxu0 %v831
    %v901 = vpop.f32.mrb[0].mxu0
    %v902 = vadd.f32 0.0, %v901
    %v903 = vpop.f32.mrb[0].mxu0
    %904 = vdwg.mxu0
    %v905 = vsel %vm608, %v567, 0
    %v907 = vsel %vm608, %v581, 0
    %909 = vmatprep.subr.mxu0 0.0
    %910 = vmatpush1.xpose.msra.mxu0 %v907
    %911 = vmatprep.subr.mxu0 0.0
    %912 = vmatpush1.xpose.msra.mxu0 0.0
    %913 = vmatprep.subr.mxu0 0.0
    %914 = vmatpush1.xpose.msra.mxu0 0.0
    %915 = vmatprep.subr.mxu0 0.0
    %916 = vmatpush1.xpose.msra.mxu0 0.0
    %917 = vmatprep.subr.mxu0 0.0
    %918 = vmatpush1.xpose.msra.mxu0 0.0
    %919 = vmatprep.subr.mxu0 0.0
    %920 = vmatpush1.xpose.msra.mxu0 0.0
    %921 = vmatprep.subr.mxu0 0.0
    %922 = vmatpush1.xpose.msra.mxu0 0.0
    %923 = vmatprep.subr.mxu0 0.0
    %924 = vmatpush1.xpose.msra.mxu0 0.0
    %925 = vmatprep.subr.mxu0 0.0
    %926 = vmatpush1.xpose.msra.mxu0 0.0
    %927 = vmatprep.subr.mxu0 0.0
    %928 = vmatpush1.xpose.msra.mxu0 0.0
    %929 = vmatprep.subr.mxu0 0.0
    %930 = vmatpush1.xpose.msra.mxu0 0.0
    %931 = vmatprep.subr.mxu0 0.0
    %932 = vmatpush1.xpose.msra.mxu0 0.0
    %933 = vmatprep.subr.mxu0 0.0
    %934 = vmatpush1.xpose.msra.mxu0 0.0
    %935 = vmatprep.subr.mxu0 0.0
    %936 = vmatpush1.xpose.msra.mxu0 0.0
    %937 = vmatprep.subr.mxu0 0.0
    %938 = vmatpush1.xpose.msra.mxu0 0.0
    %939 = vmatprep.subr.mxu0 0.0
    %940 = vmatpush1.xpose.msra.mxu0 0.0
    %941 = vmatprep.subr.mxu0 0.0
    %942 = vmatpush1.xpose.msra.mxu0 0.0
    %943 = vmatprep.subr.mxu0 0.0
    %944 = vmatpush1.xpose.msra.mxu0 0.0
    %945 = vmatprep.subr.mxu0 0.0
    %946 = vmatpush1.xpose.msra.mxu0 0.0
    %947 = vmatprep.subr.mxu0 0.0
    %948 = vmatpush1.xpose.msra.mxu0 0.0
    %949 = vmatprep.subr.mxu0 0.0
    %950 = vmatpush1.xpose.msra.mxu0 0.0
    %951 = vmatprep.subr.mxu0 0.0
    %952 = vmatpush1.xpose.msra.mxu0 0.0
    %953 = vmatprep.subr.mxu0 0.0
    %954 = vmatpush1.xpose.msra.mxu0 0.0
    %955 = vmatprep.subr.mxu0 0.0
    %956 = vmatpush1.xpose.msra.mxu0 0.0
    %957 = vmatprep.subr.mxu0 0.0
    %958 = vmatpush1.xpose.msra.mxu0 0.0
    %959 = vmatprep.subr.mxu0 0.0
    %960 = vmatpush1.xpose.msra.mxu0 0.0
    %961 = vmatprep.subr.mxu0 0.0
    %962 = vmatpush1.xpose.msra.mxu0 0.0
    %963 = vmatprep.subr.mxu0 0.0
    %964 = vmatpush1.xpose.msra.mxu0 0.0
    %965 = vmatprep.subr.mxu0 0.0
    %966 = vmatpush1.xpose.msra.mxu0 0.0
    %967 = vmatprep.subr.mxu0 0.0
    %968 = vmatpush1.xpose.msra.mxu0 0.0
    %969 = vmatprep.subr.mxu0 0.0
    %970 = vmatpush1.xpose.msra.mxu0 0.0
    %971 = vmatprep.subr.mxu0 0.0
    %972 = vmatpush1.xpose.msra.mxu0 0.0
    %973 = vmatprep.mubr.f32.mxu0 0.0
    %974 = vmatmul.mubr.f32.gmra.mrb[0].mxu0 %v905
    %v975 = vpop.f32.mrb[0].mxu0
    %v976 = vadd.f32 0.0, %v975
    %v977 = vpop.f32.mrb[0].mxu0
    %978 = vdwg.mxu0
    %v979 = vsel %vm608, %v569, 0
    %v981 = vsel %vm608, %v583, 0
    %983 = vmatprep.subr.mxu0 0.0
    %984 = vmatpush1.xpose.msra.mxu0 %v981
    %985 = vmatprep.subr.mxu0 0.0
    %986 = vmatpush1.xpose.msra.mxu0 0.0
    %987 = vmatprep.subr.mxu0 0.0
    %988 = vmatpush1.xpose.msra.mxu0 0.0
    %989 = vmatprep.subr.mxu0 0.0
    %990 = vmatpush1.xpose.msra.mxu0 0.0
    %991 = vmatprep.subr.mxu0 0.0
    %992 = vmatpush1.xpose.msra.mxu0 0.0
    %993 = vmatprep.subr.mxu0 0.0
    %994 = vmatpush1.xpose.msra.mxu0 0.0
    %995 = vmatprep.subr.mxu0 0.0
    %996 = vmatpush1.xpose.msra.mxu0 0.0
    %997 = vmatprep.subr.mxu0 0.0
    %998 = vmatpush1.xpose.msra.mxu0 0.0
    %999 = vmatprep.subr.mxu0 0.0
    %1000 = vmatpush1.xpose.msra.mxu0 0.0
    %1001 = vmatprep.subr.mxu0 0.0
    %1002 = vmatpush1.xpose.msra.mxu0 0.0
    %1003 = vmatprep.subr.mxu0 0.0
    %1004 = vmatpush1.xpose.msra.mxu0 0.0
    %1005 = vmatprep.subr.mxu0 0.0
    %1006 = vmatpush1.xpose.msra.mxu0 0.0
    %1007 = vmatprep.subr.mxu0 0.0
    %1008 = vmatpush1.xpose.msra.mxu0 0.0
    %1009 = vmatprep.subr.mxu0 0.0
    %1010 = vmatpush1.xpose.msra.mxu0 0.0
    %1011 = vmatprep.subr.mxu0 0.0
    %1012 = vmatpush1.xpose.msra.mxu0 0.0
    %1013 = vmatprep.subr.mxu0 0.0
    %1014 = vmatpush1.xpose.msra.mxu0 0.0
    %1015 = vmatprep.subr.mxu0 0.0
    %1016 = vmatpush1.xpose.msra.mxu0 0.0
    %1017 = vmatprep.subr.mxu0 0.0
    %1018 = vmatpush1.xpose.msra.mxu0 0.0
    %1019 = vmatprep.subr.mxu0 0.0
    %1020 = vmatpush1.xpose.msra.mxu0 0.0
    %1021 = vmatprep.subr.mxu0 0.0
    %1022 = vmatpush1.xpose.msra.mxu0 0.0
    %1023 = vmatprep.subr.mxu0 0.0
    %1024 = vmatpush1.xpose.msra.mxu0 0.0
    %1025 = vmatprep.subr.mxu0 0.0
    %1026 = vmatpush1.xpose.msra.mxu0 0.0
    %1027 = vmatprep.subr.mxu0 0.0
    %1028 = vmatpush1.xpose.msra.mxu0 0.0
    %1029 = vmatprep.subr.mxu0 0.0
    %1030 = vmatpush1.xpose.msra.mxu0 0.0
    %1031 = vmatprep.subr.mxu0 0.0
    %1032 = vmatpush1.xpose.msra.mxu0 0.0
    %1033 = vmatprep.subr.mxu0 0.0
    %1034 = vmatpush1.xpose.msra.mxu0 0.0
    %1035 = vmatprep.subr.mxu0 0.0
    %1036 = vmatpush1.xpose.msra.mxu0 0.0
    %1037 = vmatprep.subr.mxu0 0.0
    %1038 = vmatpush1.xpose.msra.mxu0 0.0
    %1039 = vmatprep.subr.mxu0 0.0
    %1040 = vmatpush1.xpose.msra.mxu0 0.0
    %1041 = vmatprep.subr.mxu0 0.0
    %1042 = vmatpush1.xpose.msra.mxu0 0.0
    %1043 = vmatprep.subr.mxu0 0.0
    %1044 = vmatpush1.xpose.msra.mxu0 0.0
    %1045 = vmatprep.subr.mxu0 0.0
    %1046 = vmatpush1.xpose.msra.mxu0 0.0
    %1047 = vmatprep.mubr.f32.mxu0 0.0
    %1048 = vmatmul.mubr.f32.gmra.mrb[0].mxu0 %v979
    %v1049 = vpop.f32.mrb[0].mxu0
    %v1050 = vadd.f32 0.0, %v1049
    %v1051 = vpop.f32.mrb[0].mxu0
    %1052 = vdwg.mxu0
    %v1053 = vsel %vm608, %v571, 0
    %v1055 = vsel %vm608, %v585, 0
    %1057 = vmatprep.subr.mxu0 0.0
    %1058 = vmatpush1.xpose.msra.mxu0 %v1055
    %1059 = vmatprep.subr.mxu0 0.0
    %1060 = vmatpush1.xpose.msra.mxu0 0.0
    %1061 = vmatprep.subr.mxu0 0.0
    %1062 = vmatpush1.xpose.msra.mxu0 0.0
    %1063 = vmatprep.subr.mxu0 0.0
    %1064 = vmatpush1.xpose.msra.mxu0 0.0
    %1065 = vmatprep.subr.mxu0 0.0
    %1066 = vmatpush1.xpose.msra.mxu0 0.0
    %1067 = vmatprep.subr.mxu0 0.0
    %1068 = vmatpush1.xpose.msra.mxu0 0.0
    %1069 = vmatprep.subr.mxu0 0.0
    %1070 = vmatpush1.xpose.msra.mxu0 0.0
    %1071 = vmatprep.subr.mxu0 0.0
    %1072 = vmatpush1.xpose.msra.mxu0 0.0
    %1073 = vmatprep.subr.mxu0 0.0
    %1074 = vmatpush1.xpose.msra.mxu0 0.0
    %1075 = vmatprep.subr.mxu0 0.0
    %1076 = vmatpush1.xpose.msra.mxu0 0.0
    %1077 = vmatprep.subr.mxu0 0.0
    %1078 = vmatpush1.xpose.msra.mxu0 0.0
    %1079 = vmatprep.subr.mxu0 0.0
    %1080 = vmatpush1.xpose.msra.mxu0 0.0
    %1081 = vmatprep.subr.mxu0 0.0
    %1082 = vmatpush1.xpose.msra.mxu0 0.0
    %1083 = vmatprep.subr.mxu0 0.0
    %1084 = vmatpush1.xpose.msra.mxu0 0.0
    %1085 = vmatprep.subr.mxu0 0.0
    %1086 = vmatpush1.xpose.msra.mxu0 0.0
    %1087 = vmatprep.subr.mxu0 0.0
    %1088 = vmatpush1.xpose.msra.mxu0 0.0
    %1089 = vmatprep.subr.mxu0 0.0
    %1090 = vmatpush1.xpose.msra.mxu0 0.0
    %1091 = vmatprep.subr.mxu0 0.0
    %1092 = vmatpush1.xpose.msra.mxu0 0.0
    %1093 = vmatprep.subr.mxu0 0.0
    %1094 = vmatpush1.xpose.msra.mxu0 0.0
    %1095 = vmatprep.subr.mxu0 0.0
    %1096 = vmatpush1.xpose.msra.mxu0 0.0
    %1097 = vmatprep.subr.mxu0 0.0
    %1098 = vmatpush1.xpose.msra.mxu0 0.0
    %1099 = vmatprep.subr.mxu0 0.0
    %1100 = vmatpush1.xpose.msra.mxu0 0.0
    %1101 = vmatprep.subr.mxu0 0.0
    %1102 = vmatpush1.xpose.msra.mxu0 0.0
    %1103 = vmatprep.subr.mxu0 0.0
    %1104 = vmatpush1.xpose.msra.mxu0 0.0
    %1105 = vmatprep.subr.mxu0 0.0
    %1106 = vmatpush1.xpose.msra.mxu0 0.0
    %1107 = vmatprep.subr.mxu0 0.0
    %1108 = vmatpush1.xpose.msra.mxu0 0.0
    %1109 = vmatprep.subr.mxu0 0.0
    %1110 = vmatpush1.xpose.msra.mxu0 0.0
    %1111 = vmatprep.subr.mxu0 0.0
    %1112 = vmatpush1.xpose.msra.mxu0 0.0
    %1113 = vmatprep.subr.mxu0 0.0
    %1114 = vmatpush1.xpose.msra.mxu0 0.0
    %1115 = vmatprep.subr.mxu0 0.0
    %1116 = vmatpush1.xpose.msra.mxu0 0.0
    %1117 = vmatprep.subr.mxu0 0.0
    %1118 = vmatpush1.xpose.msra.mxu0 0.0
    %1119 = vmatprep.subr.mxu0 0.0
    %1120 = vmatpush1.xpose.msra.mxu0 0.0
    %1121 = vmatprep.mubr.f32.mxu0 0.0
    %1122 = vmatmul.mubr.f32.gmra.mrb[0].mxu0 %v1053
    %v1123 = vpop.f32.mrb[0].mxu0
    %v1124 = vadd.f32 0.0, %v1123
    %v1125 = vpop.f32.mrb[0].mxu0
    %1126 = vdwg.mxu0
    %v1127 = vsel %vm608, %v573, 0
    %v1129 = vsel %vm608, %v587, 0
    %1131 = vmatprep.subr.mxu0 0.0
    %1132 = vmatpush1.xpose.msra.mxu0 %v1129
    %1133 = vmatprep.subr.mxu0 0.0
    %1134 = vmatpush1.xpose.msra.mxu0 0.0
    %1135 = vmatprep.subr.mxu0 0.0
    %1136 = vmatpush1.xpose.msra.mxu0 0.0
    %1137 = vmatprep.subr.mxu0 0.0
    %1138 = vmatpush1.xpose.msra.mxu0 0.0
    %1139 = vmatprep.subr.mxu0 0.0
    %1140 = vmatpush1.xpose.msra.mxu0 0.0
    %1141 = vmatprep.subr.mxu0 0.0
    %1142 = vmatpush1.xpose.msra.mxu0 0.0
    %1143 = vmatprep.subr.mxu0 0.0
    %1144 = vmatpush1.xpose.msra.mxu0 0.0
    %1145 = vmatprep.subr.mxu0 0.0
    %1146 = vmatpush1.xpose.msra.mxu0 0.0
    %1147 = vmatprep.subr.mxu0 0.0
    %1148 = vmatpush1.xpose.msra.mxu0 0.0
    %1149 = vmatprep.subr.mxu0 0.0
    %1150 = vmatpush1.xpose.msra.mxu0 0.0
    %1151 = vmatprep.subr.mxu0 0.0
    %1152 = vmatpush1.xpose.msra.mxu0 0.0
    %1153 = vmatprep.subr.mxu0 0.0
    %1154 = vmatpush1.xpose.msra.mxu0 0.0
    %1155 = vmatprep.subr.mxu0 0.0
    %1156 = vmatpush1.xpose.msra.mxu0 0.0
    %1157 = vmatprep.subr.mxu0 0.0
    %1158 = vmatpush1.xpose.msra.mxu0 0.0
    %1159 = vmatprep.subr.mxu0 0.0
    %1160 = vmatpush1.xpose.msra.mxu0 0.0
    %1161 = vmatprep.subr.mxu0 0.0
    %1162 = vmatpush1.xpose.msra.mxu0 0.0
    %1163 = vmatprep.subr.mxu0 0.0
    %1164 = vmatpush1.xpose.msra.mxu0 0.0
    %1165 = vmatprep.subr.mxu0 0.0
    %1166 = vmatpush1.xpose.msra.mxu0 0.0
    %1167 = vmatprep.subr.mxu0 0.0
    %1168 = vmatpush1.xpose.msra.mxu0 0.0
    %1169 = vmatprep.subr.mxu0 0.0
    %1170 = vmatpush1.xpose.msra.mxu0 0.0
    %1171 = vmatprep.subr.mxu0 0.0
    %1172 = vmatpush1.xpose.msra.mxu0 0.0
    %1173 = vmatprep.subr.mxu0 0.0
    %1174 = vmatpush1.xpose.msra.mxu0 0.0
    %1175 = vmatprep.subr.mxu0 0.0
    %1176 = vmatpush1.xpose.msra.mxu0 0.0
    %1177 = vmatprep.subr.mxu0 0.0
    %1178 = vmatpush1.xpose.msra.mxu0 0.0
    %1179 = vmatprep.subr.mxu0 0.0
    %1180 = vmatpush1.xpose.msra.mxu0 0.0
    %1181 = vmatprep.subr.mxu0 0.0
    %1182 = vmatpush1.xpose.msra.mxu0 0.0
    %1183 = vmatprep.subr.mxu0 0.0
    %1184 = vmatpush1.xpose.msra.mxu0 0.0
    %1185 = vmatprep.subr.mxu0 0.0
    %1186 = vmatpush1.xpose.msra.mxu0 0.0
    %1187 = vmatprep.subr.mxu0 0.0
    %1188 = vmatpush1.xpose.msra.mxu0 0.0
    %1189 = vmatprep.subr.mxu0 0.0
    %1190 = vmatpush1.xpose.msra.mxu0 0.0
    %1191 = vmatprep.subr.mxu0 0.0
    %1192 = vmatpush1.xpose.msra.mxu0 0.0
    %1193 = vmatprep.subr.mxu0 0.0
    %1194 = vmatpush1.xpose.msra.mxu0 0.0
    %1195 = vmatprep.mubr.f32.mxu0 0.0
    %1196 = vmatmul.mubr.f32.gmra.mrb[0].mxu0 %v1127
    %v1197 = vpop.f32.mrb[0].mxu0
    %v1198 = vadd.f32 0.0, %v1197
    %v1199 = vpop.f32.mrb[0].mxu0
    %1200 = vdwg.mxu0
    %v1201 = vmul.f32 %v680, 0.35355338
    %v1202 = vmul.f32 %v754, 0.35355338
    %v1203 = vmul.f32 %v828, 0.35355338
    %v1204 = vmul.f32 %v902, 0.35355338
    %v1205 = vmul.f32 %v976, 0.35355338
    %v1206 = vmul.f32 %v1050, 0.35355338
    %v1207 = vmul.f32 %v1124, 0.35355338
    %v1208 = vmul.f32 %v1198, 0.35355338
    %v1211 = vlaneseq
    %v1212 = vshrl.u32 %v1211, 7
    %v1213 = vsub.s32 0, %v1212
    %v1214 = vrot.slane %v294, %v1213
    %v1215 = vlaneseq
    %v1216 = vshrl.u32 %v1215, 7
    %v1217 = vsub.s32 0, %v1216
    %v1218 = vrot.slane %v295, %v1217
    %v1221 = vadd.f32 %v1201, %v1214
    %v1222 = vadd.f32 %v1202, %v1218
    %v1223 = vadd.f32 %v1203, %v1214
    %v1224 = vadd.f32 %v1204, %v1218
    %v1225 = vadd.f32 %v1205, %v1214
    %v1226 = vadd.f32 %v1206, %v1218
    %v1227 = vadd.f32 %v1207, %v1214
    %v1228 = vadd.f32 %v1208, %v1218
    %v1229 = vsel %vm608, %v1221, -inf
    %1230 = vmax.xlane.f32.xlu0 %v1229
    %v1231 = vpop.xlane.xlu0 %1230
    %v1232 = vsel %vm608, %v1222, -inf
    %1233 = vmax.xlane.f32.xlu0 %v1232
    %v1234 = vpop.xlane.xlu0 %1233
    %v1235 = vsel %vm608, %v1223, -inf
    %1236 = vmax.xlane.f32.xlu0 %v1235
    %v1237 = vpop.xlane.xlu0 %1236
    %v1238 = vsel %vm608, %v1224, -inf
    %1239 = vmax.xlane.f32.xlu0 %v1238
    %v1240 = vpop.xlane.xlu0 %1239
    %v1241 = vsel %vm608, %v1225, -inf
    %1242 = vmax.xlane.f32.xlu0 %v1241
    %v1243 = vpop.xlane.xlu0 %1242
    %v1244 = vsel %vm608, %v1226, -inf
    %1245 = vmax.xlane.f32.xlu0 %v1244
    %v1246 = vpop.xlane.xlu0 %1245
    %v1247 = vsel %vm608, %v1227, -inf
    %1248 = vmax.xlane.f32.xlu0 %v1247
    %v1249 = vpop.xlane.xlu0 %1248
    %v1250 = vsel %vm608, %v1228, -inf
    %1251 = vmax.xlane.f32.xlu0 %v1250
    %v1252 = vpop.xlane.xlu0 %1251
    %v1253 = vsub.f32 %v1221, %v1231
    %v1254 = vsub.f32 %v1222, %v1234
    %v1255 = vsub.f32 %v1223, %v1237
    %v1256 = vsub.f32 %v1224, %v1240
    %v1257 = vsub.f32 %v1225, %v1243
    %v1258 = vsub.f32 %v1226, %v1246
    %v1259 = vsub.f32 %v1227, %v1249
    %v1260 = vsub.f32 %v1228, %v1252
    %v1261 = vmul.f32 %v1253, 1.442695
    %v1262 = vpow.pop %v1261
    %v1263 = vmul.f32 %v1254, 1.442695
    %v1264 = vpow.pop %v1263
    %v1265 = vmul.f32 %v1255, 1.442695
    %v1266 = vpow.pop %v1265
    %v1267 = vmul.f32 %v1256, 1.442695
    %v1268 = vpow.pop %v1267
    %v1269 = vmul.f32 %v1257, 1.442695
    %v1270 = vpow.pop %v1269
    %v1271 = vmul.f32 %v1258, 1.442695
    %v1272 = vpow.pop %v1271
    %v1273 = vmul.f32 %v1259, 1.442695
    %v1274 = vpow.pop %v1273
    %v1275 = vmul.f32 %v1260, 1.442695
    %v1276 = vpow.pop %v1275
    %v1277 = vsel %vm608, %v1262, 0.0
    %1278 = vadd.xlane.f32.xlu0 %v1277
    %v1279 = vpop.xlane.xlu0 %1278
    %v1280 = vsel %vm608, %v1264, 0.0
    %1281 = vadd.xlane.f32.xlu0 %v1280
    %v1282 = vpop.xlane.xlu0 %1281
    %v1283 = vsel %vm608, %v1266, 0.0
    %1284 = vadd.xlane.f32.xlu0 %v1283
    %v1285 = vpop.xlane.xlu0 %1284
    %v1286 = vsel %vm608, %v1268, 0.0
    %1287 = vadd.xlane.f32.xlu0 %v1286
    %v1288 = vpop.xlane.xlu0 %1287
    %v1289 = vsel %vm608, %v1270, 0.0
    %1290 = vadd.xlane.f32.xlu0 %v1289
    %v1291 = vpop.xlane.xlu0 %1290
    %v1292 = vsel %vm608, %v1272, 0.0
    %1293 = vadd.xlane.f32.xlu0 %v1292
    %v1294 = vpop.xlane.xlu0 %1293
    %v1295 = vsel %vm608, %v1274, 0.0
    %1296 = vadd.xlane.f32.xlu0 %v1295
    %v1297 = vpop.xlane.xlu0 %1296
    %v1298 = vsel %vm608, %v1276, 0.0
    %1299 = vadd.xlane.f32.xlu0 %v1298
    %v1300 = vpop.xlane.xlu0 %1299
    %v1301 = vrcp.pop %v1279
    %v1302 = vrcp.pop %v1282
    %v1303 = vrcp.pop %v1285
    %v1304 = vrcp.pop %v1288
    %v1305 = vrcp.pop %v1291
    %v1306 = vrcp.pop %v1294
    %v1307 = vrcp.pop %v1297
    %v1308 = vrcp.pop %v1300
    %v1309 = vmul.f32 %v1262, %v1301
    %v1310 = vmul.f32 %v1264, %v1302
    %v1311 = vmul.f32 %v1266, %v1303
    %v1312 = vmul.f32 %v1268, %v1304
    %v1313 = vmul.f32 %v1270, %v1305
    %v1314 = vmul.f32 %v1272, %v1306
    %v1315 = vmul.f32 %v1274, %v1307
    %v1316 = vmul.f32 %v1276, %v1308
    %v1318 = vsel %vm608, %v1309, 0
    %1320 = vmatprep.subr.mxu0 0.0
    %1321 = vmatpush1.msra.mxu0 %v552
    %1322 = vmatprep.subr.mxu0 0.0
    %1323 = vmatpush1.msra.mxu0 0.0
    %1324 = vmatprep.subr.mxu0 0.0
    %1325 = vmatpush1.msra.mxu0 0.0
    %1326 = vmatprep.subr.mxu0 0.0
    %1327 = vmatpush1.msra.mxu0 0.0
    %1328 = vmatprep.subr.mxu0 0.0
    %1329 = vmatpush1.msra.mxu0 0.0
    %1330 = vmatprep.subr.mxu0 0.0
    %1331 = vmatpush1.msra.mxu0 0.0
    %1332 = vmatprep.subr.mxu0 0.0
    %1333 = vmatpush1.msra.mxu0 0.0
    %1334 = vmatprep.subr.mxu0 0.0
    %1335 = vmatpush1.msra.mxu0 0.0
    %1336 = vmatprep.subr.mxu0 0.0
    %1337 = vmatpush1.msra.mxu0 0.0
    %1338 = vmatprep.subr.mxu0 0.0
    %1339 = vmatpush1.msra.mxu0 0.0
    %1340 = vmatprep.subr.mxu0 0.0
    %1341 = vmatpush1.msra.mxu0 0.0
    %1342 = vmatprep.subr.mxu0 0.0
    %1343 = vmatpush1.msra.mxu0 0.0
    %1344 = vmatprep.subr.mxu0 0.0
    %1345 = vmatpush1.msra.mxu0 0.0
    %1346 = vmatprep.subr.mxu0 0.0
    %1347 = vmatpush1.msra.mxu0 0.0
    %1348 = vmatprep.subr.mxu0 0.0
    %1349 = vmatpush1.msra.mxu0 0.0
    %1350 = vmatprep.subr.mxu0 0.0
    %1351 = vmatpush1.msra.mxu0 0.0
    %1352 = vmatprep.subr.mxu0 0.0
    %1353 = vmatpush1.msra.mxu0 0.0
    %1354 = vmatprep.subr.mxu0 0.0
    %1355 = vmatpush1.msra.mxu0 0.0
    %1356 = vmatprep.subr.mxu0 0.0
    %1357 = vmatpush1.msra.mxu0 0.0
    %1358 = vmatprep.subr.mxu0 0.0
    %1359 = vmatpush1.msra.mxu0 0.0
    %1360 = vmatprep.subr.mxu0 0.0
    %1361 = vmatpush1.msra.mxu0 0.0
    %1362 = vmatprep.subr.mxu0 0.0
    %1363 = vmatpush1.msra.mxu0 0.0
    %1364 = vmatprep.subr.mxu0 0.0
    %1365 = vmatpush1.msra.mxu0 0.0
    %1366 = vmatprep.subr.mxu0 0.0
    %1367 = vmatpush1.msra.mxu0 0.0
    %1368 = vmatprep.subr.mxu0 0.0
    %1369 = vmatpush1.msra.mxu0 0.0
    %1370 = vmatprep.subr.mxu0 0.0
    %1371 = vmatpush1.msra.mxu0 0.0
    %1372 = vmatprep.subr.mxu0 0.0
    %1373 = vmatpush1.msra.mxu0 0.0
    %1374 = vmatprep.subr.mxu0 0.0
    %1375 = vmatpush1.msra.mxu0 0.0
    %1376 = vmatprep.subr.mxu0 0.0
    %1377 = vmatpush1.msra.mxu0 0.0
    %1378 = vmatprep.subr.mxu0 0.0
    %1379 = vmatpush1.msra.mxu0 0.0
    %1380 = vmatprep.subr.mxu0 0.0
    %1381 = vmatpush1.msra.mxu0 0.0
    %1382 = vmatprep.subr.mxu0 0.0
    %1383 = vmatpush1.msra.mxu0 0.0
    %1384 = vmatprep.mubr.f32.mxu0 0.0
    %1385 = vmatmul.mubr.f32.gmra.mrb[0].mxu0 %v1318
    %v1386 = vpop.f32.mrb[0].mxu0
    %v1387 = vadd.f32 0.0, %v1386
    %v1388 = vpop.f32.mrb[0].mxu0
    %1389 = vdwg.mxu0
    %v1391 = vsel %vm608, %v1310, 0
    %1393 = vmatprep.subr.mxu0 0.0
    %1394 = vmatpush1.msra.mxu0 %v557
    %1395 = vmatprep.subr.mxu0 0.0
    %1396 = vmatpush1.msra.mxu0 0.0
    %1397 = vmatprep.subr.mxu0 0.0
    %1398 = vmatpush1.msra.mxu0 0.0
    %1399 = vmatprep.subr.mxu0 0.0
    %1400 = vmatpush1.msra.mxu0 0.0
    %1401 = vmatprep.subr.mxu0 0.0
    %1402 = vmatpush1.msra.mxu0 0.0
    %1403 = vmatprep.subr.mxu0 0.0
    %1404 = vmatpush1.msra.mxu0 0.0
    %1405 = vmatprep.subr.mxu0 0.0
    %1406 = vmatpush1.msra.mxu0 0.0
    %1407 = vmatprep.subr.mxu0 0.0
    %1408 = vmatpush1.msra.mxu0 0.0
    %1409 = vmatprep.subr.mxu0 0.0
    %1410 = vmatpush1.msra.mxu0 0.0
    %1411 = vmatprep.subr.mxu0 0.0
    %1412 = vmatpush1.msra.mxu0 0.0
    %1413 = vmatprep.subr.mxu0 0.0
    %1414 = vmatpush1.msra.mxu0 0.0
    %1415 = vmatprep.subr.mxu0 0.0
    %1416 = vmatpush1.msra.mxu0 0.0
    %1417 = vmatprep.subr.mxu0 0.0
    %1418 = vmatpush1.msra.mxu0 0.0
    %1419 = vmatprep.subr.mxu0 0.0
    %1420 = vmatpush1.msra.mxu0 0.0
    %1421 = vmatprep.subr.mxu0 0.0
    %1422 = vmatpush1.msra.mxu0 0.0
    %1423 = vmatprep.subr.mxu0 0.0
    %1424 = vmatpush1.msra.mxu0 0.0
    %1425 = vmatprep.subr.mxu0 0.0
    %1426 = vmatpush1.msra.mxu0 0.0
    %1427 = vmatprep.subr.mxu0 0.0
    %1428 = vmatpush1.msra.mxu0 0.0
    %1429 = vmatprep.subr.mxu0 0.0
    %1430 = vmatpush1.msra.mxu0 0.0
    %1431 = vmatprep.subr.mxu0 0.0
    %1432 = vmatpush1.msra.mxu0 0.0
    %1433 = vmatprep.subr.mxu0 0.0
    %1434 = vmatpush1.msra.mxu0 0.0
    %1435 = vmatprep.subr.mxu0 0.0
    %1436 = vmatpush1.msra.mxu0 0.0
    %1437 = vmatprep.subr.mxu0 0.0
    %1438 = vmatpush1.msra.mxu0 0.0
    %1439 = vmatprep.subr.mxu0 0.0
    %1440 = vmatpush1.msra.mxu0 0.0
    %1441 = vmatprep.subr.mxu0 0.0
    %1442 = vmatpush1.msra.mxu0 0.0
    %1443 = vmatprep.subr.mxu0 0.0
    %1444 = vmatpush1.msra.mxu0 0.0
    %1445 = vmatprep.subr.mxu0 0.0
    %1446 = vmatpush1.msra.mxu0 0.0
    %1447 = vmatprep.subr.mxu0 0.0
    %1448 = vmatpush1.msra.mxu0 0.0
    %1449 = vmatprep.subr.mxu0 0.0
    %1450 = vmatpush1.msra.mxu0 0.0
    %1451 = vmatprep.subr.mxu0 0.0
    %1452 = vmatpush1.msra.mxu0 0.0
    %1453 = vmatprep.subr.mxu0 0.0
    %1454 = vmatpush1.msra.mxu0 0.0
    %1455 = vmatprep.subr.mxu0 0.0
    %1456 = vmatpush1.msra.mxu0 0.0
    %1457 = vmatprep.mubr.f32.mxu0 0.0
    %1458 = vmatmul.mubr.f32.gmra.mrb[0].mxu0 %v1391
    %v1459 = vpop.f32.mrb[0].mxu0
    %v1460 = vadd.f32 0.0, %v1459
    %v1461 = vpop.f32.mrb[0].mxu0
    %1462 = vdwg.mxu0
    %v1464 = vsel %vm608, %v1311, 0
    %1466 = vmatprep.subr.mxu0 0.0
    %1467 = vmatpush1.msra.mxu0 %v591
    %1468 = vmatprep.subr.mxu0 0.0
    %1469 = vmatpush1.msra.mxu0 0.0
    %1470 = vmatprep.subr.mxu0 0.0
    %1471 = vmatpush1.msra.mxu0 0.0
    %1472 = vmatprep.subr.mxu0 0.0
    %1473 = vmatpush1.msra.mxu0 0.0
    %1474 = vmatprep.subr.mxu0 0.0
    %1475 = vmatpush1.msra.mxu0 0.0
    %1476 = vmatprep.subr.mxu0 0.0
    %1477 = vmatpush1.msra.mxu0 0.0
    %1478 = vmatprep.subr.mxu0 0.0
    %1479 = vmatpush1.msra.mxu0 0.0
    %1480 = vmatprep.subr.mxu0 0.0
    %1481 = vmatpush1.msra.mxu0 0.0
    %1482 = vmatprep.subr.mxu0 0.0
    %1483 = vmatpush1.msra.mxu0 0.0
    %1484 = vmatprep.subr.mxu0 0.0
    %1485 = vmatpush1.msra.mxu0 0.0
    %1486 = vmatprep.subr.mxu0 0.0
    %1487 = vmatpush1.msra.mxu0 0.0
    %1488 = vmatprep.subr.mxu0 0.0
    %1489 = vmatpush1.msra.mxu0 0.0
    %1490 = vmatprep.subr.mxu0 0.0
    %1491 = vmatpush1.msra.mxu0 0.0
    %1492 = vmatprep.subr.mxu0 0.0
    %1493 = vmatpush1.msra.mxu0 0.0
    %1494 = vmatprep.subr.mxu0 0.0
    %1495 = vmatpush1.msra.mxu0 0.0
    %1496 = vmatprep.subr.mxu0 0.0
    %1497 = vmatpush1.msra.mxu0 0.0
    %1498 = vmatprep.subr.mxu0 0.0
    %1499 = vmatpush1.msra.mxu0 0.0
    %1500 = vmatprep.subr.mxu0 0.0
    %1501 = vmatpush1.msra.mxu0 0.0
    %1502 = vmatprep.subr.mxu0 0.0
    %1503 = vmatpush1.msra.mxu0 0.0
    %1504 = vmatprep.subr.mxu0 0.0
    %1505 = vmatpush1.msra.mxu0 0.0
    %1506 = vmatprep.subr.mxu0 0.0
    %1507 = vmatpush1.msra.mxu0 0.0
    %1508 = vmatprep.subr.mxu0 0.0
    %1509 = vmatpush1.msra.mxu0 0.0
    %1510 = vmatprep.subr.mxu0 0.0
    %1511 = vmatpush1.msra.mxu0 0.0
    %1512 = vmatprep.subr.mxu0 0.0
    %1513 = vmatpush1.msra.mxu0 0.0
    %1514 = vmatprep.subr.mxu0 0.0
    %1515 = vmatpush1.msra.mxu0 0.0
    %1516 = vmatprep.subr.mxu0 0.0
    %1517 = vmatpush1.msra.mxu0 0.0
    %1518 = vmatprep.subr.mxu0 0.0
    %1519 = vmatpush1.msra.mxu0 0.0
    %1520 = vmatprep.subr.mxu0 0.0
    %1521 = vmatpush1.msra.mxu0 0.0
    %1522 = vmatprep.subr.mxu0 0.0
    %1523 = vmatpush1.msra.mxu0 0.0
    %1524 = vmatprep.subr.mxu0 0.0
    %1525 = vmatpush1.msra.mxu0 0.0
    %1526 = vmatprep.subr.mxu0 0.0
    %1527 = vmatpush1.msra.mxu0 0.0
    %1528 = vmatprep.subr.mxu0 0.0
    %1529 = vmatpush1.msra.mxu0 0.0
    %1530 = vmatprep.mubr.f32.mxu0 0.0
    %1531 = vmatmul.mubr.f32.gmra.mrb[0].mxu0 %v1464
    %v1532 = vpop.f32.mrb[0].mxu0
    %v1533 = vadd.f32 0.0, %v1532
    %v1534 = vpop.f32.mrb[0].mxu0
    %1535 = vdwg.mxu0
    %v1537 = vsel %vm608, %v1312, 0
    %1539 = vmatprep.subr.mxu0 0.0
    %1540 = vmatpush1.msra.mxu0 %v593
    %1541 = vmatprep.subr.mxu0 0.0
    %1542 = vmatpush1.msra.mxu0 0.0
    %1543 = vmatprep.subr.mxu0 0.0
    %1544 = vmatpush1.msra.mxu0 0.0
    %1545 = vmatprep.subr.mxu0 0.0
    %1546 = vmatpush1.msra.mxu0 0.0
    %1547 = vmatprep.subr.mxu0 0.0
    %1548 = vmatpush1.msra.mxu0 0.0
    %1549 = vmatprep.subr.mxu0 0.0
    %1550 = vmatpush1.msra.mxu0 0.0
    %1551 = vmatprep.subr.mxu0 0.0
    %1552 = vmatpush1.msra.mxu0 0.0
    %1553 = vmatprep.subr.mxu0 0.0
    %1554 = vmatpush1.msra.mxu0 0.0
    %1555 = vmatprep.subr.mxu0 0.0
    %1556 = vmatpush1.msra.mxu0 0.0
    %1557 = vmatprep.subr.mxu0 0.0
    %1558 = vmatpush1.msra.mxu0 0.0
    %1559 = vmatprep.subr.mxu0 0.0
    %1560 = vmatpush1.msra.mxu0 0.0
    %1561 = vmatprep.subr.mxu0 0.0
    %1562 = vmatpush1.msra.mxu0 0.0
    %1563 = vmatprep.subr.mxu0 0.0
    %1564 = vmatpush1.msra.mxu0 0.0
    %1565 = vmatprep.subr.mxu0 0.0
    %1566 = vmatpush1.msra.mxu0 0.0
    %1567 = vmatprep.subr.mxu0 0.0
    %1568 = vmatpush1.msra.mxu0 0.0
    %1569 = vmatprep.subr.mxu0 0.0
    %1570 = vmatpush1.msra.mxu0 0.0
    %1571 = vmatprep.subr.mxu0 0.0
    %1572 = vmatpush1.msra.mxu0 0.0
    %1573 = vmatprep.subr.mxu0 0.0
    %1574 = vmatpush1.msra.mxu0 0.0
    %1575 = vmatprep.subr.mxu0 0.0
    %1576 = vmatpush1.msra.mxu0 0.0
    %1577 = vmatprep.subr.mxu0 0.0
    %1578 = vmatpush1.msra.mxu0 0.0
    %1579 = vmatprep.subr.mxu0 0.0
    %1580 = vmatpush1.msra.mxu0 0.0
    %1581 = vmatprep.subr.mxu0 0.0
    %1582 = vmatpush1.msra.mxu0 0.0
    %1583 = vmatprep.subr.mxu0 0.0
    %1584 = vmatpush1.msra.mxu0 0.0
    %1585 = vmatprep.subr.mxu0 0.0
    %1586 = vmatpush1.msra.mxu0 0.0
    %1587 = vmatprep.subr.mxu0 0.0
    %1588 = vmatpush1.msra.mxu0 0.0
    %1589 = vmatprep.subr.mxu0 0.0
    %1590 = vmatpush1.msra.mxu0 0.0
    %1591 = vmatprep.subr.mxu0 0.0
    %1592 = vmatpush1.msra.mxu0 0.0
    %1593 = vmatprep.subr.mxu0 0.0
    %1594 = vmatpush1.msra.mxu0 0.0
    %1595 = vmatprep.subr.mxu0 0.0
    %1596 = vmatpush1.msra.mxu0 0.0
    %1597 = vmatprep.subr.mxu0 0.0
    %1598 = vmatpush1.msra.mxu0 0.0
    %1599 = vmatprep.subr.mxu0 0.0
    %1600 = vmatpush1.msra.mxu0 0.0
    %1601 = vmatprep.subr.mxu0 0.0
    %1602 = vmatpush1.msra.mxu0 0.0
    %1603 = vmatprep.mubr.f32.mxu0 0.0
    %1604 = vmatmul.mubr.f32.gmra.mrb[0].mxu0 %v1537
    %v1605 = vpop.f32.mrb[0].mxu0
    %v1606 = vadd.f32 0.0, %v1605
    %v1607 = vpop.f32.mrb[0].mxu0
    %1608 = vdwg.mxu0
    %v1610 = vsel %vm608, %v1313, 0
    %1612 = vmatprep.subr.mxu0 0.0
    %1613 = vmatpush1.msra.mxu0 %v597
    %1614 = vmatprep.subr.mxu0 0.0
    %1615 = vmatpush1.msra.mxu0 0.0
    %1616 = vmatprep.subr.mxu0 0.0
    %1617 = vmatpush1.msra.mxu0 0.0
    %1618 = vmatprep.subr.mxu0 0.0
    %1619 = vmatpush1.msra.mxu0 0.0
    %1620 = vmatprep.subr.mxu0 0.0
    %1621 = vmatpush1.msra.mxu0 0.0
    %1622 = vmatprep.subr.mxu0 0.0
    %1623 = vmatpush1.msra.mxu0 0.0
    %1624 = vmatprep.subr.mxu0 0.0
    %1625 = vmatpush1.msra.mxu0 0.0
    %1626 = vmatprep.subr.mxu0 0.0
    %1627 = vmatpush1.msra.mxu0 0.0
    %1628 = vmatprep.subr.mxu0 0.0
    %1629 = vmatpush1.msra.mxu0 0.0
    %1630 = vmatprep.subr.mxu0 0.0
    %1631 = vmatpush1.msra.mxu0 0.0
    %1632 = vmatprep.subr.mxu0 0.0
    %1633 = vmatpush1.msra.mxu0 0.0
    %1634 = vmatprep.subr.mxu0 0.0
    %1635 = vmatpush1.msra.mxu0 0.0
    %1636 = vmatprep.subr.mxu0 0.0
    %1637 = vmatpush1.msra.mxu0 0.0
    %1638 = vmatprep.subr.mxu0 0.0
    %1639 = vmatpush1.msra.mxu0 0.0
    %1640 = vmatprep.subr.mxu0 0.0
    %1641 = vmatpush1.msra.mxu0 0.0
    %1642 = vmatprep.subr.mxu0 0.0
    %1643 = vmatpush1.msra.mxu0 0.0
    %1644 = vmatprep.subr.mxu0 0.0
    %1645 = vmatpush1.msra.mxu0 0.0
    %1646 = vmatprep.subr.mxu0 0.0
    %1647 = vmatpush1.msra.mxu0 0.0
    %1648 = vmatprep.subr.mxu0 0.0
    %1649 = vmatpush1.msra.mxu0 0.0
    %1650 = vmatprep.subr.mxu0 0.0
    %1651 = vmatpush1.msra.mxu0 0.0
    %1652 = vmatprep.subr.mxu0 0.0
    %1653 = vmatpush1.msra.mxu0 0.0
    %1654 = vmatprep.subr.mxu0 0.0
    %1655 = vmatpush1.msra.mxu0 0.0
    %1656 = vmatprep.subr.mxu0 0.0
    %1657 = vmatpush1.msra.mxu0 0.0
    %1658 = vmatprep.subr.mxu0 0.0
    %1659 = vmatpush1.msra.mxu0 0.0
    %1660 = vmatprep.subr.mxu0 0.0
    %1661 = vmatpush1.msra.mxu0 0.0
    %1662 = vmatprep.subr.mxu0 0.0
    %1663 = vmatpush1.msra.mxu0 0.0
    %1664 = vmatprep.subr.mxu0 0.0
    %1665 = vmatpush1.msra.mxu0 0.0
    %1666 = vmatprep.subr.mxu0 0.0
    %1667 = vmatpush1.msra.mxu0 0.0
    %1668 = vmatprep.subr.mxu0 0.0
    %1669 = vmatpush1.msra.mxu0 0.0
    %1670 = vmatprep.subr.mxu0 0.0
    %1671 = vmatpush1.msra.mxu0 0.0
    %1672 = vmatprep.subr.mxu0 0.0
    %1673 = vmatpush1.msra.mxu0 0.0
    %1674 = vmatprep.subr.mxu0 0.0
    %1675 = vmatpush1.msra.mxu0 0.0
    %1676 = vmatprep.mubr.f32.mxu0 0.0
    %1677 = vmatmul.mubr.f32.gmra.mrb[0].mxu0 %v1610
    %v1678 = vpop.f32.mrb[0].mxu0
    %v1679 = vadd.f32 0.0, %v1678
    %v1680 = vpop.f32.mrb[0].mxu0
    %1681 = vdwg.mxu0
    %v1683 = vsel %vm608, %v1314, 0
    %1685 = vmatprep.subr.mxu0 0.0
    %1686 = vmatpush1.msra.mxu0 %v599
    %1687 = vmatprep.subr.mxu0 0.0
    %1688 = vmatpush1.msra.mxu0 0.0
    %1689 = vmatprep.subr.mxu0 0.0
    %1690 = vmatpush1.msra.mxu0 0.0
    %1691 = vmatprep.subr.mxu0 0.0
    %1692 = vmatpush1.msra.mxu0 0.0
    %1693 = vmatprep.subr.mxu0 0.0
    %1694 = vmatpush1.msra.mxu0 0.0
    %1695 = vmatprep.subr.mxu0 0.0
    %1696 = vmatpush1.msra.mxu0 0.0
    %1697 = vmatprep.subr.mxu0 0.0
    %1698 = vmatpush1.msra.mxu0 0.0
    %1699 = vmatprep.subr.mxu0 0.0
    %1700 = vmatpush1.msra.mxu0 0.0
    %1701 = vmatprep.subr.mxu0 0.0
    %1702 = vmatpush1.msra.mxu0 0.0
    %1703 = vmatprep.subr.mxu0 0.0
    %1704 = vmatpush1.msra.mxu0 0.0
    %1705 = vmatprep.subr.mxu0 0.0
    %1706 = vmatpush1.msra.mxu0 0.0
    %1707 = vmatprep.subr.mxu0 0.0
    %1708 = vmatpush1.msra.mxu0 0.0
    %1709 = vmatprep.subr.mxu0 0.0
    %1710 = vmatpush1.msra.mxu0 0.0
    %1711 = vmatprep.subr.mxu0 0.0
    %1712 = vmatpush1.msra.mxu0 0.0
    %1713 = vmatprep.subr.mxu0 0.0
    %1714 = vmatpush1.msra.mxu0 0.0
    %1715 = vmatprep.subr.mxu0 0.0
    %1716 = vmatpush1.msra.mxu0 0.0
    %1717 = vmatprep.subr.mxu0 0.0
    %1718 = vmatpush1.msra.mxu0 0.0
    %1719 = vmatprep.subr.mxu0 0.0
    %1720 = vmatpush1.msra.mxu0 0.0
    %1721 = vmatprep.subr.mxu0 0.0
    %1722 = vmatpush1.msra.mxu0 0.0
    %1723 = vmatprep.subr.mxu0 0.0
    %1724 = vmatpush1.msra.mxu0 0.0
    %1725 = vmatprep.subr.mxu0 0.0
    %1726 = vmatpush1.msra.mxu0 0.0
    %1727 = vmatprep.subr.mxu0 0.0
    %1728 = vmatpush1.msra.mxu0 0.0
    %1729 = vmatprep.subr.mxu0 0.0
    %1730 = vmatpush1.msra.mxu0 0.0
    %1731 = vmatprep.subr.mxu0 0.0
    %1732 = vmatpush1.msra.mxu0 0.0
    %1733 = vmatprep.subr.mxu0 0.0
    %1734 = vmatpush1.msra.mxu0 0.0
    %1735 = vmatprep.subr.mxu0 0.0
    %1736 = vmatpush1.msra.mxu0 0.0
    %1737 = vmatprep.subr.mxu0 0.0
    %1738 = vmatpush1.msra.mxu0 0.0
    %1739 = vmatprep.subr.mxu0 0.0
    %1740 = vmatpush1.msra.mxu0 0.0
    %1741 = vmatprep.subr.mxu0 0.0
    %1742 = vmatpush1.msra.mxu0 0.0
    %1743 = vmatprep.subr.mxu0 0.0
    %1744 = vmatpush1.msra.mxu0 0.0
    %1745 = vmatprep.subr.mxu0 0.0
    %1746 = vmatpush1.msra.mxu0 0.0
    %1747 = vmatprep.subr.mxu0 0.0
    %1748 = vmatpush1.msra.mxu0 0.0
    %1749 = vmatprep.mubr.f32.mxu0 0.0
    %1750 = vmatmul.mubr.f32.gmra.mrb[0].mxu0 %v1683
    %v1751 = vpop.f32.mrb[0].mxu0
    %v1752 = vadd.f32 0.0, %v1751
    %v1753 = vpop.f32.mrb[0].mxu0
    %1754 = vdwg.mxu0
    %v1756 = vsel %vm608, %v1315, 0
    %1758 = vmatprep.subr.mxu0 0.0
    %1759 = vmatpush1.msra.mxu0 %v603
    %1760 = vmatprep.subr.mxu0 0.0
    %1761 = vmatpush1.msra.mxu0 0.0
    %1762 = vmatprep.subr.mxu0 0.0
    %1763 = vmatpush1.msra.mxu0 0.0
    %1764 = vmatprep.subr.mxu0 0.0
    %1765 = vmatpush1.msra.mxu0 0.0
    %1766 = vmatprep.subr.mxu0 0.0
    %1767 = vmatpush1.msra.mxu0 0.0
    %1768 = vmatprep.subr.mxu0 0.0
    %1769 = vmatpush1.msra.mxu0 0.0
    %1770 = vmatprep.subr.mxu0 0.0
    %1771 = vmatpush1.msra.mxu0 0.0
    %1772 = vmatprep.subr.mxu0 0.0
    %1773 = vmatpush1.msra.mxu0 0.0
    %1774 = vmatprep.subr.mxu0 0.0
    %1775 = vmatpush1.msra.mxu0 0.0
    %1776 = vmatprep.subr.mxu0 0.0
    %1777 = vmatpush1.msra.mxu0 0.0
    %1778 = vmatprep.subr.mxu0 0.0
    %1779 = vmatpush1.msra.mxu0 0.0
    %1780 = vmatprep.subr.mxu0 0.0
    %1781 = vmatpush1.msra.mxu0 0.0
    %1782 = vmatprep.subr.mxu0 0.0
    %1783 = vmatpush1.msra.mxu0 0.0
    %1784 = vmatprep.subr.mxu0 0.0
    %1785 = vmatpush1.msra.mxu0 0.0
    %1786 = vmatprep.subr.mxu0 0.0
    %1787 = vmatpush1.msra.mxu0 0.0
    %1788 = vmatprep.subr.mxu0 0.0
    %1789 = vmatpush1.msra.mxu0 0.0
    %1790 = vmatprep.subr.mxu0 0.0
    %1791 = vmatpush1.msra.mxu0 0.0
    %1792 = vmatprep.subr.mxu0 0.0
    %1793 = vmatpush1.msra.mxu0 0.0
    %1794 = vmatprep.subr.mxu0 0.0
    %1795 = vmatpush1.msra.mxu0 0.0
    %1796 = vmatprep.subr.mxu0 0.0
    %1797 = vmatpush1.msra.mxu0 0.0
    %1798 = vmatprep.subr.mxu0 0.0
    %1799 = vmatpush1.msra.mxu0 0.0
    %1800 = vmatprep.subr.mxu0 0.0
    %1801 = vmatpush1.msra.mxu0 0.0
    %1802 = vmatprep.subr.mxu0 0.0
    %1803 = vmatpush1.msra.mxu0 0.0
    %1804 = vmatprep.subr.mxu0 0.0
    %1805 = vmatpush1.msra.mxu0 0.0
    %1806 = vmatprep.subr.mxu0 0.0
    %1807 = vmatpush1.msra.mxu0 0.0
    %1808 = vmatprep.subr.mxu0 0.0
    %1809 = vmatpush1.msra.mxu0 0.0
    %1810 = vmatprep.subr.mxu0 0.0
    %1811 = vmatpush1.msra.mxu0 0.0
    %1812 = vmatprep.subr.mxu0 0.0
    %1813 = vmatpush1.msra.mxu0 0.0
    %1814 = vmatprep.subr.mxu0 0.0
    %1815 = vmatpush1.msra.mxu0 0.0
    %1816 = vmatprep.subr.mxu0 0.0
    %1817 = vmatpush1.msra.mxu0 0.0
    %1818 = vmatprep.subr.mxu0 0.0
    %1819 = vmatpush1.msra.mxu0 0.0
    %1820 = vmatprep.subr.mxu0 0.0
    %1821 = vmatpush1.msra.mxu0 0.0
    %1822 = vmatprep.mubr.f32.mxu0 0.0
    %1823 = vmatmul.mubr.f32.gmra.mrb[0].mxu0 %v1756
    %v1824 = vpop.f32.mrb[0].mxu0
    %v1825 = vadd.f32 0.0, %v1824
    %v1826 = vpop.f32.mrb[0].mxu0
    %1827 = vdwg.mxu0
    %v1829 = vsel %vm608, %v1316, 0
    %1831 = vmatprep.subr.mxu0 0.0
    %1832 = vmatpush1.msra.mxu0 %v605
    %1833 = vmatprep.subr.mxu0 0.0
    %1834 = vmatpush1.msra.mxu0 0.0
    %1835 = vmatprep.subr.mxu0 0.0
    %1836 = vmatpush1.msra.mxu0 0.0
    %1837 = vmatprep.subr.mxu0 0.0
    %1838 = vmatpush1.msra.mxu0 0.0
    %1839 = vmatprep.subr.mxu0 0.0
    %1840 = vmatpush1.msra.mxu0 0.0
    %1841 = vmatprep.subr.mxu0 0.0
    %1842 = vmatpush1.msra.mxu0 0.0
    %1843 = vmatprep.subr.mxu0 0.0
    %1844 = vmatpush1.msra.mxu0 0.0
    %1845 = vmatprep.subr.mxu0 0.0
    %1846 = vmatpush1.msra.mxu0 0.0
    %1847 = vmatprep.subr.mxu0 0.0
    %1848 = vmatpush1.msra.mxu0 0.0
    %1849 = vmatprep.subr.mxu0 0.0
    %1850 = vmatpush1.msra.mxu0 0.0
    %1851 = vmatprep.subr.mxu0 0.0
    %1852 = vmatpush1.msra.mxu0 0.0
    %1853 = vmatprep.subr.mxu0 0.0
    %1854 = vmatpush1.msra.mxu0 0.0
    %1855 = vmatprep.subr.mxu0 0.0
    %1856 = vmatpush1.msra.mxu0 0.0
    %1857 = vmatprep.subr.mxu0 0.0
    %1858 = vmatpush1.msra.mxu0 0.0
    %1859 = vmatprep.subr.mxu0 0.0
    %1860 = vmatpush1.msra.mxu0 0.0
    %1861 = vmatprep.subr.mxu0 0.0
    %1862 = vmatpush1.msra.mxu0 0.0
    %1863 = vmatprep.subr.mxu0 0.0
    %1864 = vmatpush1.msra.mxu0 0.0
    %1865 = vmatprep.subr.mxu0 0.0
    %1866 = vmatpush1.msra.mxu0 0.0
    %1867 = vmatprep.subr.mxu0 0.0
    %1868 = vmatpush1.msra.mxu0 0.0
    %1869 = vmatprep.subr.mxu0 0.0
    %1870 = vmatpush1.msra.mxu0 0.0
    %1871 = vmatprep.subr.mxu0 0.0
    %1872 = vmatpush1.msra.mxu0 0.0
    %1873 = vmatprep.subr.mxu0 0.0
    %1874 = vmatpush1.msra.mxu0 0.0
    %1875 = vmatprep.subr.mxu0 0.0
    %1876 = vmatpush1.msra.mxu0 0.0
    %1877 = vmatprep.subr.mxu0 0.0
    %1878 = vmatpush1.msra.mxu0 0.0
    %1879 = vmatprep.subr.mxu0 0.0
    %1880 = vmatpush1.msra.mxu0 0.0
    %1881 = vmatprep.subr.mxu0 0.0
    %1882 = vmatpush1.msra.mxu0 0.0
    %1883 = vmatprep.subr.mxu0 0.0
    %1884 = vmatpush1.msra.mxu0 0.0
    %1885 = vmatprep.subr.mxu0 0.0
    %1886 = vmatpush1.msra.mxu0 0.0
    %1887 = vmatprep.subr.mxu0 0.0
    %1888 = vmatpush1.msra.mxu0 0.0
    %1889 = vmatprep.subr.mxu0 0.0
    %1890 = vmatpush1.msra.mxu0 0.0
    %1891 = vmatprep.subr.mxu0 0.0
    %1892 = vmatpush1.msra.mxu0 0.0
    %1893 = vmatprep.subr.mxu0 0.0
    %1894 = vmatpush1.msra.mxu0 0.0
    %1895 = vmatprep.mubr.f32.mxu0 0.0
    %1896 = vmatmul.mubr.f32.gmra.mrb[0].mxu0 %v1829
    %v1897 = vpop.f32.mrb[0].mxu0
    %v1898 = vadd.f32 0.0, %v1897
    %v1899 = vpop.f32.mrb[0].mxu0
    %1900 = vdwg.mxu0
    %1903 = vrot.lane.b32.xlu0 %v1533, 8
    %v1904 = vpop.permute.xlu0 %1903
    %1905 = vrot.lane.b32.xlu0 %v1606, 8
    %v1906 = vpop.permute.xlu0 %1905
    %1911 = vrot.lane.b32.xlu0 %v1679, 16
    %v1912 = vpop.permute.xlu0 %1911
    %1913 = vrot.lane.b32.xlu0 %v1752, 16
    %v1914 = vpop.permute.xlu0 %1913
    %1919 = vrot.lane.b32.xlu0 %v1825, 24
    %v1920 = vpop.permute.xlu0 %1919
    %1921 = vrot.lane.b32.xlu0 %v1898, 24
    %v1922 = vpop.permute.xlu0 %1921
    %v1925 = vsel %vm608, %v1387, %v1904
    %v1926 = vsel %vm608, %v1460, %v1906
    %vm1927 = vcmask 130048
    %v1928 = vsel %vm1927, %v1925, %v1912
    %v1929 = vsel %vm1927, %v1926, %v1914
    %vm1930 = vcmask 195584
    %v1931 = vsel %vm1930, %v1928, %v1920
    %v1932 = vsel %vm1930, %v1929, %v1922
    %v1933 = vld [vmem:[%s14] sm:$0xff]
    %v1934 = vld [vmem:[%s14 + $0x8] sm:$0xff]
    %v1935 = vld [vmem:[%s14 + $0x10] sm:$0xff]
    %v1936 = vld [vmem:[%s14 + $0x18] sm:$0xff]
    %v1937 = vld [vmem:[%s15] sm:$0x1]
    %v1939 = vlaneseq
    %v1940 = vshrl.u32 %v1939, 7
    %v1941 = vsub.s32 0, %v1940
    %v1942 = vrot.slane %v1937, %v1941
    %v1945 = vsel %vm244, %v1931, 0
    %v1948 = vsel %vm244, %v1932, 0
    %1950 = vmatprep.subr.mxu0 0.0
    %1951 = vmatpush1.msra.mxu0 %v1933
    %1952 = vmatprep.subr.mxu0 0.0
    %1953 = vmatpush1.msra.mxu0 %v1934
    %1954 = vmatprep.subr.mxu0 0.0
    %1955 = vmatpush1.msra.mxu0 %v1935
    %1956 = vmatprep.subr.mxu0 0.0
    %1957 = vmatpush1.msra.mxu0 %v1936
    %1958 = vmatprep.subr.mxu0 0.0
    %1959 = vmatpush1.msra.mxu0 0.0
    %1960 = vmatprep.subr.mxu0 0.0
    %1961 = vmatpush1.msra.mxu0 0.0
    %1962 = vmatprep.subr.mxu0 0.0
    %1963 = vmatpush1.msra.mxu0 0.0
    %1964 = vmatprep.subr.mxu0 0.0
    %1965 = vmatpush1.msra.mxu0 0.0
    %1966 = vmatprep.subr.mxu0 0.0
    %1967 = vmatpush1.msra.mxu0 0.0
    %1968 = vmatprep.subr.mxu0 0.0
    %1969 = vmatpush1.msra.mxu0 0.0
    %1970 = vmatprep.subr.mxu0 0.0
    %1971 = vmatpush1.msra.mxu0 0.0
    %1972 = vmatprep.subr.mxu0 0.0
    %1973 = vmatpush1.msra.mxu0 0.0
    %1974 = vmatprep.subr.mxu0 0.0
    %1975 = vmatpush1.msra.mxu0 0.0
    %1976 = vmatprep.subr.mxu0 0.0
    %1977 = vmatpush1.msra.mxu0 0.0
    %1978 = vmatprep.subr.mxu0 0.0
    %1979 = vmatpush1.msra.mxu0 0.0
    %1980 = vmatprep.subr.mxu0 0.0
    %1981 = vmatpush1.msra.mxu0 0.0
    %1982 = vmatprep.subr.mxu0 0.0
    %1983 = vmatpush1.msra.mxu0 0.0
    %1984 = vmatprep.subr.mxu0 0.0
    %1985 = vmatpush1.msra.mxu0 0.0
    %1986 = vmatprep.subr.mxu0 0.0
    %1987 = vmatpush1.msra.mxu0 0.0
    %1988 = vmatprep.subr.mxu0 0.0
    %1989 = vmatpush1.msra.mxu0 0.0
    %1990 = vmatprep.subr.mxu0 0.0
    %1991 = vmatpush1.msra.mxu0 0.0
    %1992 = vmatprep.subr.mxu0 0.0
    %1993 = vmatpush1.msra.mxu0 0.0
    %1994 = vmatprep.subr.mxu0 0.0
    %1995 = vmatpush1.msra.mxu0 0.0
    %1996 = vmatprep.subr.mxu0 0.0
    %1997 = vmatpush1.msra.mxu0 0.0
    %1998 = vmatprep.subr.mxu0 0.0
    %1999 = vmatpush1.msra.mxu0 0.0
    %2000 = vmatprep.subr.mxu0 0.0
    %2001 = vmatpush1.msra.mxu0 0.0
    %2002 = vmatprep.subr.mxu0 0.0
    %2003 = vmatpush1.msra.mxu0 0.0
    %2004 = vmatprep.subr.mxu0 0.0
    %2005 = vmatpush1.msra.mxu0 0.0
    %2006 = vmatprep.subr.mxu0 0.0
    %2007 = vmatpush1.msra.mxu0 0.0
    %2008 = vmatprep.subr.mxu0 0.0
    %2009 = vmatpush1.msra.mxu0 0.0
    %2010 = vmatprep.subr.mxu0 0.0
    %2011 = vmatpush1.msra.mxu0 0.0
    %2012 = vmatprep.subr.mxu0 0.0
    %2013 = vmatpush1.msra.mxu0 0.0
    %2014 = vmatprep.mubr.f32.mxu0 0.0
    %2015 = vmatmul.mubr.f32.gmra.mrb[0].mxu0 %v1945
    %v2016 = vpop.f32.mrb[0].mxu0
    %v2017 = vadd.f32 %v1942, %v2016
    %v2018 = vpop.f32.mrb[0].mxu0
    %2019 = vmatprep.mubr.f32.mxu0 0.0
    %2020 = vmatmul.mubr.f32.gmra.mrb[0].mxu0 %v1948
    %v2021 = vpop.f32.mrb[0].mxu0
    %v2022 = vadd.f32 %v1942, %v2021
    %v2023 = vpop.f32.mrb[0].mxu0
    %2024 = vdwg.mxu0
    %v2025 = vadd.f32 %v286, %v2017
    %v2026 = vadd.f32 %v287, %v2022
    %v2027 = vld [vmem:[%s16] sm:$0x1]
    %v2028 = vld [vmem:[%s17] sm:$0x1]
    %v2029 = vsel %vm244, %v2025, 0.0
    %2030 = vadd.xlane.f32.xlu0 %v2029
    %v2031 = vpop.xlane.xlu0 %2030
    %v2032 = vsel %vm244, %v2026, 0.0
    %2033 = vadd.xlane.f32.xlu0 %v2032
    %v2034 = vpop.xlane.xlu0 %2033
    %v2035 = vmul.f32 %v2031, %v251
    %v2036 = vmul.f32 %v2034, %v251
    %v2037 = vsub.f32 %v2025, %v2035
    %v2038 = vsub.f32 %v2026, %v2036
    %v2039 = vmul.f32 %v2037, %v2037
    %v2040 = vmul.f32 %v2038, %v2038
    %v2041 = vsel %vm244, %v2039, 0.0
    %2042 = vadd.xlane.f32.xlu0 %v2041
    %v2043 = vpop.xlane.xlu0 %2042
    %v2044 = vsel %vm244, %v2040, 0.0
    %2045 = vadd.xlane.f32.xlu0 %v2044
    %v2046 = vpop.xlane.xlu0 %2045
    %v2047 = vmul.f32 %v2043, %v251
    %v2048 = vmul.f32 %v2046, %v251
    %v2049 = vadd.f32 %v2047, 1e-12
    %v2050 = vadd.f32 %v2048, 1e-12
    %v2051 = vrsqrt.pop %v2049
    %v2052 = vrsqrt.pop %v2050
    %v2053 = vmul.f32 %v2037, %v2051
    %v2054 = vmul.f32 %v2038, %v2052
    %v2056 = vlaneseq
    %v2057 = vshrl.u32 %v2056, 7
    %v2058 = vsub.s32 0, %v2057
    %v2059 = vrot.slane %v2027, %v2058
    %v2061 = vmul.f32 %v2053, %v2059
    %v2062 = vmul.f32 %v2054, %v2059
    %v2064 = vlaneseq
    %v2065 = vshrl.u32 %v2064, 7
    %v2066 = vsub.s32 0, %v2065
    %v2067 = vrot.slane %v2028, %v2066
    %v2069 = vadd.f32 %v2061, %v2067
    %v2070 = vadd.f32 %v2062, %v2067
    %v2071 = vld [vmem:[%s18] sm:$0xff]
    %v2072 = vld [vmem:[%s18 + $0x8] sm:$0xff]
    %v2073 = vld [vmem:[%s18 + $0x10] sm:$0xff]
    %v2074 = vld [vmem:[%s18 + $0x18] sm:$0xff]
    %v2075 = vld [vmem:[%s19] sm:$0x1]
    %v2077 = vlaneseq
    %v2078 = vshrl.u32 %v2077, 7
    %v2079 = vsub.s32 0, %v2078
    %v2080 = vrot.slane %v2075, %v2079
    %v2083 = vsel %vm244, %v2069, 0
    %v2086 = vsel %vm244, %v2070, 0
    %2088 = vmatprep.subr.mxu0 0.0
    %2089 = vmatpush1.msra.mxu0 %v2071
    %2090 = vmatprep.subr.mxu0 0.0
    %2091 = vmatpush1.msra.mxu0 %v2072
    %2092 = vmatprep.subr.mxu0 0.0
    %2093 = vmatpush1.msra.mxu0 %v2073
    %2094 = vmatprep.subr.mxu0 0.0
    %2095 = vmatpush1.msra.mxu0 %v2074
    %2096 = vmatprep.subr.mxu0 0.0
    %2097 = vmatpush1.msra.mxu0 0.0
    %2098 = vmatprep.subr.mxu0 0.0
    %2099 = vmatpush1.msra.mxu0 0.0
    %2100 = vmatprep.subr.mxu0 0.0
    %2101 = vmatpush1.msra.mxu0 0.0
    %2102 = vmatprep.subr.mxu0 0.0
    %2103 = vmatpush1.msra.mxu0 0.0
    %2104 = vmatprep.subr.mxu0 0.0
    %2105 = vmatpush1.msra.mxu0 0.0
    %2106 = vmatprep.subr.mxu0 0.0
    %2107 = vmatpush1.msra.mxu0 0.0
    %2108 = vmatprep.subr.mxu0 0.0
    %2109 = vmatpush1.msra.mxu0 0.0
    %2110 = vmatprep.subr.mxu0 0.0
    %2111 = vmatpush1.msra.mxu0 0.0
    %2112 = vmatprep.subr.mxu0 0.0
    %2113 = vmatpush1.msra.mxu0 0.0
    %2114 = vmatprep.subr.mxu0 0.0
    %2115 = vmatpush1.msra.mxu0 0.0
    %2116 = vmatprep.subr.mxu0 0.0
    %2117 = vmatpush1.msra.mxu0 0.0
    %2118 = vmatprep.subr.mxu0 0.0
    %2119 = vmatpush1.msra.mxu0 0.0
    %2120 = vmatprep.subr.mxu0 0.0
    %2121 = vmatpush1.msra.mxu0 0.0
    %2122 = vmatprep.subr.mxu0 0.0
    %2123 = vmatpush1.msra.mxu0 0.0
    %2124 = vmatprep.subr.mxu0 0.0
    %2125 = vmatpush1.msra.mxu0 0.0
    %2126 = vmatprep.subr.mxu0 0.0
    %2127 = vmatpush1.msra.mxu0 0.0
    %2128 = vmatprep.subr.mxu0 0.0
    %2129 = vmatpush1.msra.mxu0 0.0
    %2130 = vmatprep.subr.mxu0 0.0
    %2131 = vmatpush1.msra.mxu0 0.0
    %2132 = vmatprep.subr.mxu0 0.0
    %2133 = vmatpush1.msra.mxu0 0.0
    %2134 = vmatprep.subr.mxu0 0.0
    %2135 = vmatpush1.msra.mxu0 0.0
    %2136 = vmatprep.subr.mxu0 0.0
    %2137 = vmatpush1.msra.mxu0 0.0
    %2138 = vmatprep.subr.mxu0 0.0
    %2139 = vmatpush1.msra.mxu0 0.0
    %2140 = vmatprep.subr.mxu0 0.0
    %2141 = vmatpush1.msra.mxu0 0.0
    %2142 = vmatprep.subr.mxu0 0.0
    %2143 = vmatpush1.msra.mxu0 0.0
    %2144 = vmatprep.subr.mxu0 0.0
    %2145 = vmatpush1.msra.mxu0 0.0
    %2146 = vmatprep.subr.mxu0 0.0
    %2147 = vmatpush1.msra.mxu0 0.0
    %2148 = vmatprep.subr.mxu0 0.0
    %2149 = vmatpush1.msra.mxu0 0.0
    %2150 = vmatprep.subr.mxu0 0.0
    %2151 = vmatpush1.msra.mxu0 0.0
    %2152 = vmatprep.mubr.f32.mxu0 0.0
    %2153 = vmatmul.mubr.f32.gmra.mrb[0].mxu0 %v2083
    %v2154 = vpop.f32.mrb[0].mxu0
    %v2155 = vadd.f32 %v2080, %v2154
    %v2156 = vpop.f32.mrb[0].mxu0
    %2157 = vmatprep.mubr.f32.mxu0 0.0
    %2158 = vmatmul.mubr.f32.gmra.mrb[0].mxu0 %v2086
    %v2159 = vpop.f32.mrb[0].mxu0
    %v2160 = vadd.f32 %v2080, %v2159
    %v2161 = vpop.f32.mrb[0].mxu0
    %2162 = vdwg.mxu0
    %v2163 = vmul.f32 %v2155, 0.5
    %v2164 = vmul.f32 %v2160, 0.5
    %v2165 = vmul.f32 %v2155, 0.044715
    %v2166 = vmul.f32 %v2160, 0.044715
    %v2167 = vmul.f32 %v2165, %v2155
    %v2168 = vmul.f32 %v2166, %v2160
    %v2169 = vmul.f32 %v2167, %v2155
    %v2170 = vmul.f32 %v2168, %v2160
    %v2171 = vadd.f32 %v2155, %v2169
    %v2172 = vadd.f32 %v2160, %v2170
    %v2173 = vmul.f32 %v2171, 0.7978846
    %v2174 = vmul.f32 %v2172, 0.7978846
    %v2175 = vtanh.pop %v2173
    %v2176 = vtanh.pop %v2174
    %v2177 = vadd.f32 %v2175, 1.0
    %v2178 = vadd.f32 %v2176, 1.0
    %v2179 = vmul.f32 %v2163, %v2177
    %v2180 = vmul.f32 %v2164, %v2178
    %v2181 = vld [vmem:[%s20] sm:$0xff]
    %v2182 = vld [vmem:[%s20 + $0x8] sm:$0xff]
    %v2183 = vld [vmem:[%s20 + $0x10] sm:$0xff]
    %v2184 = vld [vmem:[%s20 + $0x18] sm:$0xff]
    %v2185 = vld [vmem:[%s20 + $0x20] sm:$0xff]
    %v2186 = vld [vmem:[%s20 + $0x28] sm:$0xff]
    %v2187 = vld [vmem:[%s20 + $0x30] sm:$0xff]
    %v2188 = vld [vmem:[%s20 + $0x38] sm:$0xff]
    %v2189 = vld [vmem:[%s21] sm:$0x1]
    %v2191 = vlaneseq
    %v2192 = vshrl.u32 %v2191, 7
    %v2193 = vsub.s32 0, %v2192
    %v2194 = vrot.slane %v2189, %v2193
    %vm2196 = vcmask 523264
    %v2198 = vsel %vm2196, %v2179, 0
    %v2201 = vsel %vm2196, %v2180, 0
    %2203 = vmatprep.subr.mxu0 0.0
    %2204 = vmatpush1.msra.mxu0 %v2181
    %2205 = vmatprep.subr.mxu0 0.0
    %2206 = vmatpush1.msra.mxu0 %v2182
    %2207 = vmatprep.subr.mxu0 0.0
    %2208 = vmatpush1.msra.mxu0 %v2183
    %2209 = vmatprep.subr.mxu0 0.0
    %2210 = vmatpush1.msra.mxu0 %v2184
    %2211 = vmatprep.subr.mxu0 0.0
    %2212 = vmatpush1.msra.mxu0 %v2185
    %2213 = vmatprep.subr.mxu0 0.0
    %2214 = vmatpush1.msra.mxu0 %v2186
    %2215 = vmatprep.subr.mxu0 0.0
    %2216 = vmatpush1.msra.mxu0 %v2187
    %2217 = vmatprep.subr.mxu0 0.0
    %2218 = vmatpush1.msra.mxu0 %v2188
    %2219 = vmatprep.subr.mxu0 0.0
    %2220 = vmatpush1.msra.mxu0 0.0
    %2221 = vmatprep.subr.mxu0 0.0
    %2222 = vmatpush1.msra.mxu0 0.0
    %2223 = vmatprep.subr.mxu0 0.0
    %2224 = vmatpush1.msra.mxu0 0.0
    %2225 = vmatprep.subr.mxu0 0.0
    %2226 = vmatpush1.msra.mxu0 0.0
    %2227 = vmatprep.subr.mxu0 0.0
    %2228 = vmatpush1.msra.mxu0 0.0
    %2229 = vmatprep.subr.mxu0 0.0
    %2230 = vmatpush1.msra.mxu0 0.0
    %2231 = vmatprep.subr.mxu0 0.0
    %2232 = vmatpush1.msra.mxu0 0.0
    %2233 = vmatprep.subr.mxu0 0.0
    %2234 = vmatpush1.msra.mxu0 0.0
    %2235 = vmatprep.subr.mxu0 0.0
    %2236 = vmatpush1.msra.mxu0 0.0
    %2237 = vmatprep.subr.mxu0 0.0
    %2238 = vmatpush1.msra.mxu0 0.0
    %2239 = vmatprep.subr.mxu0 0.0
    %2240 = vmatpush1.msra.mxu0 0.0
    %2241 = vmatprep.subr.mxu0 0.0
    %2242 = vmatpush1.msra.mxu0 0.0
    %2243 = vmatprep.subr.mxu0 0.0
    %2244 = vmatpush1.msra.mxu0 0.0
    %2245 = vmatprep.subr.mxu0 0.0
    %2246 = vmatpush1.msra.mxu0 0.0
    %2247 = vmatprep.subr.mxu0 0.0
    %2248 = vmatpush1.msra.mxu0 0.0
    %2249 = vmatprep.subr.mxu0 0.0
    %2250 = vmatpush1.msra.mxu0 0.0
    %2251 = vmatprep.subr.mxu0 0.0
    %2252 = vmatpush1.msra.mxu0 0.0
    %2253 = vmatprep.subr.mxu0 0.0
    %2254 = vmatpush1.msra.mxu0 0.0
    %2255 = vmatprep.subr.mxu0 0.0
    %2256 = vmatpush1.msra.mxu0 0.0
    %2257 = vmatprep.subr.mxu0 0.0
    %2258 = vmatpush1.msra.mxu0 0.0
    %2259 = vmatprep.subr.mxu0 0.0
    %2260 = vmatpush1.msra.mxu0 0.0
    %2261 = vmatprep.subr.mxu0 0.0
    %2262 = vmatpush1.msra.mxu0 0.0
    %2263 = vmatprep.subr.mxu0 0.0
    %2264 = vmatpush1.msra.mxu0 0.0
    %2265 = vmatprep.subr.mxu0 0.0
    %2266 = vmatpush1.msra.mxu0 0.0
    %2267 = vmatprep.mubr.f32.mxu0 0.0
    %2268 = vmatmul.mubr.f32.gmra.mrb[0].mxu0 %v2198
    %v2269 = vpop.f32.mrb[0].mxu0
    %v2270 = vadd.f32 %v2194, %v2269
    %v2271 = vpop.f32.mrb[0].mxu0
    %2272 = vmatprep.mubr.f32.mxu0 0.0
    %2273 = vmatmul.mubr.f32.gmra.mrb[0].mxu0 %v2201
    %v2274 = vpop.f32.mrb[0].mxu0
    %v2275 = vadd.f32 %v2194, %v2274
    %v2276 = vpop.f32.mrb[0].mxu0
    %2277 = vdwg.mxu0
    %v2278 = vadd.f32 %v2069, %v2270
    %v2279 = vadd.f32 %v2070, %v2275
    %v2280 = vld [vmem:[%s22] sm:$0x1]
    %v2281 = vld [vmem:[%s23] sm:$0x1]
    %v2282 = vsel %vm244, %v2278, 0.0
    %2283 = vadd.xlane.f32.xlu0 %v2282
    %v2284 = vpop.xlane.xlu0 %2283
    %v2285 = vsel %vm244, %v2279, 0.0
    %2286 = vadd.xlane.f32.xlu0 %v2285
    %v2287 = vpop.xlane.xlu0 %2286
    %v2288 = vmul.f32 %v2284, %v251
    %v2289 = vmul.f32 %v2287, %v251
    %v2290 = vsub.f32 %v2278, %v2288
    %v2291 = vsub.f32 %v2279, %v2289
    %v2292 = vmul.f32 %v2290, %v2290
    %v2293 = vmul.f32 %v2291, %v2291
    %v2294 = vsel %vm244, %v2292, 0.0
    %2295 = vadd.xlane.f32.xlu0 %v2294
    %v2296 = vpop.xlane.xlu0 %2295
    %v2297 = vsel %vm244, %v2293, 0.0
    %2298 = vadd.xlane.f32.xlu0 %v2297
    %v2299 = vpop.xlane.xlu0 %2298
    %v2300 = vmul.f32 %v2296, %v251
    %v2301 = vmul.f32 %v2299, %v251
    %v2302 = vadd.f32 %v2300, 1e-12
    %v2303 = vadd.f32 %v2301, 1e-12
    %v2304 = vrsqrt.pop %v2302
    %v2305 = vrsqrt.pop %v2303
    %v2306 = vmul.f32 %v2290, %v2304
    %v2307 = vmul.f32 %v2291, %v2305
    %v2309 = vlaneseq
    %v2310 = vshrl.u32 %v2309, 7
    %v2311 = vsub.s32 0, %v2310
    %v2312 = vrot.slane %v2280, %v2311
    %v2314 = vmul.f32 %v2306, %v2312
    %v2315 = vmul.f32 %v2307, %v2312
    %v2317 = vlaneseq
    %v2318 = vshrl.u32 %v2317, 7
    %v2319 = vsub.s32 0, %v2318
    %v2320 = vrot.slane %v2281, %v2319
    %v2322 = vadd.f32 %v2314, %v2320
    %v2323 = vadd.f32 %v2315, %v2320
    %s2324 = scalar_lea.vmem %s8, 32
    %v2325 = vld [vmem:[%s2324] sm:$0xff]
    %v2326 = vld [vmem:[%s2324 + $0x8] sm:$0xff]
    %v2327 = vld [vmem:[%s2324 + $0x10] sm:$0xff]
    %v2328 = vld [vmem:[%s2324 + $0x18] sm:$0xff]
    %s2329 = scalar_lea.vmem %s9, 1
    %v2330 = vld [vmem:[%s2329] sm:$0x1]
    %v2332 = vlaneseq
    %v2333 = vshrl.u32 %v2332, 7
    %v2334 = vsub.s32 0, %v2333
    %v2335 = vrot.slane %v2330, %v2334
    %v2338 = vsel %vm244, %v2322, 0
    %v2341 = vsel %vm244, %v2323, 0
    %2343 = vmatprep.subr.mxu0 0.0
    %2344 = vmatpush1.msra.mxu0 %v2325
    %2345 = vmatprep.subr.mxu0 0.0
    %2346 = vmatpush1.msra.mxu0 %v2326
    %2347 = vmatprep.subr.mxu0 0.0
    %2348 = vmatpush1.msra.mxu0 %v2327
    %2349 = vmatprep.subr.mxu0 0.0
    %2350 = vmatpush1.msra.mxu0 %v2328
    %2351 = vmatprep.subr.mxu0 0.0
    %2352 = vmatpush1.msra.mxu0 0.0
    %2353 = vmatprep.subr.mxu0 0.0
    %2354 = vmatpush1.msra.mxu0 0.0
    %2355 = vmatprep.subr.mxu0 0.0
    %2356 = vmatpush1.msra.mxu0 0.0
    %2357 = vmatprep.subr.mxu0 0.0
    %2358 = vmatpush1.msra.mxu0 0.0
    %2359 = vmatprep.subr.mxu0 0.0
    %2360 = vmatpush1.msra.mxu0 0.0
    %2361 = vmatprep.subr.mxu0 0.0
    %2362 = vmatpush1.msra.mxu0 0.0
    %2363 = vmatprep.subr.mxu0 0.0
    %2364 = vmatpush1.msra.mxu0 0.0
    %2365 = vmatprep.subr.mxu0 0.0
    %2366 = vmatpush1.msra.mxu0 0.0
    %2367 = vmatprep.subr.mxu0 0.0
    %2368 = vmatpush1.msra.mxu0 0.0
    %2369 = vmatprep.subr.mxu0 0.0
    %2370 = vmatpush1.msra.mxu0 0.0
    %2371 = vmatprep.subr.mxu0 0.0
    %2372 = vmatpush1.msra.mxu0 0.0
    %2373 = vmatprep.subr.mxu0 0.0
    %2374 = vmatpush1.msra.mxu0 0.0
    %2375 = vmatprep.subr.mxu0 0.0
    %2376 = vmatpush1.msra.mxu0 0.0
    %2377 = vmatprep.subr.mxu0 0.0
    %2378 = vmatpush1.msra.mxu0 0.0
    %2379 = vmatprep.subr.mxu0 0.0
    %2380 = vmatpush1.msra.mxu0 0.0
    %2381 = vmatprep.subr.mxu0 0.0
    %2382 = vmatpush1.msra.mxu0 0.0
    %2383 = vmatprep.subr.mxu0 0.0
    %2384 = vmatpush1.msra.mxu0 0.0
    %2385 = vmatprep.subr.mxu0 0.0
    %2386 = vmatpush1.msra.mxu0 0.0
    %2387 = vmatprep.subr.mxu0 0.0
    %2388 = vmatpush1.msra.mxu0 0.0
    %2389 = vmatprep.subr.mxu0 0.0
    %2390 = vmatpush1.msra.mxu0 0.0
    %2391 = vmatprep.subr.mxu0 0.0
    %2392 = vmatpush1.msra.mxu0 0.0
    %2393 = vmatprep.subr.mxu0 0.0
    %2394 = vmatpush1.msra.mxu0 0.0
    %2395 = vmatprep.subr.mxu0 0.0
    %2396 = vmatpush1.msra.mxu0 0.0
    %2397 = vmatprep.subr.mxu0 0.0
    %2398 = vmatpush1.msra.mxu0 0.0
    %2399 = vmatprep.subr.mxu0 0.0
    %2400 = vmatpush1.msra.mxu0 0.0
    %2401 = vmatprep.subr.mxu0 0.0
    %2402 = vmatpush1.msra.mxu0 0.0
    %2403 = vmatprep.subr.mxu0 0.0
    %2404 = vmatpush1.msra.mxu0 0.0
    %2405 = vmatprep.subr.mxu0 0.0
    %2406 = vmatpush1.msra.mxu0 0.0
    %2407 = vmatprep.mubr.f32.mxu0 0.0
    %2408 = vmatmul.mubr.f32.gmra.mrb[0].mxu0 %v2338
    %v2409 = vpop.f32.mrb[0].mxu0
    %v2410 = vadd.f32 %v2335, %v2409
    %v2411 = vpop.f32.mrb[0].mxu0
    %2412 = vmatprep.mubr.f32.mxu0 0.0
    %2413 = vmatmul.mubr.f32.gmra.mrb[0].mxu0 %v2341
    %v2414 = vpop.f32.mrb[0].mxu0
    %v2415 = vadd.f32 %v2335, %v2414
    %v2416 = vpop.f32.mrb[0].mxu0
    %2417 = vdwg.mxu0
    %s2418 = scalar_lea.vmem %s10, 32
    %v2419 = vld [vmem:[%s2418] sm:$0xff]
    %v2420 = vld [vmem:[%s2418 + $0x8] sm:$0xff]
    %v2421 = vld [vmem:[%s2418 + $0x10] sm:$0xff]
    %v2422 = vld [vmem:[%s2418 + $0x18] sm:$0xff]
    %s2423 = scalar_lea.vmem %s11, 1
    %v2424 = vld [vmem:[%s2423] sm:$0x1]
    %v2426 = vlaneseq
    %v2427 = vshrl.u32 %v2426, 7
    %v2428 = vsub.s32 0, %v2427
    %v2429 = vrot.slane %v2424, %v2428
    %2431 = vmatprep.subr.mxu0 0.0
    %2432 = vmatpush1.msra.mxu0 %v2419
    %2433 = vmatprep.subr.mxu0 0.0
    %2434 = vmatpush1.msra.mxu0 %v2420
    %2435 = vmatprep.subr.mxu0 0.0
    %2436 = vmatpush1.msra.mxu0 %v2421
    %2437 = vmatprep.subr.mxu0 0.0
    %2438 = vmatpush1.msra.mxu0 %v2422
    %2439 = vmatprep.subr.mxu0 0.0
    %2440 = vmatpush1.msra.mxu0 0.0
    %2441 = vmatprep.subr.mxu0 0.0
    %2442 = vmatpush1.msra.mxu0 0.0
    %2443 = vmatprep.subr.mxu0 0.0
    %2444 = vmatpush1.msra.mxu0 0.0
    %2445 = vmatprep.subr.mxu0 0.0
    %2446 = vmatpush1.msra.mxu0 0.0
    %2447 = vmatprep.subr.mxu0 0.0
    %2448 = vmatpush1.msra.mxu0 0.0
    %2449 = vmatprep.subr.mxu0 0.0
    %2450 = vmatpush1.msra.mxu0 0.0
    %2451 = vmatprep.subr.mxu0 0.0
    %2452 = vmatpush1.msra.mxu0 0.0
    %2453 = vmatprep.subr.mxu0 0.0
    %2454 = vmatpush1.msra.mxu0 0.0
    %2455 = vmatprep.subr.mxu0 0.0
    %2456 = vmatpush1.msra.mxu0 0.0
    %2457 = vmatprep.subr.mxu0 0.0
    %2458 = vmatpush1.msra.mxu0 0.0
    %2459 = vmatprep.subr.mxu0 0.0
    %2460 = vmatpush1.msra.mxu0 0.0
    %2461 = vmatprep.subr.mxu0 0.0
    %2462 = vmatpush1.msra.mxu0 0.0
    %2463 = vmatprep.subr.mxu0 0.0
    %2464 = vmatpush1.msra.mxu0 0.0
    %2465 = vmatprep.subr.mxu0 0.0
    %2466 = vmatpush1.msra.mxu0 0.0
    %2467 = vmatprep.subr.mxu0 0.0
    %2468 = vmatpush1.msra.mxu0 0.0
    %2469 = vmatprep.subr.mxu0 0.0
    %2470 = vmatpush1.msra.mxu0 0.0
    %2471 = vmatprep.subr.mxu0 0.0
    %2472 = vmatpush1.msra.mxu0 0.0
    %2473 = vmatprep.subr.mxu0 0.0
    %2474 = vmatpush1.msra.mxu0 0.0
    %2475 = vmatprep.subr.mxu0 0.0
    %2476 = vmatpush1.msra.mxu0 0.0
    %2477 = vmatprep.subr.mxu0 0.0
    %2478 = vmatpush1.msra.mxu0 0.0
    %2479 = vmatprep.subr.mxu0 0.0
    %2480 = vmatpush1.msra.mxu0 0.0
    %2481 = vmatprep.subr.mxu0 0.0
    %2482 = vmatpush1.msra.mxu0 0.0
    %2483 = vmatprep.subr.mxu0 0.0
    %2484 = vmatpush1.msra.mxu0 0.0
    %2485 = vmatprep.subr.mxu0 0.0
    %2486 = vmatpush1.msra.mxu0 0.0
    %2487 = vmatprep.subr.mxu0 0.0
    %2488 = vmatpush1.msra.mxu0 0.0
    %2489 = vmatprep.subr.mxu0 0.0
    %2490 = vmatpush1.msra.mxu0 0.0
    %2491 = vmatprep.subr.mxu0 0.0
    %2492 = vmatpush1.msra.mxu0 0.0
    %2493 = vmatprep.subr.mxu0 0.0
    %2494 = vmatpush1.msra.mxu0 0.0
    %2495 = vmatprep.mubr.f32.mxu0 0.0
    %2496 = vmatmul.mubr.f32.gmra.mrb[0].mxu0 %v2338
    %v2497 = vpop.f32.mrb[0].mxu0
    %v2498 = vadd.f32 %v2429, %v2497
    %v2499 = vpop.f32.mrb[0].mxu0
    %2500 = vmatprep.mubr.f32.mxu0 0.0
    %2501 = vmatmul.mubr.f32.gmra.mrb[0].mxu0 %v2341
    %v2502 = vpop.f32.mrb[0].mxu0
    %v2503 = vadd.f32 %v2429, %v2502
    %v2504 = vpop.f32.mrb[0].mxu0
    %2505 = vdwg.mxu0
    %s2506 = scalar_lea.vmem %s12, 32
    %v2507 = vld [vmem:[%s2506] sm:$0xff]
    %v2508 = vld [vmem:[%s2506 + $0x8] sm:$0xff]
    %v2509 = vld [vmem:[%s2506 + $0x10] sm:$0xff]
    %v2510 = vld [vmem:[%s2506 + $0x18] sm:$0xff]
    %s2511 = scalar_lea.vmem %s13, 1
    %v2512 = vld [vmem:[%s2511] sm:$0x1]
    %v2514 = vlaneseq
    %v2515 = vshrl.u32 %v2514, 7
    %v2516 = vsub.s32 0, %v2515
    %v2517 = vrot.slane %v2512, %v2516
    %2519 = vmatprep.subr.mxu0 0.0
    %2520 = vmatpush1.msra.mxu0 %v2507
    %2521 = vmatprep.subr.mxu0 0.0
    %2522 = vmatpush1.msra.mxu0 %v2508
    %2523 = vmatprep.subr.mxu0 0.0
    %2524 = vmatpush1.msra.mxu0 %v2509
    %2525 = vmatprep.subr.mxu0 0.0
    %2526 = vmatpush1.msra.mxu0 %v2510
    %2527 = vmatprep.subr.mxu0 0.0
    %2528 = vmatpush1.msra.mxu0 0.0
    %2529 = vmatprep.subr.mxu0 0.0
    %2530 = vmatpush1.msra.mxu0 0.0
    %2531 = vmatprep.subr.mxu0 0.0
    %2532 = vmatpush1.msra.mxu0 0.0
    %2533 = vmatprep.subr.mxu0 0.0
    %2534 = vmatpush1.msra.mxu0 0.0
    %2535 = vmatprep.subr.mxu0 0.0
    %2536 = vmatpush1.msra.mxu0 0.0
    %2537 = vmatprep.subr.mxu0 0.0
    %2538 = vmatpush1.msra.mxu0 0.0
    %2539 = vmatprep.subr.mxu0 0.0
    %2540 = vmatpush1.msra.mxu0 0.0
    %2541 = vmatprep.subr.mxu0 0.0
    %2542 = vmatpush1.msra.mxu0 0.0
    %2543 = vmatprep.subr.mxu0 0.0
    %2544 = vmatpush1.msra.mxu0 0.0
    %2545 = vmatprep.subr.mxu0 0.0
    %2546 = vmatpush1.msra.mxu0 0.0
    %2547 = vmatprep.subr.mxu0 0.0
    %2548 = vmatpush1.msra.mxu0 0.0
    %2549 = vmatprep.subr.mxu0 0.0
    %2550 = vmatpush1.msra.mxu0 0.0
    %2551 = vmatprep.subr.mxu0 0.0
    %2552 = vmatpush1.msra.mxu0 0.0
    %2553 = vmatprep.subr.mxu0 0.0
    %2554 = vmatpush1.msra.mxu0 0.0
    %2555 = vmatprep.subr.mxu0 0.0
    %2556 = vmatpush1.msra.mxu0 0.0
    %2557 = vmatprep.subr.mxu0 0.0
    %2558 = vmatpush1.msra.mxu0 0.0
    %2559 = vmatprep.subr.mxu0 0.0
    %2560 = vmatpush1.msra.mxu0 0.0
    %2561 = vmatprep.subr.mxu0 0.0
    %2562 = vmatpush1.msra.mxu0 0.0
    %2563 = vmatprep.subr.mxu0 0.0
    %2564 = vmatpush1.msra.mxu0 0.0
    %2565 = vmatprep.subr.mxu0 0.0
    %2566 = vmatpush1.msra.mxu0 0.0
    %2567 = vmatprep.subr.mxu0 0.0
    %2568 = vmatpush1.msra.mxu0 0.0
    %2569 = vmatprep.subr.mxu0 0.0
    %2570 = vmatpush1.msra.mxu0 0.0
    %2571 = vmatprep.subr.mxu0 0.0
    %2572 = vmatpush1.msra.mxu0 0.0
    %2573 = vmatprep.subr.mxu0 0.0
    %2574 = vmatpush1.msra.mxu0 0.0
    %2575 = vmatprep.subr.mxu0 0.0
    %2576 = vmatpush1.msra.mxu0 0.0
    %2577 = vmatprep.subr.mxu0 0.0
    %2578 = vmatpush1.msra.mxu0 0.0
    %2579 = vmatprep.subr.mxu0 0.0
    %2580 = vmatpush1.msra.mxu0 0.0
    %2581 = vmatprep.subr.mxu0 0.0
    %2582 = vmatpush1.msra.mxu0 0.0
    %2583 = vmatprep.mubr.f32.mxu0 0.0
    %2584 = vmatmul.mubr.f32.gmra.mrb[0].mxu0 %v2338
    %v2585 = vpop.f32.mrb[0].mxu0
    %v2586 = vadd.f32 %v2517, %v2585
    %v2587 = vpop.f32.mrb[0].mxu0
    %2588 = vmatprep.mubr.f32.mxu0 0.0
    %2589 = vmatmul.mubr.f32.gmra.mrb[0].mxu0 %v2341
    %v2590 = vpop.f32.mrb[0].mxu0
    %v2591 = vadd.f32 %v2517, %v2590
    %v2592 = vpop.f32.mrb[0].mxu0
    %2593 = vdwg.mxu0
    %2596 = vrot.lane.b32.xlu0 %v2410, 120
    %v2597 = vpop.permute.xlu0 %2596
    %2598 = vrot.lane.b32.xlu0 %v2415, 120
    %v2599 = vpop.permute.xlu0 %2598
    %2600 = vrot.lane.b32.xlu0 %v2410, 112
    %v2601 = vpop.permute.xlu0 %2600
    %2602 = vrot.lane.b32.xlu0 %v2415, 112
    %v2603 = vpop.permute.xlu0 %2602
    %2604 = vrot.lane.b32.xlu0 %v2410, 104
    %v2605 = vpop.permute.xlu0 %2604
    %2606 = vrot.lane.b32.xlu0 %v2415, 104
    %v2607 = vpop.permute.xlu0 %2606
    %2610 = vrot.lane.b32.xlu0 %v2498, 120
    %v2611 = vpop.permute.xlu0 %2610
    %2612 = vrot.lane.b32.xlu0 %v2503, 120
    %v2613 = vpop.permute.xlu0 %2612
    %2614 = vrot.lane.b32.xlu0 %v2498, 112
    %v2615 = vpop.permute.xlu0 %2614
    %2616 = vrot.lane.b32.xlu0 %v2503, 112
    %v2617 = vpop.permute.xlu0 %2616
    %2618 = vrot.lane.b32.xlu0 %v2498, 104
    %v2619 = vpop.permute.xlu0 %2618
    %2620 = vrot.lane.b32.xlu0 %v2503, 104
    %v2621 = vpop.permute.xlu0 %2620
    %2624 = vrot.lane.b32.xlu0 %v2586, 120
    %v2625 = vpop.permute.xlu0 %2624
    %2626 = vrot.lane.b32.xlu0 %v2591, 120
    %v2627 = vpop.permute.xlu0 %2626
    %2630 = vrot.lane.b32.xlu0 %v2586, 112
    %v2631 = vpop.permute.xlu0 %2630
    %2632 = vrot.lane.b32.xlu0 %v2591, 112
    %v2633 = vpop.permute.xlu0 %2632
    %2636 = vrot.lane.b32.xlu0 %v2586, 104
    %v2637 = vpop.permute.xlu0 %2636
    %2638 = vrot.lane.b32.xlu0 %v2591, 104
    %v2639 = vpop.permute.xlu0 %2638
    %v2642 = vsel %vm608, %v2410, 0
    %v2644 = vsel %vm608, %v2498, 0
    %2646 = vmatprep.subr.mxu0 0.0
    %2647 = vmatpush1.xpose.msra.mxu0 %v2644
    %2648 = vmatprep.subr.mxu0 0.0
    %2649 = vmatpush1.xpose.msra.mxu0 0.0
    %2650 = vmatprep.subr.mxu0 0.0
    %2651 = vmatpush1.xpose.msra.mxu0 0.0
    %2652 = vmatprep.subr.mxu0 0.0
    %2653 = vmatpush1.xpose.msra.mxu0 0.0
    %2654 = vmatprep.subr.mxu0 0.0
    %2655 = vmatpush1.xpose.msra.mxu0 0.0
    %2656 = vmatprep.subr.mxu0 0.0
    %2657 = vmatpush1.xpose.msra.mxu0 0.0
    %2658 = vmatprep.subr.mxu0 0.0
    %2659 = vmatpush1.xpose.msra.mxu0 0.0
    %2660 = vmatprep.subr.mxu0 0.0
    %2661 = vmatpush1.xpose.msra.mxu0 0.0
    %2662 = vmatprep.subr.mxu0 0.0
    %2663 = vmatpush1.xpose.msra.mxu0 0.0
    %2664 = vmatprep.subr.mxu0 0.0
    %2665 = vmatpush1.xpose.msra.mxu0 0.0
    %2666 = vmatprep.subr.mxu0 0.0
    %2667 = vmatpush1.xpose.msra.mxu0 0.0
    %2668 = vmatprep.subr.mxu0 0.0
    %2669 = vmatpush1.xpose.msra.mxu0 0.0
    %2670 = vmatprep.subr.mxu0 0.0
    %2671 = vmatpush1.xpose.msra.mxu0 0.0
    %2672 = vmatprep.subr.mxu0 0.0
    %2673 = vmatpush1.xpose.msra.mxu0 0.0
    %2674 = vmatprep.subr.mxu0 0.0
    %2675 = vmatpush1.xpose.msra.mxu0 0.0
    %2676 = vmatprep.subr.mxu0 0.0
    %2677 = vmatpush1.xpose.msra.mxu0 0.0
    %2678 = vmatprep.subr.mxu0 0.0
    %2679 = vmatpush1.xpose.msra.mxu0 0.0
    %2680 = vmatprep.subr.mxu0 0.0
    %2681 = vmatpush1.xpose.msra.mxu0 0.0
    %2682 = vmatprep.subr.mxu0 0.0
    %2683 = vmatpush1.xpose.msra.mxu0 0.0
    %2684 = vmatprep.subr.mxu0 0.0
    %2685 = vmatpush1.xpose.msra.mxu0 0.0
    %2686 = vmatprep.subr.mxu0 0.0
    %2687 = vmatpush1.xpose.msra.mxu0 0.0
    %2688 = vmatprep.subr.mxu0 0.0
    %2689 = vmatpush1.xpose.msra.mxu0 0.0
    %2690 = vmatprep.subr.mxu0 0.0
    %2691 = vmatpush1.xpose.msra.mxu0 0.0
    %2692 = vmatprep.subr.mxu0 0.0
    %2693 = vmatpush1.xpose.msra.mxu0 0.0
    %2694 = vmatprep.subr.mxu0 0.0
    %2695 = vmatpush1.xpose.msra.mxu0 0.0
    %2696 = vmatprep.subr.mxu0 0.0
    %2697 = vmatpush1.xpose.msra.mxu0 0.0
    %2698 = vmatprep.subr.mxu0 0.0
    %2699 = vmatpush1.xpose.msra.mxu0 0.0
    %2700 = vmatprep.subr.mxu0 0.0
    %2701 = vmatpush1.xpose.msra.mxu0 0.0
    %2702 = vmatprep.subr.mxu0 0.0
    %2703 = vmatpush1.xpose.msra.mxu0 0.0
    %2704 = vmatprep.subr.mxu0 0.0
    %2705 = vmatpush1.xpose.msra.mxu0 0.0
    %2706 = vmatprep.subr.mxu0 0.0
    %2707 = vmatpush1.xpose.msra.mxu0 0.0
    %2708 = vmatprep.subr.mxu0 0.0
    %2709 = vmatpush1.xpose.msra.mxu0 0.0
    %2710 = vmatprep.mubr.f32.mxu0 0.0
    %2711 = vmatmul.mubr.f32.gmra.mrb[0].mxu0 %v2642
    %v2712 = vpop.f32.mrb[0].mxu0
    %v2713 = vadd.f32 0.0, %v2712
    %v2714 = vpop.f32.mrb[0].mxu0
    %2715 = vdwg.mxu0
    %v2716 = vsel %vm608, %v2415, 0
    %v2718 = vsel %vm608, %v2503, 0
    %2720 = vmatprep.subr.mxu0 0.0
    %2721 = vmatpush1.xpose.msra.mxu0 %v2718
    %2722 = vmatprep.subr.mxu0 0.0
    %2723 = vmatpush1.xpose.msra.mxu0 0.0
    %2724 = vmatprep.subr.mxu0 0.0
    %2725 = vmatpush1.xpose.msra.mxu0 0.0
    %2726 = vmatprep.subr.mxu0 0.0
    %2727 = vmatpush1.xpose.msra.mxu0 0.0
    %2728 = vmatprep.subr.mxu0 0.0
    %2729 = vmatpush1.xpose.msra.mxu0 0.0
    %2730 = vmatprep.subr.mxu0 0.0
    %2731 = vmatpush1.xpose.msra.mxu0 0.0
    %2732 = vmatprep.subr.mxu0 0.0
    %2733 = vmatpush1.xpose.msra.mxu0 0.0
    %2734 = vmatprep.subr.mxu0 0.0
    %2735 = vmatpush1.xpose.msra.mxu0 0.0
    %2736 = vmatprep.subr.mxu0 0.0
    %2737 = vmatpush1.xpose.msra.mxu0 0.0
    %2738 = vmatprep.subr.mxu0 0.0
    %2739 = vmatpush1.xpose.msra.mxu0 0.0
    %2740 = vmatprep.subr.mxu0 0.0
    %2741 = vmatpush1.xpose.msra.mxu0 0.0
    %2742 = vmatprep.subr.mxu0 0.0
    %2743 = vmatpush1.xpose.msra.mxu0 0.0
    %2744 = vmatprep.subr.mxu0 0.0
    %2745 = vmatpush1.xpose.msra.mxu0 0.0
    %2746 = vmatprep.subr.mxu0 0.0
    %2747 = vmatpush1.xpose.msra.mxu0 0.0
    %2748 = vmatprep.subr.mxu0 0.0
    %2749 = vmatpush1.xpose.msra.mxu0 0.0
    %2750 = vmatprep.subr.mxu0 0.0
    %2751 = vmatpush1.xpose.msra.mxu0 0.0
    %2752 = vmatprep.subr.mxu0 0.0
    %2753 = vmatpush1.xpose.msra.mxu0 0.0
    %2754 = vmatprep.subr.mxu0 0.0
    %2755 = vmatpush1.xpose.msra.mxu0 0.0
    %2756 = vmatprep.subr.mxu0 0.0
    %2757 = vmatpush1.xpose.msra.mxu0 0.0
    %2758 = vmatprep.subr.mxu0 0.0
    %2759 = vmatpush1.xpose.msra.mxu0 0.0
    %2760 = vmatprep.subr.mxu0 0.0
    %2761 = vmatpush1.xpose.msra.mxu0 0.0
    %2762 = vmatprep.subr.mxu0 0.0
    %2763 = vmatpush1.xpose.msra.mxu0 0.0
    %2764 = vmatprep.subr.mxu0 0.0
    %2765 = vmatpush1.xpose.msra.mxu0 0.0
    %2766 = vmatprep.subr.mxu0 0.0
    %2767 = vmatpush1.xpose.msra.mxu0 0.0
    %2768 = vmatprep.subr.mxu0 0.0
    %2769 = vmatpush1.xpose.msra.mxu0 0.0
    %2770 = vmatprep.subr.mxu0 0.0
    %2771 = vmatpush1.xpose.msra.mxu0 0.0
    %2772 = vmatprep.subr.mxu0 0.0
    %2773 = vmatpush1.xpose.msra.mxu0 0.0
    %2774 = vmatprep.subr.mxu0 0.0
    %2775 = vmatpush1.xpose.msra.mxu0 0.0
    %2776 = vmatprep.subr.mxu0 0.0
    %2777 = vmatpush1.xpose.msra.mxu0 0.0
    %2778 = vmatprep.subr.mxu0 0.0
    %2779 = vmatpush1.xpose.msra.mxu0 0.0
    %2780 = vmatprep.subr.mxu0 0.0
    %2781 = vmatpush1.xpose.msra.mxu0 0.0
    %2782 = vmatprep.subr.mxu0 0.0
    %2783 = vmatpush1.xpose.msra.mxu0 0.0
    %2784 = vmatprep.mubr.f32.mxu0 0.0
    %2785 = vmatmul.mubr.f32.gmra.mrb[0].mxu0 %v2716
    %v2786 = vpop.f32.mrb[0].mxu0
    %v2787 = vadd.f32 0.0, %v2786
    %v2788 = vpop.f32.mrb[0].mxu0
    %2789 = vdwg.mxu0
    %v2790 = vsel %vm608, %v2597, 0
    %v2792 = vsel %vm608, %v2611, 0
    %2794 = vmatprep.subr.mxu0 0.0
    %2795 = vmatpush1.xpose.msra.mxu0 %v2792
    %2796 = vmatprep.subr.mxu0 0.0
    %2797 = vmatpush1.xpose.msra.mxu0 0.0
    %2798 = vmatprep.subr.mxu0 0.0
    %2799 = vmatpush1.xpose.msra.mxu0 0.0
    %2800 = vmatprep.subr.mxu0 0.0
    %2801 = vmatpush1.xpose.msra.mxu0 0.0
    %2802 = vmatprep.subr.mxu0 0.0
    %2803 = vmatpush1.xpose.msra.mxu0 0.0
    %2804 = vmatprep.subr.mxu0 0.0
    %2805 = vmatpush1.xpose.msra.mxu0 0.0
    %2806 = vmatprep.subr.mxu0 0.0
    %2807 = vmatpush1.xpose.msra.mxu0 0.0
    %2808 = vmatprep.subr.mxu0 0.0
    %2809 = vmatpush1.xpose.msra.mxu0 0.0
    %2810 = vmatprep.subr.mxu0 0.0
    %2811 = vmatpush1.xpose.msra.mxu0 0.0
    %2812 = vmatprep.subr.mxu0 0.0
    %2813 = vmatpush1.xpose.msra.mxu0 0.0
    %2814 = vmatprep.subr.mxu0 0.0
    %2815 = vmatpush1.xpose.msra.mxu0 0.0
    %2816 = vmatprep.subr.mxu0 0.0
    %2817 = vmatpush1.xpose.msra.mxu0 0.0
    %2818 = vmatprep.subr.mxu0 0.0
    %2819 = vmatpush1.xpose.msra.mxu0 0.0
    %2820 = vmatprep.subr.mxu0 0.0
    %2821 = vmatpush1.xpose.msra.mxu0 0.0
    %2822 = vmatprep.subr.mxu0 0.0
    %2823 = vmatpush1.xpose.msra.mxu0 0.0
    %2824 = vmatprep.subr.mxu0 0.0
    %2825 = vmatpush1.xpose.msra.mxu0 0.0
    %2826 = vmatprep.subr.mxu0 0.0
    %2827 = vmatpush1.xpose.msra.mxu0 0.0
    %2828 = vmatprep.subr.mxu0 0.0
    %2829 = vmatpush1.xpose.msra.mxu0 0.0
    %2830 = vmatprep.subr.mxu0 0.0
    %2831 = vmatpush1.xpose.msra.mxu0 0.0
    %2832 = vmatprep.subr.mxu0 0.0
    %2833 = vmatpush1.xpose.msra.mxu0 0.0
    %2834 = vmatprep.subr.mxu0 0.0
    %2835 = vmatpush1.xpose.msra.mxu0 0.0
    %2836 = vmatprep.subr.mxu0 0.0
    %2837 = vmatpush1.xpose.msra.mxu0 0.0
    %2838 = vmatprep.subr.mxu0 0.0
    %2839 = vmatpush1.xpose.msra.mxu0 0.0
    %2840 = vmatprep.subr.mxu0 0.0
    %2841 = vmatpush1.xpose.msra.mxu0 0.0
    %2842 = vmatprep.subr.mxu0 0.0
    %2843 = vmatpush1.xpose.msra.mxu0 0.0
    %2844 = vmatprep.subr.mxu0 0.0
    %2845 = vmatpush1.xpose.msra.mxu0 0.0
    %2846 = vmatprep.subr.mxu0 0.0
    %2847 = vmatpush1.xpose.msra.mxu0 0.0
    %2848 = vmatprep.subr.mxu0 0.0
    %2849 = vmatpush1.xpose.msra.mxu0 0.0
    %2850 = vmatprep.subr.mxu0 0.0
    %2851 = vmatpush1.xpose.msra.mxu0 0.0
    %2852 = vmatprep.subr.mxu0 0.0
    %2853 = vmatpush1.xpose.msra.mxu0 0.0
    %2854 = vmatprep.subr.mxu0 0.0
    %2855 = vmatpush1.xpose.msra.mxu0 0.0
    %2856 = vmatprep.subr.mxu0 0.0
    %2857 = vmatpush1.xpose.msra.mxu0 0.0
    %2858 = vmatprep.mubr.f32.mxu0 0.0
    %2859 = vmatmul.mubr.f32.gmra.mrb[0].mxu0 %v2790
    %v2860 = vpop.f32.mrb[0].mxu0
    %v2861 = vadd.f32 0.0, %v2860
    %v2862 = vpop.f32.mrb[0].mxu0
    %2863 = vdwg.mxu0
    %v2864 = vsel %vm608, %v2599, 0
    %v2866 = vsel %vm608, %v2613, 0
    %2868 = vmatprep.subr.mxu0 0.0
    %2869 = vmatpush1.xpose.msra.mxu0 %v2866
    %2870 = vmatprep.subr.mxu0 0.0
    %2871 = vmatpush1.xpose.msra.mxu0 0.0
    %2872 = vmatprep.subr.mxu0 0.0
    %2873 = vmatpush1.xpose.msra.mxu0 0.0
    %2874 = vmatprep.subr.mxu0 0.0
    %2875 = vmatpush1.xpose.msra.mxu0 0.0
    %2876 = vmatprep.subr.mxu0 0.0
    %2877 = vmatpush1.xpose.msra.mxu0 0.0
    %2878 = vmatprep.subr.mxu0 0.0
    %2879 = vmatpush1.xpose.msra.mxu0 0.0
    %2880 = vmatprep.subr.mxu0 0.0
    %2881 = vmatpush1.xpose.msra.mxu0 0.0
    %2882 = vmatprep.subr.mxu0 0.0
    %2883 = vmatpush1.xpose.msra.mxu0 0.0
    %2884 = vmatprep.subr.mxu0 0.0
    %2885 = vmatpush1.xpose.msra.mxu0 0.0
    %2886 = vmatprep.subr.mxu0 0.0
    %2887 = vmatpush1.xpose.msra.mxu0 0.0
    %2888 = vmatprep.subr.mxu0 0.0
    %2889 = vmatpush1.xpose.msra.mxu0 0.0
    %2890 = vmatprep.subr.mxu0 0.0
    %2891 = vmatpush1.xpose.msra.mxu0 0.0
    %2892 = vmatprep.subr.mxu0 0.0
    %2893 = vmatpush1.xpose.msra.mxu0 0.0
    %2894 = vmatprep.subr.mxu0 0.0
    %2895 = vmatpush1.xpose.msra.mxu0 0.0
    %2896 = vmatprep.subr.mxu0 0.0
    %2897 = vmatpush1.xpose.msra.mxu0 0.0
    %2898 = vmatprep.subr.mxu0 0.0
    %2899 = vmatpush1.xpose.msra.mxu0 0.0
    %2900 = vmatprep.subr.mxu0 0.0
    %2901 = vmatpush1.xpose.msra.mxu0 0.0
    %2902 = vmatprep.subr.mxu0 0.0
    %2903 = vmatpush1.xpose.msra.mxu0 0.0
    %2904 = vmatprep.subr.mxu0 0.0
    %2905 = vmatpush1.xpose.msra.mxu0 0.0
    %2906 = vmatprep.subr.mxu0 0.0
    %2907 = vmatpush1.xpose.msra.mxu0 0.0
    %2908 = vmatprep.subr.mxu0 0.0
    %2909 = vmatpush1.xpose.msra.mxu0 0.0
    %2910 = vmatprep.subr.mxu0 0.0
    %2911 = vmatpush1.xpose.msra.mxu0 0.0
    %2912 = vmatprep.subr.mxu0 0.0
    %2913 = vmatpush1.xpose.msra.mxu0 0.0
    %2914 = vmatprep.subr.mxu0 0.0
    %2915 = vmatpush1.xpose.msra.mxu0 0.0
    %2916 = vmatprep.subr.mxu0 0.0
    %2917 = vmatpush1.xpose.msra.mxu0 0.0
    %2918 = vmatprep.subr.mxu0 0.0
    %2919 = vmatpush1.xpose.msra.mxu0 0.0
    %2920 = vmatprep.subr.mxu0 0.0
    %2921 = vmatpush1.xpose.msra.mxu0 0.0
    %2922 = vmatprep.subr.mxu0 0.0
    %2923 = vmatpush1.xpose.msra.mxu0 0.0
    %2924 = vmatprep.subr.mxu0 0.0
    %2925 = vmatpush1.xpose.msra.mxu0 0.0
    %2926 = vmatprep.subr.mxu0 0.0
    %2927 = vmatpush1.xpose.msra.mxu0 0.0
    %2928 = vmatprep.subr.mxu0 0.0
    %2929 = vmatpush1.xpose.msra.mxu0 0.0
    %2930 = vmatprep.subr.mxu0 0.0
    %2931 = vmatpush1.xpose.msra.mxu0 0.0
    %2932 = vmatprep.mubr.f32.mxu0 0.0
    %2933 = vmatmul.mubr.f32.gmra.mrb[0].mxu0 %v2864
    %v2934 = vpop.f32.mrb[0].mxu0
    %v2935 = vadd.f32 0.0, %v2934
    %v2936 = vpop.f32.mrb[0].mxu0
    %2937 = vdwg.mxu0
    %v2938 = vsel %vm608, %v2601, 0
    %v2940 = vsel %vm608, %v2615, 0
    %2942 = vmatprep.subr.mxu0 0.0
    %2943 = vmatpush1.xpose.msra.mxu0 %v2940
    %2944 = vmatprep.subr.mxu0 0.0
    %2945 = vmatpush1.xpose.msra.mxu0 0.0
    %2946 = vmatprep.subr.mxu0 0.0
    %2947 = vmatpush1.xpose.msra.mxu0 0.0
    %2948 = vmatprep.subr.mxu0 0.0
    %2949 = vmatpush1.xpose.msra.mxu0 0.0
    %2950 = vmatprep.subr.mxu0 0.0
    %2951 = vmatpush1.xpose.msra.mxu0 0.0
    %2952 = vmatprep.subr.mxu0 0.0
    %2953 = vmatpush1.xpose.msra.mxu0 0.0
    %2954 = vmatprep.subr.mxu0 0.0
    %2955 = vmatpush1.xpose.msra.mxu0 0.0
    %2956 = vmatprep.subr.mxu0 0.0
    %2957 = vmatpush1.xpose.msra.mxu0 0.0
    %2958 = vmatprep.subr.mxu0 0.0
    %2959 = vmatpush1.xpose.msra.mxu0 0.0
    %2960 = vmatprep.subr.mxu0 0.0
    %2961 = vmatpush1.xpose.msra.mxu0 0.0
    %2962 = vmatprep.subr.mxu0 0.0
    %2963 = vmatpush1.xpose.msra.mxu0 0.0
    %2964 = vmatprep.subr.mxu0 0.0
    %2965 = vmatpush1.xpose.msra.mxu0 0.0
    %2966 = vmatprep.subr.mxu0 0.0
    %2967 = vmatpush1.xpose.msra.mxu0 0.0
    %2968 = vmatprep.subr.mxu0 0.0
    %2969 = vmatpush1.xpose.msra.mxu0 0.0
    %2970 = vmatprep.subr.mxu0 0.0
    %2971 = vmatpush1.xpose.msra.mxu0 0.0
    %2972 = vmatprep.subr.mxu0 0.0
    %2973 = vmatpush1.xpose.msra.mxu0 0.0
    %2974 = vmatprep.subr.mxu0 0.0
    %2975 = vmatpush1.xpose.msra.mxu0 0.0
    %2976 = vmatprep.subr.mxu0 0.0
    %2977 = vmatpush1.xpose.msra.mxu0 0.0
    %2978 = vmatprep.subr.mxu0 0.0
    %2979 = vmatpush1.xpose.msra.mxu0 0.0
    %2980 = vmatprep.subr.mxu0 0.0
    %2981 = vmatpush1.xpose.msra.mxu0 0.0
    %2982 = vmatprep.subr.mxu0 0.0
    %2983 = vmatpush1.xpose.msra.mxu0 0.0
    %2984 = vmatprep.subr.mxu0 0.0
    %2985 = vmatpush1.xpose.msra.mxu0 0.0
    %2986 = vmatprep.subr.mxu0 0.0
    %2987 = vmatpush1.xpose.msra.mxu0 0.0
    %2988 = vmatprep.subr.mxu0 0.0
    %2989 = vmatpush1.xpose.msra.mxu0 0.0
    %2990 = vmatprep.subr.mxu0 0.0
    %2991 = vmatpush1.xpose.msra.mxu0 0.0
    %2992 = vmatprep.subr.mxu0 0.0
    %2993 = vmatpush1.xpose.msra.mxu0 0.0
    %2994 = vmatprep.subr.mxu0 0.0
    %2995 = vmatpush1.xpose.msra.mxu0 0.0
    %2996 = vmatprep.subr.mxu0 0.0
    %2997 = vmatpush1.xpose.msra.mxu0 0.0
    %2998 = vmatprep.subr.mxu0 0.0
    %2999 = vmatpush1.xpose.msra.mxu0 0.0
    %3000 = vmatprep.subr.mxu0 0.0
    %3001 = vmatpush1.xpose.msra.mxu0 0.0
    %3002 = vmatprep.subr.mxu0 0.0
    %3003 = vmatpush1.xpose.msra.mxu0 0.0
    %3004 = vmatprep.subr.mxu0 0.0
    %3005 = vmatpush1.xpose.msra.mxu0 0.0
    %3006 = vmatprep.mubr.f32.mxu0 0.0
    %3007 = vmatmul.mubr.f32.gmra.mrb[0].mxu0 %v2938
    %v3008 = vpop.f32.mrb[0].mxu0
    %v3009 = vadd.f32 0.0, %v3008
    %v3010 = vpop.f32.mrb[0].mxu0
    %3011 = vdwg.mxu0
    %v3012 = vsel %vm608, %v2603, 0
    %v3014 = vsel %vm608, %v2617, 0
    %3016 = vmatprep.subr.mxu0 0.0
    %3017 = vmatpush1.xpose.msra.mxu0 %v3014
    %3018 = vmatprep.subr.mxu0 0.0
    %3019 = vmatpush1.xpose.msra.mxu0 0.0
    %3020 = vmatprep.subr.mxu0 0.0
    %3021 = vmatpush1.xpose.msra.mxu0 0.0
    %3022 = vmatprep.subr.mxu0 0.0
    %3023 = vmatpush1.xpose.msra.mxu0 0.0
    %3024 = vmatprep.subr.mxu0 0.0
    %3025 = vmatpush1.xpose.msra.mxu0 0.0
    %3026 = vmatprep.subr.mxu0 0.0
    %3027 = vmatpush1.xpose.msra.mxu0 0.0
    %3028 = vmatprep.subr.mxu0 0.0
    %3029 = vmatpush1.xpose.msra.mxu0 0.0
    %3030 = vmatprep.subr.mxu0 0.0
    %3031 = vmatpush1.xpose.msra.mxu0 0.0
    %3032 = vmatprep.subr.mxu0 0.0
    %3033 = vmatpush1.xpose.msra.mxu0 0.0
    %3034 = vmatprep.subr.mxu0 0.0
    %3035 = vmatpush1.xpose.msra.mxu0 0.0
    %3036 = vmatprep.subr.mxu0 0.0
    %3037 = vmatpush1.xpose.msra.mxu0 0.0
    %3038 = vmatprep.subr.mxu0 0.0
    %3039 = vmatpush1.xpose.msra.mxu0 0.0
    %3040 = vmatprep.subr.mxu0 0.0
    %3041 = vmatpush1.xpose.msra.mxu0 0.0
    %3042 = vmatprep.subr.mxu0 0.0
    %3043 = vmatpush1.xpose.msra.mxu0 0.0
    %3044 = vmatprep.subr.mxu0 0.0
    %3045 = vmatpush1.xpose.msra.mxu0 0.0
    %3046 = vmatprep.subr.mxu0 0.0
    %3047 = vmatpush1.xpose.msra.mxu0 0.0
    %3048 = vmatprep.subr.mxu0 0.0
    %3049 = vmatpush1.xpose.msra.mxu0 0.0
    %3050 = vmatprep.subr.mxu0 0.0
    %3051 = vmatpush1.xpose.msra.mxu0 0.0
    %3052 = vmatprep.subr.mxu0 0.0
    %3053 = vmatpush1.xpose.msra.mxu0 0.0
    %3054 = vmatprep.subr.mxu0 0.0
    %3055 = vmatpush1.xpose.msra.mxu0 0.0
    %3056 = vmatprep.subr.mxu0 0.0
    %3057 = vmatpush1.xpose.msra.mxu0 0.0
    %3058 = vmatprep.subr.mxu0 0.0
    %3059 = vmatpush1.xpose.msra.mxu0 0.0
    %3060 = vmatprep.subr.mxu0 0.0
    %3061 = vmatpush1.xpose.msra.mxu0 0.0
    %3062 = vmatprep.subr.mxu0 0.0
    %3063 = vmatpush1.xpose.msra.mxu0 0.0
    %3064 = vmatprep.subr.mxu0 0.0
    %3065 = vmatpush1.xpose.msra.mxu0 0.0
    %3066 = vmatprep.subr.mxu0 0.0
    %3067 = vmatpush1.xpose.msra.mxu0 0.0
    %3068 = vmatprep.subr.mxu0 0.0
    %3069 = vmatpush1.xpose.msra.mxu0 0.0
    %3070 = vmatprep.subr.mxu0 0.0
    %3071 = vmatpush1.xpose.msra.mxu0 0.0
    %3072 = vmatprep.subr.mxu0 0.0
    %3073 = vmatpush1.xpose.msra.mxu0 0.0
    %3074 = vmatprep.subr.mxu0 0.0
    %3075 = vmatpush1.xpose.msra.mxu0 0.0
    %3076 = vmatprep.subr.mxu0 0.0
    %3077 = vmatpush1.xpose.msra.mxu0 0.0
    %3078 = vmatprep.subr.mxu0 0.0
    %3079 = vmatpush1.xpose.msra.mxu0 0.0
    %3080 = vmatprep.mubr.f32.mxu0 0.0
    %3081 = vmatmul.mubr.f32.gmra.mrb[0].mxu0 %v3012
    %v3082 = vpop.f32.mrb[0].mxu0
    %v3083 = vadd.f32 0.0, %v3082
    %v3084 = vpop.f32.mrb[0].mxu0
    %3085 = vdwg.mxu0
    %v3086 = vsel %vm608, %v2605, 0
    %v3088 = vsel %vm608, %v2619, 0
    %3090 = vmatprep.subr.mxu0 0.0
    %3091 = vmatpush1.xpose.msra.mxu0 %v3088
    %3092 = vmatprep.subr.mxu0 0.0
    %3093 = vmatpush1.xpose.msra.mxu0 0.0
    %3094 = vmatprep.subr.mxu0 0.0
    %3095 = vmatpush1.xpose.msra.mxu0 0.0
    %3096 = vmatprep.subr.mxu0 0.0
    %3097 = vmatpush1.xpose.msra.mxu0 0.0
    %3098 = vmatprep.subr.mxu0 0.0
    %3099 = vmatpush1.xpose.msra.mxu0 0.0
    %3100 = vmatprep.subr.mxu0 0.0
    %3101 = vmatpush1.xpose.msra.mxu0 0.0
    %3102 = vmatprep.subr.mxu0 0.0
    %3103 = vmatpush1.xpose.msra.mxu0 0.0
    %3104 = vmatprep.subr.mxu0 0.0
    %3105 = vmatpush1.xpose.msra.mxu0 0.0
    %3106 = vmatprep.subr.mxu0 0.0
    %3107 = vmatpush1.xpose.msra.mxu0 0.0
    %3108 = vmatprep.subr.mxu0 0.0
    %3109 = vmatpush1.xpose.msra.mxu0 0.0
    %3110 = vmatprep.subr.mxu0 0.0
    %3111 = vmatpush1.xpose.msra.mxu0 0.0
    %3112 = vmatprep.subr.mxu0 0.0
    %3113 = vmatpush1.xpose.msra.mxu0 0.0
    %3114 = vmatprep.subr.mxu0 0.0
    %3115 = vmatpush1.xpose.msra.mxu0 0.0
    %3116 = vmatprep.subr.mxu0 0.0
    %3117 = vmatpush1.xpose.msra.mxu0 0.0
    %3118 = vmatprep.subr.mxu0 0.0
    %3119 = vmatpush1.xpose.msra.mxu0 0.0
    %3120 = vmatprep.subr.mxu0 0.0
    %3121 = vmatpush1.xpose.msra.mxu0 0.0
    %3122 = vmatprep.subr.mxu0 0.0
    %3123 = vmatpush1.xpose.msra.mxu0 0.0
    %3124 = vmatprep.subr.mxu0 0.0
    %3125 = vmatpush1.xpose.msra.mxu0 0.0
    %3126 = vmatprep.subr.mxu0 0.0
    %3127 = vmatpush1.xpose.msra.mxu0 0.0
    %3128 = vmatprep.subr.mxu0 0.0
    %3129 = vmatpush1.xpose.msra.mxu0 0.0
    %3130 = vmatprep.subr.mxu0 0.0
    %3131 = vmatpush1.xpose.msra.mxu0 0.0
    %3132 = vmatprep.subr.mxu0 0.0
    %3133 = vmatpush1.xpose.msra.mxu0 0.0
    %3134 = vmatprep.subr.mxu0 0.0
    %3135 = vmatpush1.xpose.msra.mxu0 0.0
    %3136 = vmatprep.subr.mxu0 0.0
    %3137 = vmatpush1.xpose.msra.mxu0 0.0
    %3138 = vmatprep.subr.mxu0 0.0
    %3139 = vmatpush1.xpose.msra.mxu0 0.0
    %3140 = vmatprep.subr.mxu0 0.0
    %3141 = vmatpush1.xpose.msra.mxu0 0.0
    %3142 = vmatprep.subr.mxu0 0.0
    %3143 = vmatpush1.xpose.msra.mxu0 0.0
    %3144 = vmatprep.subr.mxu0 0.0
    %3145 = vmatpush1.xpose.msra.mxu0 0.0
    %3146 = vmatprep.subr.mxu0 0.0
    %3147 = vmatpush1.xpose.msra.mxu0 0.0
    %3148 = vmatprep.subr.mxu0 0.0
    %3149 = vmatpush1.xpose.msra.mxu0 0.0
    %3150 = vmatprep.subr.mxu0 0.0
    %3151 = vmatpush1.xpose.msra.mxu0 0.0
    %3152 = vmatprep.subr.mxu0 0.0
    %3153 = vmatpush1.xpose.msra.mxu0 0.0
    %3154 = vmatprep.mubr.f32.mxu0 0.0
    %3155 = vmatmul.mubr.f32.gmra.mrb[0].mxu0 %v3086
    %v3156 = vpop.f32.mrb[0].mxu0
    %v3157 = vadd.f32 0.0, %v3156
    %v3158 = vpop.f32.mrb[0].mxu0
    %3159 = vdwg.mxu0
    %v3160 = vsel %vm608, %v2607, 0
    %v3162 = vsel %vm608, %v2621, 0
    %3164 = vmatprep.subr.mxu0 0.0
    %3165 = vmatpush1.xpose.msra.mxu0 %v3162
    %3166 = vmatprep.subr.mxu0 0.0
    %3167 = vmatpush1.xpose.msra.mxu0 0.0
    %3168 = vmatprep.subr.mxu0 0.0
    %3169 = vmatpush1.xpose.msra.mxu0 0.0
    %3170 = vmatprep.subr.mxu0 0.0
    %3171 = vmatpush1.xpose.msra.mxu0 0.0
    %3172 = vmatprep.subr.mxu0 0.0
    %3173 = vmatpush1.xpose.msra.mxu0 0.0
    %3174 = vmatprep.subr.mxu0 0.0
    %3175 = vmatpush1.xpose.msra.mxu0 0.0
    %3176 = vmatprep.subr.mxu0 0.0
    %3177 = vmatpush1.xpose.msra.mxu0 0.0
    %3178 = vmatprep.subr.mxu0 0.0
    %3179 = vmatpush1.xpose.msra.mxu0 0.0
    %3180 = vmatprep.subr.mxu0 0.0
    %3181 = vmatpush1.xpose.msra.mxu0 0.0
    %3182 = vmatprep.subr.mxu0 0.0
    %3183 = vmatpush1.xpose.msra.mxu0 0.0
    %3184 = vmatprep.subr.mxu0 0.0
    %3185 = vmatpush1.xpose.msra.mxu0 0.0
    %3186 = vmatprep.subr.mxu0 0.0
    %3187 = vmatpush1.xpose.msra.mxu0 0.0
    %3188 = vmatprep.subr.mxu0 0.0
    %3189 = vmatpush1.xpose.msra.mxu0 0.0
    %3190 = vmatprep.subr.mxu0 0.0
    %3191 = vmatpush1.xpose.msra.mxu0 0.0
    %3192 = vmatprep.subr.mxu0 0.0
    %3193 = vmatpush1.xpose.msra.mxu0 0.0
    %3194 = vmatprep.subr.mxu0 0.0
    %3195 = vmatpush1.xpose.msra.mxu0 0.0
    %3196 = vmatprep.subr.mxu0 0.0
    %3197 = vmatpush1.xpose.msra.mxu0 0.0
    %3198 = vmatprep.subr.mxu0 0.0
    %3199 = vmatpush1.xpose.msra.mxu0 0.0
    %3200 = vmatprep.subr.mxu0 0.0
    %3201 = vmatpush1.xpose.msra.mxu0 0.0
    %3202 = vmatprep.subr.mxu0 0.0
    %3203 = vmatpush1.xpose.msra.mxu0 0.0
    %3204 = vmatprep.subr.mxu0 0.0
    %3205 = vmatpush1.xpose.msra.mxu0 0.0
    %3206 = vmatprep.subr.mxu0 0.0
    %3207 = vmatpush1.xpose.msra.mxu0 0.0
    %3208 = vmatprep.subr.mxu0 0.0
    %3209 = vmatpush1.xpose.msra.mxu0 0.0
    %3210 = vmatprep.subr.mxu0 0.0
    %3211 = vmatpush1.xpose.msra.mxu0 0.0
    %3212 = vmatprep.subr.mxu0 0.0
    %3213 = vmatpush1.xpose.msra.mxu0 0.0
    %3214 = vmatprep.subr.mxu0 0.0
    %3215 = vmatpush1.xpose.msra.mxu0 0.0
    %3216 = vmatprep.subr.mxu0 0.0
    %3217 = vmatpush1.xpose.msra.mxu0 0.0
    %3218 = vmatprep.subr.mxu0 0.0
    %3219 = vmatpush1.xpose.msra.mxu0 0.0
    %3220 = vmatprep.subr.mxu0 0.0
    %3221 = vmatpush1.xpose.msra.mxu0 0.0
    %3222 = vmatprep.subr.mxu0 0.0
    %3223 = vmatpush1.xpose.msra.mxu0 0.0
    %3224 = vmatprep.subr.mxu0 0.0
    %3225 = vmatpush1.xpose.msra.mxu0 0.0
    %3226 = vmatprep.subr.mxu0 0.0
    %3227 = vmatpush1.xpose.msra.mxu0 0.0
    %3228 = vmatprep.mubr.f32.mxu0 0.0
    %3229 = vmatmul.mubr.f32.gmra.mrb[0].mxu0 %v3160
    %v3230 = vpop.f32.mrb[0].mxu0
    %v3231 = vadd.f32 0.0, %v3230
    %v3232 = vpop.f32.mrb[0].mxu0
    %3233 = vdwg.mxu0
    %v3234 = vmul.f32 %v2713, 0.35355338
    %v3235 = vmul.f32 %v2787, 0.35355338
    %v3236 = vmul.f32 %v2861, 0.35355338
    %v3237 = vmul.f32 %v2935, 0.35355338
    %v3238 = vmul.f32 %v3009, 0.35355338
    %v3239 = vmul.f32 %v3083, 0.35355338
    %v3240 = vmul.f32 %v3157, 0.35355338
    %v3241 = vmul.f32 %v3231, 0.35355338
    %v3242 = vadd.f32 %v3234, %v1214
    %v3243 = vadd.f32 %v3235, %v1218
    %v3244 = vadd.f32 %v3236, %v1214
    %v3245 = vadd.f32 %v3237, %v1218
    %v3246 = vadd.f32 %v3238, %v1214
    %v3247 = vadd.f32 %v3239, %v1218
    %v3248 = vadd.f32 %v3240, %v1214
    %v3249 = vadd.f32 %v3241, %v1218
    %v3250 = vsel %vm608, %v3242, -inf
    %3251 = vmax.xlane.f32.xlu0 %v3250
    %v3252 = vpop.xlane.xlu0 %3251
    %v3253 = vsel %vm608, %v3243, -inf
    %3254 = vmax.xlane.f32.xlu0 %v3253
    %v3255 = vpop.xlane.xlu0 %3254
    %v3256 = vsel %vm608, %v3244, -inf
    %3257 = vmax.xlane.f32.xlu0 %v3256
    %v3258 = vpop.xlane.xlu0 %3257
    %v3259 = vsel %vm608, %v3245, -inf
    %3260 = vmax.xlane.f32.xlu0 %v3259
    %v3261 = vpop.xlane.xlu0 %3260
    %v3262 = vsel %vm608, %v3246, -inf
    %3263 = vmax.xlane.f32.xlu0 %v3262
    %v3264 = vpop.xlane.xlu0 %3263
    %v3265 = vsel %vm608, %v3247, -inf
    %3266 = vmax.xlane.f32.xlu0 %v3265
    %v3267 = vpop.xlane.xlu0 %3266
    %v3268 = vsel %vm608, %v3248, -inf
    %3269 = vmax.xlane.f32.xlu0 %v3268
    %v3270 = vpop.xlane.xlu0 %3269
    %v3271 = vsel %vm608, %v3249, -inf
    %3272 = vmax.xlane.f32.xlu0 %v3271
    %v3273 = vpop.xlane.xlu0 %3272
    %v3274 = vsub.f32 %v3242, %v3252
    %v3275 = vsub.f32 %v3243, %v3255
    %v3276 = vsub.f32 %v3244, %v3258
    %v3277 = vsub.f32 %v3245, %v3261
    %v3278 = vsub.f32 %v3246, %v3264
    %v3279 = vsub.f32 %v3247, %v3267
    %v3280 = vsub.f32 %v3248, %v3270
    %v3281 = vsub.f32 %v3249, %v3273
    %v3282 = vmul.f32 %v3274, 1.442695
    %v3283 = vpow.pop %v3282
    %v3284 = vmul.f32 %v3275, 1.442695
    %v3285 = vpow.pop %v3284
    %v3286 = vmul.f32 %v3276, 1.442695
    %v3287 = vpow.pop %v3286
    %v3288 = vmul.f32 %v3277, 1.442695
    %v3289 = vpow.pop %v3288
    %v3290 = vmul.f32 %v3278, 1.442695
    %v3291 = vpow.pop %v3290
    %v3292 = vmul.f32 %v3279, 1.442695
    %v3293 = vpow.pop %v3292
    %v3294 = vmul.f32 %v3280, 1.442695
    %v3295 = vpow.pop %v3294
    %v3296 = vmul.f32 %v3281, 1.442695
    %v3297 = vpow.pop %v3296
    %v3298 = vsel %vm608, %v3283, 0.0
    %3299 = vadd.xlane.f32.xlu0 %v3298
    %v3300 = vpop.xlane.xlu0 %3299
    %v3301 = vsel %vm608, %v3285, 0.0
    %3302 = vadd.xlane.f32.xlu0 %v3301
    %v3303 = vpop.xlane.xlu0 %3302
    %v3304 = vsel %vm608, %v3287, 0.0
    %3305 = vadd.xlane.f32.xlu0 %v3304
    %v3306 = vpop.xlane.xlu0 %3305
    %v3307 = vsel %vm608, %v3289, 0.0
    %3308 = vadd.xlane.f32.xlu0 %v3307
    %v3309 = vpop.xlane.xlu0 %3308
    %v3310 = vsel %vm608, %v3291, 0.0
    %3311 = vadd.xlane.f32.xlu0 %v3310
    %v3312 = vpop.xlane.xlu0 %3311
    %v3313 = vsel %vm608, %v3293, 0.0
    %3314 = vadd.xlane.f32.xlu0 %v3313
    %v3315 = vpop.xlane.xlu0 %3314
    %v3316 = vsel %vm608, %v3295, 0.0
    %3317 = vadd.xlane.f32.xlu0 %v3316
    %v3318 = vpop.xlane.xlu0 %3317
    %v3319 = vsel %vm608, %v3297, 0.0
    %3320 = vadd.xlane.f32.xlu0 %v3319
    %v3321 = vpop.xlane.xlu0 %3320
    %v3322 = vrcp.pop %v3300
    %v3323 = vrcp.pop %v3303
    %v3324 = vrcp.pop %v3306
    %v3325 = vrcp.pop %v3309
    %v3326 = vrcp.pop %v3312
    %v3327 = vrcp.pop %v3315
    %v3328 = vrcp.pop %v3318
    %v3329 = vrcp.pop %v3321
    %v3330 = vmul.f32 %v3283, %v3322
    %v3331 = vmul.f32 %v3285, %v3323
    %v3332 = vmul.f32 %v3287, %v3324
    %v3333 = vmul.f32 %v3289, %v3325
    %v3334 = vmul.f32 %v3291, %v3326
    %v3335 = vmul.f32 %v3293, %v3327
    %v3336 = vmul.f32 %v3295, %v3328
    %v3337 = vmul.f32 %v3297, %v3329
    %v3339 = vsel %vm608, %v3330, 0
    %3341 = vmatprep.subr.mxu0 0.0
    %3342 = vmatpush1.msra.mxu0 %v2586
    %3343 = vmatprep.subr.mxu0 0.0
    %3344 = vmatpush1.msra.mxu0 0.0
    %3345 = vmatprep.subr.mxu0 0.0
    %3346 = vmatpush1.msra.mxu0 0.0
    %3347 = vmatprep.subr.mxu0 0.0
    %3348 = vmatpush1.msra.mxu0 0.0
    %3349 = vmatprep.subr.mxu0 0.0
    %3350 = vmatpush1.msra.mxu0 0.0
    %3351 = vmatprep.subr.mxu0 0.0
    %3352 = vmatpush1.msra.mxu0 0.0
    %3353 = vmatprep.subr.mxu0 0.0
    %3354 = vmatpush1.msra.mxu0 0.0
    %3355 = vmatprep.subr.mxu0 0.0
    %3356 = vmatpush1.msra.mxu0 0.0
    %3357 = vmatprep.subr.mxu0 0.0
    %3358 = vmatpush1.msra.mxu0 0.0
    %3359 = vmatprep.subr.mxu0 0.0
    %3360 = vmatpush1.msra.mxu0 0.0
    %3361 = vmatprep.subr.mxu0 0.0
    %3362 = vmatpush1.msra.mxu0 0.0
    %3363 = vmatprep.subr.mxu0 0.0
    %3364 = vmatpush1.msra.mxu0 0.0
    %3365 = vmatprep.subr.mxu0 0.0
    %3366 = vmatpush1.msra.mxu0 0.0
    %3367 = vmatprep.subr.mxu0 0.0
    %3368 = vmatpush1.msra.mxu0 0.0
    %3369 = vmatprep.subr.mxu0 0.0
    %3370 = vmatpush1.msra.mxu0 0.0
    %3371 = vmatprep.subr.mxu0 0.0
    %3372 = vmatpush1.msra.mxu0 0.0
    %3373 = vmatprep.subr.mxu0 0.0
    %3374 = vmatpush1.msra.mxu0 0.0
    %3375 = vmatprep.subr.mxu0 0.0
    %3376 = vmatpush1.msra.mxu0 0.0
    %3377 = vmatprep.subr.mxu0 0.0
    %3378 = vmatpush1.msra.mxu0 0.0
    %3379 = vmatprep.subr.mxu0 0.0
    %3380 = vmatpush1.msra.mxu0 0.0
    %3381 = vmatprep.subr.mxu0 0.0
    %3382 = vmatpush1.msra.mxu0 0.0
    %3383 = vmatprep.subr.mxu0 0.0
    %3384 = vmatpush1.msra.mxu0 0.0
    %3385 = vmatprep.subr.mxu0 0.0
    %3386 = vmatpush1.msra.mxu0 0.0
    %3387 = vmatprep.subr.mxu0 0.0
    %3388 = vmatpush1.msra.mxu0 0.0
    %3389 = vmatprep.subr.mxu0 0.0
    %3390 = vmatpush1.msra.mxu0 0.0
    %3391 = vmatprep.subr.mxu0 0.0
    %3392 = vmatpush1.msra.mxu0 0.0
    %3393 = vmatprep.subr.mxu0 0.0
    %3394 = vmatpush1.msra.mxu0 0.0
    %3395 = vmatprep.subr.mxu0 0.0
    %3396 = vmatpush1.msra.mxu0 0.0
    %3397 = vmatprep.subr.mxu0 0.0
    %3398 = vmatpush1.msra.mxu0 0.0
    %3399 = vmatprep.subr.mxu0 0.0
    %3400 = vmatpush1.msra.mxu0 0.0
    %3401 = vmatprep.subr.mxu0 0.0
    %3402 = vmatpush1.msra.mxu0 0.0
    %3403 = vmatprep.subr.mxu0 0.0
    %3404 = vmatpush1.msra.mxu0 0.0
    %3405 = vmatprep.mubr.f32.mxu0 0.0
    %3406 = vmatmul.mubr.f32.gmra.mrb[0].mxu0 %v3339
    %v3407 = vpop.f32.mrb[0].mxu0
    %v3408 = vadd.f32 0.0, %v3407
    %v3409 = vpop.f32.mrb[0].mxu0
    %3410 = vdwg.mxu0
    %v3412 = vsel %vm608, %v3331, 0
    %3414 = vmatprep.subr.mxu0 0.0
    %3415 = vmatpush1.msra.mxu0 %v2591
    %3416 = vmatprep.subr.mxu0 0.0
    %3417 = vmatpush1.msra.mxu0 0.0
    %3418 = vmatprep.subr.mxu0 0.0
    %3419 = vmatpush1.msra.mxu0 0.0
    %3420 = vmatprep.subr.mxu0 0.0
    %3421 = vmatpush1.msra.mxu0 0.0
    %3422 = vmatprep.subr.mxu0 0.0
    %3423 = vmatpush1.msra.mxu0 0.0
    %3424 = vmatprep.subr.mxu0 0.0
    %3425 = vmatpush1.msra.mxu0 0.0
    %3426 = vmatprep.subr.mxu0 0.0
    %3427 = vmatpush1.msra.mxu0 0.0
    %3428 = vmatprep.subr.mxu0 0.0
    %3429 = vmatpush1.msra.mxu0 0.0
    %3430 = vmatprep.subr.mxu0 0.0
    %3431 = vmatpush1.msra.mxu0 0.0
    %3432 = vmatprep.subr.mxu0 0.0
    %3433 = vmatpush1.msra.mxu0 0.0
    %3434 = vmatprep.subr.mxu0 0.0
    %3435 = vmatpush1.msra.mxu0 0.0
    %3436 = vmatprep.subr.mxu0 0.0
    %3437 = vmatpush1.msra.mxu0 0.0
    %3438 = vmatprep.subr.mxu0 0.0
    %3439 = vmatpush1.msra.mxu0 0.0
    %3440 = vmatprep.subr.mxu0 0.0
    %3441 = vmatpush1.msra.mxu0 0.0
    %3442 = vmatprep.subr.mxu0 0.0
    %3443 = vmatpush1.msra.mxu0 0.0
    %3444 = vmatprep.subr.mxu0 0.0
    %3445 = vmatpush1.msra.mxu0 0.0
    %3446 = vmatprep.subr.mxu0 0.0
    %3447 = vmatpush1.msra.mxu0 0.0
    %3448 = vmatprep.subr.mxu0 0.0
    %3449 = vmatpush1.msra.mxu0 0.0
    %3450 = vmatprep.subr.mxu0 0.0
    %3451 = vmatpush1.msra.mxu0 0.0
    %3452 = vmatprep.subr.mxu0 0.0
    %3453 = vmatpush1.msra.mxu0 0.0
    %3454 = vmatprep.subr.mxu0 0.0
    %3455 = vmatpush1.msra.mxu0 0.0
    %3456 = vmatprep.subr.mxu0 0.0
    %3457 = vmatpush1.msra.mxu0 0.0
    %3458 = vmatprep.subr.mxu0 0.0
    %3459 = vmatpush1.msra.mxu0 0.0
    %3460 = vmatprep.subr.mxu0 0.0
    %3461 = vmatpush1.msra.mxu0 0.0
    %3462 = vmatprep.subr.mxu0 0.0
    %3463 = vmatpush1.msra.mxu0 0.0
    %3464 = vmatprep.subr.mxu0 0.0
    %3465 = vmatpush1.msra.mxu0 0.0
    %3466 = vmatprep.subr.mxu0 0.0
    %3467 = vmatpush1.msra.mxu0 0.0
    %3468 = vmatprep.subr.mxu0 0.0
    %3469 = vmatpush1.msra.mxu0 0.0
    %3470 = vmatprep.subr.mxu0 0.0
    %3471 = vmatpush1.msra.mxu0 0.0
    %3472 = vmatprep.subr.mxu0 0.0
    %3473 = vmatpush1.msra.mxu0 0.0
    %3474 = vmatprep.subr.mxu0 0.0
    %3475 = vmatpush1.msra.mxu0 0.0
    %3476 = vmatprep.subr.mxu0 0.0
    %3477 = vmatpush1.msra.mxu0 0.0
    %3478 = vmatprep.mubr.f32.mxu0 0.0
    %3479 = vmatmul.mubr.f32.gmra.mrb[0].mxu0 %v3412
    %v3480 = vpop.f32.mrb[0].mxu0
    %v3481 = vadd.f32 0.0, %v3480
    %v3482 = vpop.f32.mrb[0].mxu0
    %3483 = vdwg.mxu0
    %v3485 = vsel %vm608, %v3332, 0
    %3487 = vmatprep.subr.mxu0 0.0
    %3488 = vmatpush1.msra.mxu0 %v2625
    %3489 = vmatprep.subr.mxu0 0.0
    %3490 = vmatpush1.msra.mxu0 0.0
    %3491 = vmatprep.subr.mxu0 0.0
    %3492 = vmatpush1.msra.mxu0 0.0
    %3493 = vmatprep.subr.mxu0 0.0
    %3494 = vmatpush1.msra.mxu0 0.0
    %3495 = vmatprep.subr.mxu0 0.0
    %3496 = vmatpush1.msra.mxu0 0.0
    %3497 = vmatprep.subr.mxu0 0.0
    %3498 = vmatpush1.msra.mxu0 0.0
    %3499 = vmatprep.subr.mxu0 0.0
    %3500 = vmatpush1.msra.mxu0 0.0
    %3501 = vmatprep.subr.mxu0 0.0
    %3502 = vmatpush1.msra.mxu0 0.0
    %3503 = vmatprep.subr.mxu0 0.0
    %3504 = vmatpush1.msra.mxu0 0.0
    %3505 = vmatprep.subr.mxu0 0.0
    %3506 = vmatpush1.msra.mxu0 0.0
    %3507 = vmatprep.subr.mxu0 0.0
    %3508 = vmatpush1.msra.mxu0 0.0
    %3509 = vmatprep.subr.mxu0 0.0
    %3510 = vmatpush1.msra.mxu0 0.0
    %3511 = vmatprep.subr.mxu0 0.0
    %3512 = vmatpush1.msra.mxu0 0.0
    %3513 = vmatprep.subr.mxu0 0.0
    %3514 = vmatpush1.msra.mxu0 0.0
    %3515 = vmatprep.subr.mxu0 0.0
    %3516 = vmatpush1.msra.mxu0 0.0
    %3517 = vmatprep.subr.mxu0 0.0
    %3518 = vmatpush1.msra.mxu0 0.0
    %3519 = vmatprep.subr.mxu0 0.0
    %3520 = vmatpush1.msra.mxu0 0.0
    %3521 = vmatprep.subr.mxu0 0.0
    %3522 = vmatpush1.msra.mxu0 0.0
    %3523 = vmatprep.subr.mxu0 0.0
    %3524 = vmatpush1.msra.mxu0 0.0
    %3525 = vmatprep.subr.mxu0 0.0
    %3526 = vmatpush1.msra.mxu0 0.0
    %3527 = vmatprep.subr.mxu0 0.0
    %3528 = vmatpush1.msra.mxu0 0.0
    %3529 = vmatprep.subr.mxu0 0.0
    %3530 = vmatpush1.msra.mxu0 0.0
    %3531 = vmatprep.subr.mxu0 0.0
    %3532 = vmatpush1.msra.mxu0 0.0
    %3533 = vmatprep.subr.mxu0 0.0
    %3534 = vmatpush1.msra.mxu0 0.0
    %3535 = vmatprep.subr.mxu0 0.0
    %3536 = vmatpush1.msra.mxu0 0.0
    %3537 = vmatprep.subr.mxu0 0.0
    %3538 = vmatpush1.msra.mxu0 0.0
    %3539 = vmatprep.subr.mxu0 0.0
    %3540 = vmatpush1.msra.mxu0 0.0
    %3541 = vmatprep.subr.mxu0 0.0
    %3542 = vmatpush1.msra.mxu0 0.0
    %3543 = vmatprep.subr.mxu0 0.0
    %3544 = vmatpush1.msra.mxu0 0.0
    %3545 = vmatprep.subr.mxu0 0.0
    %3546 = vmatpush1.msra.mxu0 0.0
    %3547 = vmatprep.subr.mxu0 0.0
    %3548 = vmatpush1.msra.mxu0 0.0
    %3549 = vmatprep.subr.mxu0 0.0
    %3550 = vmatpush1.msra.mxu0 0.0
    %3551 = vmatprep.mubr.f32.mxu0 0.0
    %3552 = vmatmul.mubr.f32.gmra.mrb[0].mxu0 %v3485
    %v3553 = vpop.f32.mrb[0].mxu0
    %v3554 = vadd.f32 0.0, %v3553
    %v3555 = vpop.f32.mrb[0].mxu0
    %3556 = vdwg.mxu0
    %v3558 = vsel %vm608, %v3333, 0
    %3560 = vmatprep.subr.mxu0 0.0
    %3561 = vmatpush1.msra.mxu0 %v2627
    %3562 = vmatprep.subr.mxu0 0.0
    %3563 = vmatpush1.msra.mxu0 0.0
    %3564 = vmatprep.subr.mxu0 0.0
    %3565 = vmatpush1.msra.mxu0 0.0
    %3566 = vmatprep.subr.mxu0 0.0
    %3567 = vmatpush1.msra.mxu0 0.0
    %3568 = vmatprep.subr.mxu0 0.0
    %3569 = vmatpush1.msra.mxu0 0.0
    %3570 = vmatprep.subr.mxu0 0.0
    %3571 = vmatpush1.msra.mxu0 0.0
    %3572 = vmatprep.subr.mxu0 0.0
    %3573 = vmatpush1.msra.mxu0 0.0
    %3574 = vmatprep.subr.mxu0 0.0
    %3575 = vmatpush1.msra.mxu0 0.0
    %3576 = vmatprep.subr.mxu0 0.0
    %3577 = vmatpush1.msra.mxu0 0.0
    %3578 = vmatprep.subr.mxu0 0.0
    %3579 = vmatpush1.msra.mxu0 0.0
    %3580 = vmatprep.subr.mxu0 0.0
    %3581 = vmatpush1.msra.mxu0 0.0
    %3582 = vmatprep.subr.mxu0 0.0
    %3583 = vmatpush1.msra.mxu0 0.0
    %3584 = vmatprep.subr.mxu0 0.0
    %3585 = vmatpush1.msra.mxu0 0.0
    %3586 = vmatprep.subr.mxu0 0.0
    %3587 = vmatpush1.msra.mxu0 0.0
    %3588 = vmatprep.subr.mxu0 0.0
    %3589 = vmatpush1.msra.mxu0 0.0
    %3590 = vmatprep.subr.mxu0 0.0
    %3591 = vmatpush1.msra.mxu0 0.0
    %3592 = vmatprep.subr.mxu0 0.0
    %3593 = vmatpush1.msra.mxu0 0.0
    %3594 = vmatprep.subr.mxu0 0.0
    %3595 = vmatpush1.msra.mxu0 0.0
    %3596 = vmatprep.subr.mxu0 0.0
    %3597 = vmatpush1.msra.mxu0 0.0
    %3598 = vmatprep.subr.mxu0 0.0
    %3599 = vmatpush1.msra.mxu0 0.0
    %3600 = vmatprep.subr.mxu0 0.0
    %3601 = vmatpush1.msra.mxu0 0.0
    %3602 = vmatprep.subr.mxu0 0.0
    %3603 = vmatpush1.msra.mxu0 0.0
    %3604 = vmatprep.subr.mxu0 0.0
    %3605 = vmatpush1.msra.mxu0 0.0
    %3606 = vmatprep.subr.mxu0 0.0
    %3607 = vmatpush1.msra.mxu0 0.0
    %3608 = vmatprep.subr.mxu0 0.0
    %3609 = vmatpush1.msra.mxu0 0.0
    %3610 = vmatprep.subr.mxu0 0.0
    %3611 = vmatpush1.msra.mxu0 0.0
    %3612 = vmatprep.subr.mxu0 0.0
    %3613 = vmatpush1.msra.mxu0 0.0
    %3614 = vmatprep.subr.mxu0 0.0
    %3615 = vmatpush1.msra.mxu0 0.0
    %3616 = vmatprep.subr.mxu0 0.0
    %3617 = vmatpush1.msra.mxu0 0.0
    %3618 = vmatprep.subr.mxu0 0.0
    %3619 = vmatpush1.msra.mxu0 0.0
    %3620 = vmatprep.subr.mxu0 0.0
    %3621 = vmatpush1.msra.mxu0 0.0
    %3622 = vmatprep.subr.mxu0 0.0
    %3623 = vmatpush1.msra.mxu0 0.0
    %3624 = vmatprep.mubr.f32.mxu0 0.0
    %3625 = vmatmul.mubr.f32.gmra.mrb[0].mxu0 %v3558
    %v3626 = vpop.f32.mrb[0].mxu0
    %v3627 = vadd.f32 0.0, %v3626
    %v3628 = vpop.f32.mrb[0].mxu0
    %3629 = vdwg.mxu0
    %v3631 = vsel %vm608, %v3334, 0
    %3633 = vmatprep.subr.mxu0 0.0
    %3634 = vmatpush1.msra.mxu0 %v2631
    %3635 = vmatprep.subr.mxu0 0.0
    %3636 = vmatpush1.msra.mxu0 0.0
    %3637 = vmatprep.subr.mxu0 0.0
    %3638 = vmatpush1.msra.mxu0 0.0
    %3639 = vmatprep.subr.mxu0 0.0
    %3640 = vmatpush1.msra.mxu0 0.0
    %3641 = vmatprep.subr.mxu0 0.0
    %3642 = vmatpush1.msra.mxu0 0.0
    %3643 = vmatprep.subr.mxu0 0.0
    %3644 = vmatpush1.msra.mxu0 0.0
    %3645 = vmatprep.subr.mxu0 0.0
    %3646 = vmatpush1.msra.mxu0 0.0
    %3647 = vmatprep.subr.mxu0 0.0
    %3648 = vmatpush1.msra.mxu0 0.0
    %3649 = vmatprep.subr.mxu0 0.0
    %3650 = vmatpush1.msra.mxu0 0.0
    %3651 = vmatprep.subr.mxu0 0.0
    %3652 = vmatpush1.msra.mxu0 0.0
    %3653 = vmatprep.subr.mxu0 0.0
    %3654 = vmatpush1.msra.mxu0 0.0
    %3655 = vmatprep.subr.mxu0 0.0
    %3656 = vmatpush1.msra.mxu0 0.0
    %3657 = vmatprep.subr.mxu0 0.0
    %3658 = vmatpush1.msra.mxu0 0.0
    %3659 = vmatprep.subr.mxu0 0.0
    %3660 = vmatpush1.msra.mxu0 0.0
    %3661 = vmatprep.subr.mxu0 0.0
    %3662 = vmatpush1.msra.mxu0 0.0
    %3663 = vmatprep.subr.mxu0 0.0
    %3664 = vmatpush1.msra.mxu0 0.0
    %3665 = vmatprep.subr.mxu0 0.0
    %3666 = vmatpush1.msra.mxu0 0.0
    %3667 = vmatprep.subr.mxu0 0.0
    %3668 = vmatpush1.msra.mxu0 0.0
    %3669 = vmatprep.subr.mxu0 0.0
    %3670 = vmatpush1.msra.mxu0 0.0
    %3671 = vmatprep.subr.mxu0 0.0
    %3672 = vmatpush1.msra.mxu0 0.0
    %3673 = vmatprep.subr.mxu0 0.0
    %3674 = vmatpush1.msra.mxu0 0.0
    %3675 = vmatprep.subr.mxu0 0.0
    %3676 = vmatpush1.msra.mxu0 0.0
    %3677 = vmatprep.subr.mxu0 0.0
    %3678 = vmatpush1.msra.mxu0 0.0
    %3679 = vmatprep.subr.mxu0 0.0
    %3680 = vmatpush1.msra.mxu0 0.0
    %3681 = vmatprep.subr.mxu0 0.0
    %3682 = vmatpush1.msra.mxu0 0.0
    %3683 = vmatprep.subr.mxu0 0.0
    %3684 = vmatpush1.msra.mxu0 0.0
    %3685 = vmatprep.subr.mxu0 0.0
    %3686 = vmatpush1.msra.mxu0 0.0
    %3687 = vmatprep.subr.mxu0 0.0
    %3688 = vmatpush1.msra.mxu0 0.0
    %3689 = vmatprep.subr.mxu0 0.0
    %3690 = vmatpush1.msra.mxu0 0.0
    %3691 = vmatprep.subr.mxu0 0.0
    %3692 = vmatpush1.msra.mxu0 0.0
    %3693 = vmatprep.subr.mxu0 0.0
    %3694 = vmatpush1.msra.mxu0 0.0
    %3695 = vmatprep.subr.mxu0 0.0
    %3696 = vmatpush1.msra.mxu0 0.0
    %3697 = vmatprep.mubr.f32.mxu0 0.0
    %3698 = vmatmul.mubr.f32.gmra.mrb[0].mxu0 %v3631
    %v3699 = vpop.f32.mrb[0].mxu0
    %v3700 = vadd.f32 0.0, %v3699
    %v3701 = vpop.f32.mrb[0].mxu0
    %3702 = vdwg.mxu0
    %v3704 = vsel %vm608, %v3335, 0
    %3706 = vmatprep.subr.mxu0 0.0
    %3707 = vmatpush1.msra.mxu0 %v2633
    %3708 = vmatprep.subr.mxu0 0.0
    %3709 = vmatpush1.msra.mxu0 0.0
    %3710 = vmatprep.subr.mxu0 0.0
    %3711 = vmatpush1.msra.mxu0 0.0
    %3712 = vmatprep.subr.mxu0 0.0
    %3713 = vmatpush1.msra.mxu0 0.0
    %3714 = vmatprep.subr.mxu0 0.0
    %3715 = vmatpush1.msra.mxu0 0.0
    %3716 = vmatprep.subr.mxu0 0.0
    %3717 = vmatpush1.msra.mxu0 0.0
    %3718 = vmatprep.subr.mxu0 0.0
    %3719 = vmatpush1.msra.mxu0 0.0
    %3720 = vmatprep.subr.mxu0 0.0
    %3721 = vmatpush1.msra.mxu0 0.0
    %3722 = vmatprep.subr.mxu0 0.0
    %3723 = vmatpush1.msra.mxu0 0.0
    %3724 = vmatprep.subr.mxu0 0.0
    %3725 = vmatpush1.msra.mxu0 0.0
    %3726 = vmatprep.subr.mxu0 0.0
    %3727 = vmatpush1.msra.mxu0 0.0
    %3728 = vmatprep.subr.mxu0 0.0
    %3729 = vmatpush1.msra.mxu0 0.0
    %3730 = vmatprep.subr.mxu0 0.0
    %3731 = vmatpush1.msra.mxu0 0.0
    %3732 = vmatprep.subr.mxu0 0.0
    %3733 = vmatpush1.msra.mxu0 0.0
    %3734 = vmatprep.subr.mxu0 0.0
    %3735 = vmatpush1.msra.mxu0 0.0
    %3736 = vmatprep.subr.mxu0 0.0
    %3737 = vmatpush1.msra.mxu0 0.0
    %3738 = vmatprep.subr.mxu0 0.0
    %3739 = vmatpush1.msra.mxu0 0.0
    %3740 = vmatprep.subr.mxu0 0.0
    %3741 = vmatpush1.msra.mxu0 0.0
    %3742 = vmatprep.subr.mxu0 0.0
    %3743 = vmatpush1.msra.mxu0 0.0
    %3744 = vmatprep.subr.mxu0 0.0
    %3745 = vmatpush1.msra.mxu0 0.0
    %3746 = vmatprep.subr.mxu0 0.0
    %3747 = vmatpush1.msra.mxu0 0.0
    %3748 = vmatprep.subr.mxu0 0.0
    %3749 = vmatpush1.msra.mxu0 0.0
    %3750 = vmatprep.subr.mxu0 0.0
    %3751 = vmatpush1.msra.mxu0 0.0
    %3752 = vmatprep.subr.mxu0 0.0
    %3753 = vmatpush1.msra.mxu0 0.0
    %3754 = vmatprep.subr.mxu0 0.0
    %3755 = vmatpush1.msra.mxu0 0.0
    %3756 = vmatprep.subr.mxu0 0.0
    %3757 = vmatpush1.msra.mxu0 0.0
    %3758 = vmatprep.subr.mxu0 0.0
    %3759 = vmatpush1.msra.mxu0 0.0
    %3760 = vmatprep.subr.mxu0 0.0
    %3761 = vmatpush1.msra.mxu0 0.0
    %3762 = vmatprep.subr.mxu0 0.0
    %3763 = vmatpush1.msra.mxu0 0.0
    %3764 = vmatprep.subr.mxu0 0.0
    %3765 = vmatpush1.msra.mxu0 0.0
    %3766 = vmatprep.subr.mxu0 0.0
    %3767 = vmatpush1.msra.mxu0 0.0
    %3768 = vmatprep.subr.mxu0 0.0
    %3769 = vmatpush1.msra.mxu0 0.0
    %3770 = vmatprep.mubr.f32.mxu0 0.0
    %3771 = vmatmul.mubr.f32.gmra.mrb[0].mxu0 %v3704
    %v3772 = vpop.f32.mrb[0].mxu0
    %v3773 = vadd.f32 0.0, %v3772
    %v3774 = vpop.f32.mrb[0].mxu0
    %3775 = vdwg.mxu0
    %v3777 = vsel %vm608, %v3336, 0
    %3779 = vmatprep.subr.mxu0 0.0
    %3780 = vmatpush1.msra.mxu0 %v2637
    %3781 = vmatprep.subr.mxu0 0.0
    %3782 = vmatpush1.msra.mxu0 0.0
    %3783 = vmatprep.subr.mxu0 0.0
    %3784 = vmatpush1.msra.mxu0 0.0
    %3785 = vmatprep.subr.mxu0 0.0
    %3786 = vmatpush1.msra.mxu0 0.0
    %3787 = vmatprep.subr.mxu0 0.0
    %3788 = vmatpush1.msra.mxu0 0.0
    %3789 = vmatprep.subr.mxu0 0.0
    %3790 = vmatpush1.msra.mxu0 0.0
    %3791 = vmatprep.subr.mxu0 0.0
    %3792 = vmatpush1.msra.mxu0 0.0
    %3793 = vmatprep.subr.mxu0 0.0
    %3794 = vmatpush1.msra.mxu0 0.0
    %3795 = vmatprep.subr.mxu0 0.0
    %3796 = vmatpush1.msra.mxu0 0.0
    %3797 = vmatprep.subr.mxu0 0.0
    %3798 = vmatpush1.msra.mxu0 0.0
    %3799 = vmatprep.subr.mxu0 0.0
    %3800 = vmatpush1.msra.mxu0 0.0
    %3801 = vmatprep.subr.mxu0 0.0
    %3802 = vmatpush1.msra.mxu0 0.0
    %3803 = vmatprep.subr.mxu0 0.0
    %3804 = vmatpush1.msra.mxu0 0.0
    %3805 = vmatprep.subr.mxu0 0.0
    %3806 = vmatpush1.msra.mxu0 0.0
    %3807 = vmatprep.subr.mxu0 0.0
    %3808 = vmatpush1.msra.mxu0 0.0
    %3809 = vmatprep.subr.mxu0 0.0
    %3810 = vmatpush1.msra.mxu0 0.0
    %3811 = vmatprep.subr.mxu0 0.0
    %3812 = vmatpush1.msra.mxu0 0.0
    %3813 = vmatprep.subr.mxu0 0.0
    %3814 = vmatpush1.msra.mxu0 0.0
    %3815 = vmatprep.subr.mxu0 0.0
    %3816 = vmatpush1.msra.mxu0 0.0
    %3817 = vmatprep.subr.mxu0 0.0
    %3818 = vmatpush1.msra.mxu0 0.0
    %3819 = vmatprep.subr.mxu0 0.0
    %3820 = vmatpush1.msra.mxu0 0.0
    %3821 = vmatprep.subr.mxu0 0.0
    %3822 = vmatpush1.msra.mxu0 0.0
    %3823 = vmatprep.subr.mxu0 0.0
    %3824 = vmatpush1.msra.mxu0 0.0
    %3825 = vmatprep.subr.mxu0 0.0
    %3826 = vmatpush1.msra.mxu0 0.0
    %3827 = vmatprep.subr.mxu0 0.0
    %3828 = vmatpush1.msra.mxu0 0.0
    %3829 = vmatprep.subr.mxu0 0.0
    %3830 = vmatpush1.msra.mxu0 0.0
    %3831 = vmatprep.subr.mxu0 0.0
    %3832 = vmatpush1.msra.mxu0 0.0
    %3833 = vmatprep.subr.mxu0 0.0
    %3834 = vmatpush1.msra.mxu0 0.0
    %3835 = vmatprep.subr.mxu0 0.0
    %3836 = vmatpush1.msra.mxu0 0.0
    %3837 = vmatprep.subr.mxu0 0.0
    %3838 = vmatpush1.msra.mxu0 0.0
    %3839 = vmatprep.subr.mxu0 0.0
    %3840 = vmatpush1.msra.mxu0 0.0
    %3841 = vmatprep.subr.mxu0 0.0
    %3842 = vmatpush1.msra.mxu0 0.0
    %3843 = vmatprep.mubr.f32.mxu0 0.0
    %3844 = vmatmul.mubr.f32.gmra.mrb[0].mxu0 %v3777
    %v3845 = vpop.f32.mrb[0].mxu0
    %v3846 = vadd.f32 0.0, %v3845
    %v3847 = vpop.f32.mrb[0].mxu0
    %3848 = vdwg.mxu0
    %v3850 = vsel %vm608, %v3337, 0
    %3852 = vmatprep.subr.mxu0 0.0
    %3853 = vmatpush1.msra.mxu0 %v2639
    %3854 = vmatprep.subr.mxu0 0.0
    %3855 = vmatpush1.msra.mxu0 0.0
    %3856 = vmatprep.subr.mxu0 0.0
    %3857 = vmatpush1.msra.mxu0 0.0
    %3858 = vmatprep.subr.mxu0 0.0
    %3859 = vmatpush1.msra.mxu0 0.0
    %3860 = vmatprep.subr.mxu0 0.0
    %3861 = vmatpush1.msra.mxu0 0.0
    %3862 = vmatprep.subr.mxu0 0.0
    %3863 = vmatpush1.msra.mxu0 0.0
    %3864 = vmatprep.subr.mxu0 0.0
    %3865 = vmatpush1.msra.mxu0 0.0
    %3866 = vmatprep.subr.mxu0 0.0
    %3867 = vmatpush1.msra.mxu0 0.0
    %3868 = vmatprep.subr.mxu0 0.0
    %3869 = vmatpush1.msra.mxu0 0.0
    %3870 = vmatprep.subr.mxu0 0.0
    %3871 = vmatpush1.msra.mxu0 0.0
    %3872 = vmatprep.subr.mxu0 0.0
    %3873 = vmatpush1.msra.mxu0 0.0
    %3874 = vmatprep.subr.mxu0 0.0
    %3875 = vmatpush1.msra.mxu0 0.0
    %3876 = vmatprep.subr.mxu0 0.0
    %3877 = vmatpush1.msra.mxu0 0.0
    %3878 = vmatprep.subr.mxu0 0.0
    %3879 = vmatpush1.msra.mxu0 0.0
    %3880 = vmatprep.subr.mxu0 0.0
    %3881 = vmatpush1.msra.mxu0 0.0
    %3882 = vmatprep.subr.mxu0 0.0
    %3883 = vmatpush1.msra.mxu0 0.0
    %3884 = vmatprep.subr.mxu0 0.0
    %3885 = vmatpush1.msra.mxu0 0.0
    %3886 = vmatprep.subr.mxu0 0.0
    %3887 = vmatpush1.msra.mxu0 0.0
    %3888 = vmatprep.subr.mxu0 0.0
    %3889 = vmatpush1.msra.mxu0 0.0
    %3890 = vmatprep.subr.mxu0 0.0
    %3891 = vmatpush1.msra.mxu0 0.0
    %3892 = vmatprep.subr.mxu0 0.0
    %3893 = vmatpush1.msra.mxu0 0.0
    %3894 = vmatprep.subr.mxu0 0.0
    %3895 = vmatpush1.msra.mxu0 0.0
    %3896 = vmatprep.subr.mxu0 0.0
    %3897 = vmatpush1.msra.mxu0 0.0
    %3898 = vmatprep.subr.mxu0 0.0
    %3899 = vmatpush1.msra.mxu0 0.0
    %3900 = vmatprep.subr.mxu0 0.0
    %3901 = vmatpush1.msra.mxu0 0.0
    %3902 = vmatprep.subr.mxu0 0.0
    %3903 = vmatpush1.msra.mxu0 0.0
    %3904 = vmatprep.subr.mxu0 0.0
    %3905 = vmatpush1.msra.mxu0 0.0
    %3906 = vmatprep.subr.mxu0 0.0
    %3907 = vmatpush1.msra.mxu0 0.0
    %3908 = vmatprep.subr.mxu0 0.0
    %3909 = vmatpush1.msra.mxu0 0.0
    %3910 = vmatprep.subr.mxu0 0.0
    %3911 = vmatpush1.msra.mxu0 0.0
    %3912 = vmatprep.subr.mxu0 0.0
    %3913 = vmatpush1.msra.mxu0 0.0
    %3914 = vmatprep.subr.mxu0 0.0
    %3915 = vmatpush1.msra.mxu0 0.0
    %3916 = vmatprep.mubr.f32.mxu0 0.0
    %3917 = vmatmul.mubr.f32.gmra.mrb[0].mxu0 %v3850
    %v3918 = vpop.f32.mrb[0].mxu0
    %v3919 = vadd.f32 0.0, %v3918
    %v3920 = vpop.f32.mrb[0].mxu0
    %3921 = vdwg.mxu0
    %3924 = vrot.lane.b32.xlu0 %v3554, 8
    %v3925 = vpop.permute.xlu0 %3924
    %3926 = vrot.lane.b32.xlu0 %v3627, 8
    %v3927 = vpop.permute.xlu0 %3926
    %3932 = vrot.lane.b32.xlu0 %v3700, 16
    %v3933 = vpop.permute.xlu0 %3932
    %3934 = vrot.lane.b32.xlu0 %v3773, 16
    %v3935 = vpop.permute.xlu0 %3934
    %3940 = vrot.lane.b32.xlu0 %v3846, 24
    %v3941 = vpop.permute.xlu0 %3940
    %3942 = vrot.lane.b32.xlu0 %v3919, 24
    %v3943 = vpop.permute.xlu0 %3942
    %v3946 = vsel %vm608, %v3408, %v3925
    %v3947 = vsel %vm608, %v3481, %v3927
    %v3948 = vsel %vm1927, %v3946, %v3933
    %v3949 = vsel %vm1927, %v3947, %v3935
    %v3950 = vsel %vm1930, %v3948, %v3941
    %v3951 = vsel %vm1930, %v3949, %v3943
    %s3952 = scalar_lea.vmem %s14, 32
    %v3953 = vld [vmem:[%s3952] sm:$0xff]
    %v3954 = vld [vmem:[%s3952 + $0x8] sm:$0xff]
    %v3955 = vld [vmem:[%s3952 + $0x10] sm:$0xff]
    %v3956 = vld [vmem:[%s3952 + $0x18] sm:$0xff]
    %s3957 = scalar_lea.vmem %s15, 1
    %v3958 = vld [vmem:[%s3957] sm:$0x1]
    %v3960 = vlaneseq
    %v3961 = vshrl.u32 %v3960, 7
    %v3962 = vsub.s32 0, %v3961
    %v3963 = vrot.slane %v3958, %v3962
    %v3966 = vsel %vm244, %v3950, 0
    %v3969 = vsel %vm244, %v3951, 0
    %3971 = vmatprep.subr.mxu0 0.0
    %3972 = vmatpush1.msra.mxu0 %v3953
    %3973 = vmatprep.subr.mxu0 0.0
    %3974 = vmatpush1.msra.mxu0 %v3954
    %3975 = vmatprep.subr.mxu0 0.0
    %3976 = vmatpush1.msra.mxu0 %v3955
    %3977 = vmatprep.subr.mxu0 0.0
    %3978 = vmatpush1.msra.mxu0 %v3956
    %3979 = vmatprep.subr.mxu0 0.0
    %3980 = vmatpush1.msra.mxu0 0.0
    %3981 = vmatprep.subr.mxu0 0.0
    %3982 = vmatpush1.msra.mxu0 0.0
    %3983 = vmatprep.subr.mxu0 0.0
    %3984 = vmatpush1.msra.mxu0 0.0
    %3985 = vmatprep.subr.mxu0 0.0
    %3986 = vmatpush1.msra.mxu0 0.0
    %3987 = vmatprep.subr.mxu0 0.0
    %3988 = vmatpush1.msra.mxu0 0.0
    %3989 = vmatprep.subr.mxu0 0.0
    %3990 = vmatpush1.msra.mxu0 0.0
    %3991 = vmatprep.subr.mxu0 0.0
    %3992 = vmatpush1.msra.mxu0 0.0
    %3993 = vmatprep.subr.mxu0 0.0
    %3994 = vmatpush1.msra.mxu0 0.0
    %3995 = vmatprep.subr.mxu0 0.0
    %3996 = vmatpush1.msra.mxu0 0.0
    %3997 = vmatprep.subr.mxu0 0.0
    %3998 = vmatpush1.msra.mxu0 0.0
    %3999 = vmatprep.subr.mxu0 0.0
    %4000 = vmatpush1.msra.mxu0 0.0
    %4001 = vmatprep.subr.mxu0 0.0
    %4002 = vmatpush1.msra.mxu0 0.0
    %4003 = vmatprep.subr.mxu0 0.0
    %4004 = vmatpush1.msra.mxu0 0.0
    %4005 = vmatprep.subr.mxu0 0.0
    %4006 = vmatpush1.msra.mxu0 0.0
    %4007 = vmatprep.subr.mxu0 0.0
    %4008 = vmatpush1.msra.mxu0 0.0
    %4009 = vmatprep.subr.mxu0 0.0
    %4010 = vmatpush1.msra.mxu0 0.0
    %4011 = vmatprep.subr.mxu0 0.0
    %4012 = vmatpush1.msra.mxu0 0.0
    %4013 = vmatprep.subr.mxu0 0.0
    %4014 = vmatpush1.msra.mxu0 0.0
    %4015 = vmatprep.subr.mxu0 0.0
    %4016 = vmatpush1.msra.mxu0 0.0
    %4017 = vmatprep.subr.mxu0 0.0
    %4018 = vmatpush1.msra.mxu0 0.0
    %4019 = vmatprep.subr.mxu0 0.0
    %4020 = vmatpush1.msra.mxu0 0.0
    %4021 = vmatprep.subr.mxu0 0.0
    %4022 = vmatpush1.msra.mxu0 0.0
    %4023 = vmatprep.subr.mxu0 0.0
    %4024 = vmatpush1.msra.mxu0 0.0
    %4025 = vmatprep.subr.mxu0 0.0
    %4026 = vmatpush1.msra.mxu0 0.0
    %4027 = vmatprep.subr.mxu0 0.0
    %4028 = vmatpush1.msra.mxu0 0.0
    %4029 = vmatprep.subr.mxu0 0.0
    %4030 = vmatpush1.msra.mxu0 0.0
    %4031 = vmatprep.subr.mxu0 0.0
    %4032 = vmatpush1.msra.mxu0 0.0
    %4033 = vmatprep.subr.mxu0 0.0
    %4034 = vmatpush1.msra.mxu0 0.0
    %4035 = vmatprep.mubr.f32.mxu0 0.0
    %4036 = vmatmul.mubr.f32.gmra.mrb[0].mxu0 %v3966
    %v4037 = vpop.f32.mrb[0].mxu0
    %v4038 = vadd.f32 %v3963, %v4037
    %v4039 = vpop.f32.mrb[0].mxu0
    %4040 = vmatprep.mubr.f32.mxu0 0.0
    %4041 = vmatmul.mubr.f32.gmra.mrb[0].mxu0 %v3969
    %v4042 = vpop.f32.mrb[0].mxu0
    %v4043 = vadd.f32 %v3963, %v4042
    %v4044 = vpop.f32.mrb[0].mxu0
    %4045 = vdwg.mxu0
    %v4046 = vadd.f32 %v2322, %v4038
    %v4047 = vadd.f32 %v2323, %v4043
    %s4048 = scalar_lea.vmem %s16, 1
    %v4049 = vld [vmem:[%s4048] sm:$0x1]
    %s4050 = scalar_lea.vmem %s17, 1
    %v4051 = vld [vmem:[%s4050] sm:$0x1]
    %v4052 = vsel %vm244, %v4046, 0.0
    %4053 = vadd.xlane.f32.xlu0 %v4052
    %v4054 = vpop.xlane.xlu0 %4053
    %v4055 = vsel %vm244, %v4047, 0.0
    %4056 = vadd.xlane.f32.xlu0 %v4055
    %v4057 = vpop.xlane.xlu0 %4056
    %v4058 = vmul.f32 %v4054, %v251
    %v4059 = vmul.f32 %v4057, %v251
    %v4060 = vsub.f32 %v4046, %v4058
    %v4061 = vsub.f32 %v4047, %v4059
    %v4062 = vmul.f32 %v4060, %v4060
    %v4063 = vmul.f32 %v4061, %v4061
    %v4064 = vsel %vm244, %v4062, 0.0
    %4065 = vadd.xlane.f32.xlu0 %v4064
    %v4066 = vpop.xlane.xlu0 %4065
    %v4067 = vsel %vm244, %v4063, 0.0
    %4068 = vadd.xlane.f32.xlu0 %v4067
    %v4069 = vpop.xlane.xlu0 %4068
    %v4070 = vmul.f32 %v4066, %v251
    %v4071 = vmul.f32 %v4069, %v251
    %v4072 = vadd.f32 %v4070, 1e-12
    %v4073 = vadd.f32 %v4071, 1e-12
    %v4074 = vrsqrt.pop %v4072
    %v4075 = vrsqrt.pop %v4073
    %v4076 = vmul.f32 %v4060, %v4074
    %v4077 = vmul.f32 %v4061, %v4075
    %v4079 = vlaneseq
    %v4080 = vshrl.u32 %v4079, 7
    %v4081 = vsub.s32 0, %v4080
    %v4082 = vrot.slane %v4049, %v4081
    %v4084 = vmul.f32 %v4076, %v4082
    %v4085 = vmul.f32 %v4077, %v4082
    %v4087 = vlaneseq
    %v4088 = vshrl.u32 %v4087, 7
    %v4089 = vsub.s32 0, %v4088
    %v4090 = vrot.slane %v4051, %v4089
    %v4092 = vadd.f32 %v4084, %v4090
    %v4093 = vadd.f32 %v4085, %v4090
    %s4094 = scalar_lea.vmem %s18, 32
    %v4095 = vld [vmem:[%s4094] sm:$0xff]
    %v4096 = vld [vmem:[%s4094 + $0x8] sm:$0xff]
    %v4097 = vld [vmem:[%s4094 + $0x10] sm:$0xff]
    %v4098 = vld [vmem:[%s4094 + $0x18] sm:$0xff]
    %s4099 = scalar_lea.vmem %s19, 1
    %v4100 = vld [vmem:[%s4099] sm:$0x1]
    %v4102 = vlaneseq
    %v4103 = vshrl.u32 %v4102, 7
    %v4104 = vsub.s32 0, %v4103
    %v4105 = vrot.slane %v4100, %v4104
    %v4108 = vsel %vm244, %v4092, 0
    %v4111 = vsel %vm244, %v4093, 0
    %4113 = vmatprep.subr.mxu0 0.0
    %4114 = vmatpush1.msra.mxu0 %v4095
    %4115 = vmatprep.subr.mxu0 0.0
    %4116 = vmatpush1.msra.mxu0 %v4096
    %4117 = vmatprep.subr.mxu0 0.0
    %4118 = vmatpush1.msra.mxu0 %v4097
    %4119 = vmatprep.subr.mxu0 0.0
    %4120 = vmatpush1.msra.mxu0 %v4098
    %4121 = vmatprep.subr.mxu0 0.0
    %4122 = vmatpush1.msra.mxu0 0.0
    %4123 = vmatprep.subr.mxu0 0.0
    %4124 = vmatpush1.msra.mxu0 0.0
    %4125 = vmatprep.subr.mxu0 0.0
    %4126 = vmatpush1.msra.mxu0 0.0
    %4127 = vmatprep.subr.mxu0 0.0
    %4128 = vmatpush1.msra.mxu0 0.0
    %4129 = vmatprep.subr.mxu0 0.0
    %4130 = vmatpush1.msra.mxu0 0.0
    %4131 = vmatprep.subr.mxu0 0.0
    %4132 = vmatpush1.msra.mxu0 0.0
    %4133 = vmatprep.subr.mxu0 0.0
    %4134 = vmatpush1.msra.mxu0 0.0
    %4135 = vmatprep.subr.mxu0 0.0
    %4136 = vmatpush1.msra.mxu0 0.0
    %4137 = vmatprep.subr.mxu0 0.0
    %4138 = vmatpush1.msra.mxu0 0.0
    %4139 = vmatprep.subr.mxu0 0.0
    %4140 = vmatpush1.msra.mxu0 0.0
    %4141 = vmatprep.subr.mxu0 0.0
    %4142 = vmatpush1.msra.mxu0 0.0
    %4143 = vmatprep.subr.mxu0 0.0
    %4144 = vmatpush1.msra.mxu0 0.0
    %4145 = vmatprep.subr.mxu0 0.0
    %4146 = vmatpush1.msra.mxu0 0.0
    %4147 = vmatprep.subr.mxu0 0.0
    %4148 = vmatpush1.msra.mxu0 0.0
    %4149 = vmatprep.subr.mxu0 0.0
    %4150 = vmatpush1.msra.mxu0 0.0
    %4151 = vmatprep.subr.mxu0 0.0
    %4152 = vmatpush1.msra.mxu0 0.0
    %4153 = vmatprep.subr.mxu0 0.0
    %4154 = vmatpush1.msra.mxu0 0.0
    %4155 = vmatprep.subr.mxu0 0.0
    %4156 = vmatpush1.msra.mxu0 0.0
    %4157 = vmatprep.subr.mxu0 0.0
    %4158 = vmatpush1.msra.mxu0 0.0
    %4159 = vmatprep.subr.mxu0 0.0
    %4160 = vmatpush1.msra.mxu0 0.0
    %4161 = vmatprep.subr.mxu0 0.0
    %4162 = vmatpush1.msra.mxu0 0.0
    %4163 = vmatprep.subr.mxu0 0.0
    %4164 = vmatpush1.msra.mxu0 0.0
    %4165 = vmatprep.subr.mxu0 0.0
    %4166 = vmatpush1.msra.mxu0 0.0
    %4167 = vmatprep.subr.mxu0 0.0
    %4168 = vmatpush1.msra.mxu0 0.0
    %4169 = vmatprep.subr.mxu0 0.0
    %4170 = vmatpush1.msra.mxu0 0.0
    %4171 = vmatprep.subr.mxu0 0.0
    %4172 = vmatpush1.msra.mxu0 0.0
    %4173 = vmatprep.subr.mxu0 0.0
    %4174 = vmatpush1.msra.mxu0 0.0
    %4175 = vmatprep.subr.mxu0 0.0
    %4176 = vmatpush1.msra.mxu0 0.0
    %4177 = vmatprep.mubr.f32.mxu0 0.0
    %4178 = vmatmul.mubr.f32.gmra.mrb[0].mxu0 %v4108
    %v4179 = vpop.f32.mrb[0].mxu0
    %v4180 = vadd.f32 %v4105, %v4179
    %v4181 = vpop.f32.mrb[0].mxu0
    %4182 = vmatprep.mubr.f32.mxu0 0.0
    %4183 = vmatmul.mubr.f32.gmra.mrb[0].mxu0 %v4111
    %v4184 = vpop.f32.mrb[0].mxu0
    %v4185 = vadd.f32 %v4105, %v4184
    %v4186 = vpop.f32.mrb[0].mxu0
    %4187 = vdwg.mxu0
    %v4188 = vmul.f32 %v4180, 0.5
    %v4189 = vmul.f32 %v4185, 0.5
    %v4190 = vmul.f32 %v4180, 0.044715
    %v4191 = vmul.f32 %v4185, 0.044715
    %v4192 = vmul.f32 %v4190, %v4180
    %v4193 = vmul.f32 %v4191, %v4185
    %v4194 = vmul.f32 %v4192, %v4180
    %v4195 = vmul.f32 %v4193, %v4185
    %v4196 = vadd.f32 %v4180, %v4194
    %v4197 = vadd.f32 %v4185, %v4195
    %v4198 = vmul.f32 %v4196, 0.7978846
    %v4199 = vmul.f32 %v4197, 0.7978846
    %v4200 = vtanh.pop %v4198
    %v4201 = vtanh.pop %v4199
    %v4202 = vadd.f32 %v4200, 1.0
    %v4203 = vadd.f32 %v4201, 1.0
    %v4204 = vmul.f32 %v4188, %v4202
    %v4205 = vmul.f32 %v4189, %v4203
    %s4206 = scalar_lea.vmem %s20, 64
    %v4207 = vld [vmem:[%s4206] sm:$0xff]
    %v4208 = vld [vmem:[%s4206 + $0x8] sm:$0xff]
    %v4209 = vld [vmem:[%s4206 + $0x10] sm:$0xff]
    %v4210 = vld [vmem:[%s4206 + $0x18] sm:$0xff]
    %v4211 = vld [vmem:[%s4206 + $0x20] sm:$0xff]
    %v4212 = vld [vmem:[%s4206 + $0x28] sm:$0xff]
    %v4213 = vld [vmem:[%s4206 + $0x30] sm:$0xff]
    %v4214 = vld [vmem:[%s4206 + $0x38] sm:$0xff]
    %s4215 = scalar_lea.vmem %s21, 1
    %v4216 = vld [vmem:[%s4215] sm:$0x1]
    %v4218 = vlaneseq
    %v4219 = vshrl.u32 %v4218, 7
    %v4220 = vsub.s32 0, %v4219
    %v4221 = vrot.slane %v4216, %v4220
    %v4224 = vsel %vm2196, %v4204, 0
    %v4227 = vsel %vm2196, %v4205, 0
    %4229 = vmatprep.subr.mxu0 0.0
    %4230 = vmatpush1.msra.mxu0 %v4207
    %4231 = vmatprep.subr.mxu0 0.0
    %4232 = vmatpush1.msra.mxu0 %v4208
    %4233 = vmatprep.subr.mxu0 0.0
    %4234 = vmatpush1.msra.mxu0 %v4209
    %4235 = vmatprep.subr.mxu0 0.0
    %4236 = vmatpush1.msra.mxu0 %v4210
    %4237 = vmatprep.subr.mxu0 0.0
    %4238 = vmatpush1.msra.mxu0 %v4211
    %4239 = vmatprep.subr.mxu0 0.0
    %4240 = vmatpush1.msra.mxu0 %v4212
    %4241 = vmatprep.subr.mxu0 0.0
    %4242 = vmatpush1.msra.mxu0 %v4213
    %4243 = vmatprep.subr.mxu0 0.0
    %4244 = vmatpush1.msra.mxu0 %v4214
    %4245 = vmatprep.subr.mxu0 0.0
    %4246 = vmatpush1.msra.mxu0 0.0
    %4247 = vmatprep.subr.mxu0 0.0
    %4248 = vmatpush1.msra.mxu0 0.0
    %4249 = vmatprep.subr.mxu0 0.0
    %4250 = vmatpush1.msra.mxu0 0.0
    %4251 = vmatprep.subr.mxu0 0.0
    %4252 = vmatpush1.msra.mxu0 0.0
    %4253 = vmatprep.subr.mxu0 0.0
    %4254 = vmatpush1.msra.mxu0 0.0
    %4255 = vmatprep.subr.mxu0 0.0
    %4256 = vmatpush1.msra.mxu0 0.0
    %4257 = vmatprep.subr.mxu0 0.0
    %4258 = vmatpush1.msra.mxu0 0.0
    %4259 = vmatprep.subr.mxu0 0.0
    %4260 = vmatpush1.msra.mxu0 0.0
    %4261 = vmatprep.subr.mxu0 0.0
    %4262 = vmatpush1.msra.mxu0 0.0
    %4263 = vmatprep.subr.mxu0 0.0
    %4264 = vmatpush1.msra.mxu0 0.0
    %4265 = vmatprep.subr.mxu0 0.0
    %4266 = vmatpush1.msra.mxu0 0.0
    %4267 = vmatprep.subr.mxu0 0.0
    %4268 = vmatpush1.msra.mxu0 0.0
    %4269 = vmatprep.subr.mxu0 0.0
    %4270 = vmatpush1.msra.mxu0 0.0
    %4271 = vmatprep.subr.mxu0 0.0
    %4272 = vmatpush1.msra.mxu0 0.0
    %4273 = vmatprep.subr.mxu0 0.0
    %4274 = vmatpush1.msra.mxu0 0.0
    %4275 = vmatprep.subr.mxu0 0.0
    %4276 = vmatpush1.msra.mxu0 0.0
    %4277 = vmatprep.subr.mxu0 0.0
    %4278 = vmatpush1.msra.mxu0 0.0
    %4279 = vmatprep.subr.mxu0 0.0
    %4280 = vmatpush1.msra.mxu0 0.0
    %4281 = vmatprep.subr.mxu0 0.0
    %4282 = vmatpush1.msra.mxu0 0.0
    %4283 = vmatprep.subr.mxu0 0.0
    %4284 = vmatpush1.msra.mxu0 0.0
    %4285 = vmatprep.subr.mxu0 0.0
    %4286 = vmatpush1.msra.mxu0 0.0
    %4287 = vmatprep.subr.mxu0 0.0
    %4288 = vmatpush1.msra.mxu0 0.0
    %4289 = vmatprep.subr.mxu0 0.0
    %4290 = vmatpush1.msra.mxu0 0.0
    %4291 = vmatprep.subr.mxu0 0.0
    %4292 = vmatpush1.msra.mxu0 0.0
    %4293 = vmatprep.mubr.f32.mxu0 0.0
    %4294 = vmatmul.mubr.f32.gmra.mrb[0].mxu0 %v4224
    %v4295 = vpop.f32.mrb[0].mxu0
    %v4296 = vadd.f32 %v4221, %v4295
    %v4297 = vpop.f32.mrb[0].mxu0
    %4298 = vmatprep.mubr.f32.mxu0 0.0
    %4299 = vmatmul.mubr.f32.gmra.mrb[0].mxu0 %v4227
    %v4300 = vpop.f32.mrb[0].mxu0
    %v4301 = vadd.f32 %v4221, %v4300
    %v4302 = vpop.f32.mrb[0].mxu0
    %4303 = vdwg.mxu0
    %v4304 = vadd.f32 %v4092, %v4296
    %v4305 = vadd.f32 %v4093, %v4301
    %s4306 = scalar_lea.vmem %s22, 1
    %v4307 = vld [vmem:[%s4306] sm:$0x1]
    %s4308 = scalar_lea.vmem %s23, 1
    %v4309 = vld [vmem:[%s4308] sm:$0x1]
    %v4310 = vsel %vm244, %v4304, 0.0
    %4311 = vadd.xlane.f32.xlu0 %v4310
    %v4312 = vpop.xlane.xlu0 %4311
    %v4313 = vsel %vm244, %v4305, 0.0
    %4314 = vadd.xlane.f32.xlu0 %v4313
    %v4315 = vpop.xlane.xlu0 %4314
    %v4316 = vmul.f32 %v4312, %v251
    %v4317 = vmul.f32 %v4315, %v251
    %v4318 = vsub.f32 %v4304, %v4316
    %v4319 = vsub.f32 %v4305, %v4317
    %v4320 = vmul.f32 %v4318, %v4318
    %v4321 = vmul.f32 %v4319, %v4319
    %v4322 = vsel %vm244, %v4320, 0.0
    %4323 = vadd.xlane.f32.xlu0 %v4322
    %v4324 = vpop.xlane.xlu0 %4323
    %v4325 = vsel %vm244, %v4321, 0.0
    %4326 = vadd.xlane.f32.xlu0 %v4325
    %v4327 = vpop.xlane.xlu0 %4326
    %v4328 = vmul.f32 %v4324, %v251
    %v4329 = vmul.f32 %v4327, %v251
    %v4330 = vadd.f32 %v4328, 1e-12
    %v4331 = vadd.f32 %v4329, 1e-12
    %v4332 = vrsqrt.pop %v4330
    %v4333 = vrsqrt.pop %v4331
    %v4334 = vmul.f32 %v4318, %v4332
    %v4335 = vmul.f32 %v4319, %v4333
    %v4337 = vlaneseq
    %v4338 = vshrl.u32 %v4337, 7
    %v4339 = vsub.s32 0, %v4338
    %v4340 = vrot.slane %v4307, %v4339
    %v4342 = vmul.f32 %v4334, %v4340
    %v4343 = vmul.f32 %v4335, %v4340
    %v4345 = vlaneseq
    %v4346 = vshrl.u32 %v4345, 7
    %v4347 = vsub.s32 0, %v4346
    %v4348 = vrot.slane %v4309, %v4347
    %v4350 = vadd.f32 %v4342, %v4348
    %v4351 = vadd.f32 %v4343, %v4348
    %v4354 = vrot.slane %v4351, 7
    %vm4355 = vcmask 1041409
    %v4356 = vsel %vm4355, %v4354, %v4350
    %vm4358 = vcmask 254976
    %4359 = vst.msk [vmem:[#allocation5] sm:$0x3] %vm4358, %v4356
    // Predicated region
    $region102: #{bert_encoder.1} parent=1 // pred_check
      _
    $region103: #{bert_encoder.1} parent=1 // pred_check_branch
      %4361 = sbr.rel (0) target = $region105
    $region104: #{bert_encoder.1} parent=1 // pred_region
      %s4363 = ssub.s32 32, 32
      %4364 = vsyncadd [#allocation4], %s4363
      %s4366 = sshll.u32 [#allocation5], 4
      %s4367 = int_to_ptr.vmem [resolvable:$true] %s4366
      %4369 = dma.vmem_to_hbm [thread:$0]  %s4367, 32, %s24, [#allocation4]
    $region105: #{bert_encoder.1} parent=1 // pred_fallthru
      _
    // Predicated region
    $region106: #{bert_encoder.1} parent=1 // pred_check
      _
    $region107: #{bert_encoder.1} parent=1 // pred_check_branch
      %4371 = sbr.rel (0) target = $region109
    $region108: #{bert_encoder.1} parent=1 // pred_region
      %4372 = dma.done [#allocation4], 32
    $region109: #{bert_encoder.1} parent=1 // pred_fallthru
      _
    %4373 = vsyncpa [#allocation3], 1
    %4374 = vsyncpa [#allocation4], 1

</llo_original>
